<compile_context>
chip_gen: v7x
topology: tpu7x:2x2x1
jax: 0.10.0
libtpu: 0.0.40
codegen_flags: <defaults>
</compile_context>

<pallas_src>
import functools

import jax
import jax.numpy as jnp
from jax.experimental import pallas as pl
from jax.experimental.pallas import tpu as pltpu

_LANE = 128
_SUBLANE = 8


def _round_up(x, m):
    return (x + m - 1) // m * m


# ----------------------------------------------------------------------------
# Fused multi-layer LSTM kernel (grid = (batch_tiles, time_blocks))
# ----------------------------------------------------------------------------
def _lstm_stack_kernel(gx_ref, mask_ref, whh_ref, wih_ref, bias_ref,
                       y_ref, h_st, c_st, h_seq, g_buf,
                       *, num_layers, time_block, hidden_pad):
    Hp = hidden_pad
    TT = time_block
    ts = pl.program_id(1)

    # zero-init (h_0, c_0) for every layer at the start of each batch tile's sweep
    @pl.when(ts == 0)
    def _():
        h_st[...] = jnp.zeros_like(h_st)
        c_st[...] = jnp.zeros_like(c_st)

    def run_layer(layer, gin_ref, is_last):
        whh = whh_ref[layer]                          # (Hp, 4Hp) bf16, loaded once

        def step(tt, carry):
            h_prev = h_st[layer]                      # (BB, Hp) f32
            c_prev = c_st[layer]
            gates = gin_ref[tt] + jnp.dot(            # recurrent matmul only
                h_prev.astype(whh.dtype), whh,
                preferred_element_type=jnp.float32)   # (BB, 4Hp) f32
            # PyTorch gate order: i, f, g, o ; Hp-aligned slices are lane-aligned
            i_g = jax.nn.sigmoid(gates[:, 0 * Hp:1 * Hp])
            f_g = jax.nn.sigmoid(gates[:, 1 * Hp:2 * Hp])
            g_g = jnp.tanh(gates[:, 2 * Hp:3 * Hp])
            o_g = jax.nn.sigmoid(gates[:, 3 * Hp:4 * Hp])
            c_new = f_g * c_prev + i_g * g_g
            h_new = o_g * jnp.tanh(c_new)

            keep = mask_ref[tt] > 0.0                 # (BB, 1) bool: t < length
            # packed-sequence semantics: freeze state on padded steps (one vsel each)
            h_upd = jnp.where(keep, h_new, h_prev)
            c_upd = jnp.where(keep, c_new, c_prev)
            h_st[layer] = h_upd
            c_st[layer] = c_upd
            if is_last:
                # exact zeros in padded region (matches pad_packed_sequence)
                y_ref[tt] = jnp.where(keep, h_new, 0.0).astype(y_ref.dtype)
            else:
                h_seq[tt] = h_upd                     # feed next layer
            return carry

        jax.lax.fori_loop(0, TT, step, 0, unroll=True)

    # layer 0: its input projection was hoisted out of the kernel (gx_ref)
    run_layer(0, gx_ref, num_layers == 1)

    # layers >= 1: batched input projection over the whole TT block, then recurrence
    for layer in range(1, num_layers):
        hs = h_seq[...].reshape(TT * h_seq.shape[1], Hp)
        g = jnp.dot(hs.astype(wih_ref.dtype), wih_ref[layer],
                    preferred_element_type=jnp.float32) + bias_ref[layer]
        g_buf[...] = g.reshape(g_buf.shape)
        run_layer(layer, g_buf, layer == num_layers - 1)


# ----------------------------------------------------------------------------
# Model wrapper (parameter setup + padding / hoisted projection in plain JAX)
# ----------------------------------------------------------------------------
class LSTMModelPallas:
    """Pallas equivalent of the PyTorch LSTMModel forward pass."""

    def __init__(self, input_size, hidden_size, num_layers, key, *, time_block=16):
        self.input_size = input_size
        self.hidden_size = hidden_size
        self.num_layers = num_layers
        self.time_block = time_block

        H = hidden_size
        Hp = _round_up(H, _LANE)
        self.hidden_pad = Hp
        k = 1.0 / float(hidden_size) ** 0.5

        wih_l, whh_l, bias_l = [], [], []
        for layer in range(num_layers):
            in_sz = input_size if layer == 0 else hidden_size
            key, k1, k2, k3, k4 = jax.random.split(key, 5)
            # PyTorch nn.LSTM param shapes: W_ih (4H, in), W_hh (4H, H), b_* (4H,)
            w_ih = jax.random.uniform(k1, (4 * H, in_sz), jnp.float32, -k, k)
            w_hh = jax.random.uniform(k2, (4 * H, H), jnp.float32, -k, k)
            b_ih = jax.random.uniform(k3, (4 * H,), jnp.float32, -k, k)
            b_hh = jax.random.uniform(k4, (4 * H,), jnp.float32, -k, k)
            wih_l.append(w_ih)
            whh_l.append(w_hh)
            bias_l.append(b_ih + b_hh)

        def pad_t(w, in_dim, in_pad):
            # (4H, in_dim) -> transposed/padded (in_pad, 4*Hp); gate g in cols [g*Hp, g*Hp+H)
            out = jnp.zeros((in_pad, 4 * Hp), jnp.float32)
            for g in range(4):
                out = out.at[:in_dim, g * Hp:g * Hp + H].set(w[g * H:(g + 1) * H, :].T)
            return out

        def pad_bias(b):
            out = jnp.zeros((4 * Hp,), jnp.float32)
            for g in range(4):
                out = out.at[g * Hp:g * Hp + H].set(b[g * H:(g + 1) * H])
            return out

        # layer-0 input projection (used by the hoisted XLA matmul), bf16 weights
        self.w_ih0_t = pad_t(wih_l[0], input_size, input_size).astype(jnp.bfloat16)
        self.bias0 = pad_bias(bias_l[0])                                 # f32 (4Hp,)

        # stacked recurrent weights for all layers: (L, Hp, 4Hp) bf16
        self.w_hh_t = jnp.stack(
            [pad_t(whh_l[l], H, Hp) for l in range(num_layers)]).astype(jnp.bfloat16)
        # stacked input weights / biases for layers >= 1 (slot 0 unused/zero)
        wih_rest = [jnp.zeros((Hp, 4 * Hp), jnp.float32)]
        brest = [jnp.zeros((4 * Hp,), jnp.float32)]
        for l in range(1, num_layers):
            wih_rest.append(pad_t(wih_l[l], H, Hp))
            brest.append(pad_bias(bias_l[l]))
        self.w_ih_rest_t = jnp.stack(wih_rest).astype(jnp.bfloat16)      # (L, Hp, 4Hp)
        self.bias_rest = jnp.stack(brest).reshape(num_layers, 1, 4 * Hp)  # f32

    def __call__(self, x, lengths):
        # x: (B, T, input_size) batch_first; lengths: (B,) ints
        B, T, I = x.shape
        H, Hp, L = self.hidden_size, self.hidden_pad, self.num_layers
        lengths = lengths.astype(jnp.int32)

        # NOTE: host sync (pad_packed_sequence pads to max(lengths)); fine outside jit.
        t_out = max(1, int(jnp.max(lengths)))

        # balanced time blocking: nt blocks of TT steps, minimal padding
        nt = -(-t_out // self.time_block)
        TT = -(-t_out // nt)
        T_pad = nt * TT

        # batch padding / tiling: sublane-aligned; 2 tiles when possible (megacore)
        B_pad = _round_up(B, _SUBLANE)
        if B_pad >= 2 * _SUBLANE:
            BB = _round_up(-(-B_pad // 2), _SUBLANE)
            B_pad = 2 * BB
        else:
            BB = B_pad
        nb = B_pad // BB

        # time-major, truncated to max(lengths), zero-padded
        x_tm = jnp.transpose(x[:, :t_out, :], (1, 0, 2)).astype(jnp.float32)
        x_tm = jnp.pad(x_tm, ((0, T_pad - t_out), (0, B_pad - B), (0, 0)))

        # hoisted layer-0 input projection: one (T*B, I) x (I, 4Hp) MXU matmul in XLA
        gx0 = jnp.einsum("tbi,ig->tbg", x_tm.astype(jnp.bfloat16), self.w_ih0_t,
                         preferred_element_type=jnp.float32) + self.bias0  # (T_pad,B_pad,4Hp)

        # validity mask: 1.0 where t < length (padded rows / padded time get 0)
        lens_pad = jnp.pad(lengths, (0, B_pad - B))
        t_idx = jnp.arange(T_pad, dtype=jnp.int32)
        mask = (t_idx[:, None] < lens_pad[None, :]).astype(jnp.float32)[:, :, None]

        # rough VMEM budget; raise the scoped limit only when it gets large
        wb = (self.w_hh_t.size + self.w_ih_rest_t.size) * 2 + self.bias_rest.size * 4
        stream = 2 * (TT * BB * 4 * Hp * 4 + TT * BB * 4 + TT * BB * Hp * 4)
        scratch = (2 * L * BB * Hp + TT * BB * Hp + TT * BB * 4 * Hp) * 4
        vmem_est = 2 * wb + stream + scratch
        vmem_limit = None
        if vmem_est > 24 * 1024 * 1024:
            vmem_limit = min(vmem_est + (8 << 20), 112 << 20)

        kernel = functools.partial(_lstm_stack_kernel, num_layers=L,
                                   time_block=TT, hidden_pad=Hp)
        y = pl.pallas_call(
            kernel,
            out_shape=jax.ShapeDtypeStruct((T_pad, B_pad, Hp), jnp.float32),
            grid_spec=pltpu.PrefetchScalarGridSpec(
                num_scalar_prefetch=0,
                grid=(nb, nt),
                in_specs=[
                    pl.BlockSpec((TT, BB, 4 * Hp), lambda b, ts: (ts, b, 0)),  # gates_x (layer 0)
                    pl.BlockSpec((TT, BB, 1), lambda b, ts: (ts, b, 0)),       # validity mask
                    pl.BlockSpec((L, Hp, 4 * Hp), lambda b, ts: (0, 0, 0)),    # W_hh stack (bf16)
                    pl.BlockSpec((L, Hp, 4 * Hp), lambda b, ts: (0, 0, 0)),    # W_ih stack, layers>=1
                    pl.BlockSpec((L, 1, 4 * Hp), lambda b, ts: (0, 0, 0)),     # bias stack, layers>=1
                ],
                out_specs=pl.BlockSpec((TT, BB, Hp), lambda b, ts: (ts, b, 0)),
                scratch_shapes=[
                    pltpu.VMEM((L, BB, Hp), jnp.float32),        # h state (all layers)
                    pltpu.VMEM((L, BB, Hp), jnp.float32),        # c state (all layers)
                    pltpu.VMEM((TT, BB, Hp), jnp.float32),       # per-step h of current layer
                    pltpu.VMEM((TT, BB, 4 * Hp), jnp.float32),   # gate buffer for layers >= 1
                ],
            ),
            compiler_params=pltpu.CompilerParams(
                dimension_semantics=("parallel", "arbitrary"),   # batch parallel, time sequential
                vmem_limit_bytes=vmem_limit,
            ),
        )(gx0, mask, self.w_hh_t, self.w_ih_rest_t, self.bias_rest)

        # back to batch-first, strip batch/hidden/time padding
        out = jnp.transpose(y, (1, 0, 2))[:B, :t_out, :H]
        return out


# ----------------------------------------------------------------------------
# Pure-JAX reference (same bf16-weight / f32-accumulate math, lax.scan over time)
# ----------------------------------------------------------------------------
def _reference_forward(model, x, lengths):
    B, T, _ = x.shape
    H, Hp, L = model.hidden_size, model.hidden_pad, model.num_layers
    t_out = max(1, int(jnp.max(lengths)))
    x_tm = jnp.transpose(x[:, :t_out, :], (1, 0, 2)).astype(jnp.float32)      # (t,B,I)
    mask = (jnp.arange(t_out)[:, None] < lengths[None, :]).astype(jnp.float32)[:, :, None]

    inp = x_tm
    y_seq = None
    for l in range(L):
        if l == 0:
            g_x = jnp.einsum("tbi,ig->tbg", inp.astype(jnp.bfloat16), model.w_ih0_t,
                             preferred_element_type=jnp.float32) + model.bias0
        else:
            g_x = jnp.einsum("tbi,ig->tbg", inp.astype(jnp.bfloat16), model.w_ih_rest_t[l],
                             preferred_element_type=jnp.float32) + model.bias_rest[l]
        whh = model.w_hh_t[l]

        def step(carry, xs):
            h, c = carry
            gx, m = xs
            gates = gx + jnp.dot(h.astype(jnp.bfloat16), whh,
                                 preferred_element_type=jnp.float32)
            i_g = jax.nn.sigmoid(gates[:, 0 * Hp:1 * Hp])
            f_g = jax.nn.sigmoid(gates[:, 1 * Hp:2 * Hp])
            g_g = jnp.tanh(gates[:, 2 * Hp:3 * Hp])
            o_g = jax.nn.sigmoid(gates[:, 3 * Hp:4 * Hp])
            c_new = f_g * c + i_g * g_g
            h_new = o_g * jnp.tanh(c_new)
            keep = m > 0.0
            h_u = jnp.where(keep, h_new, h)
            c_u = jnp.where(keep, c_new, c)
            y = jnp.where(keep, h_new, 0.0)
            return (h_u, c_u), (h_u, y)

        init = (jnp.zeros((B, Hp), jnp.float32), jnp.zeros((B, Hp), jnp.float32))
        _, (h_seq, y_seq) = jax.lax.scan(step, init, (g_x, mask))
        inp = h_seq
    return jnp.transpose(y_seq, (1, 0, 2))[:, :, :H]


# ----------------------------------------------------------------------------
# Demo
# ----------------------------------------------------------------------------
if __name__ == "__main__":
    batch, seq, input_size, hidden_size, num_layers = 2, 8, 16, 32, 2

    key = jax.random.PRNGKey(0)
    key, xk = jax.random.split(key)
    x = jax.random.normal(xk, (batch, seq, input_size), dtype=jnp.float32)
    lengths = jnp.array([8, 5], dtype=jnp.int32)

    model = LSTMModelPallas(input_size, hidden_size, num_layers, key)
    out = model(x, lengths)
    out = jax.block_until_ready(out)

    assert out.shape == (batch, 8, hidden_size)
    # padded region of the shorter sequence must be exactly zero (pad_packed_sequence)
    assert bool(jnp.all(out[1, 5:, :] == 0.0))
    assert bool(jnp.all(jnp.isfinite(out)))

    # numerical check against a pure-JAX lax.scan reference with identical math
    ref = jax.block_until_ready(_reference_forward(model, x, lengths))
    assert bool(jnp.all(jnp.abs(out - ref) < 2e-2)), float(jnp.max(jnp.abs(out - ref)))

    print("KERNEL_OK")
</pallas_src>

<mosaic_0001>
module attributes {stable_mosaic.version = 11 : i64} {
  func.func @_lstm_stack_kernel(%arg0: i32, %arg1: i32, %arg2: memref<8x8x512xf32, #tpu.memory_space<vmem>>, %arg3: memref<8x8x1xf32, #tpu.memory_space<vmem>>, %arg4: memref<2x128x512xbf16, #tpu.memory_space<vmem>>, %arg5: memref<2x128x512xbf16, #tpu.memory_space<vmem>>, %arg6: memref<2x1x512xf32, #tpu.memory_space<vmem>>, %arg7: memref<8x8x128xf32, #tpu.memory_space<vmem>>, %arg8: memref<2x8x128xf32, #tpu.memory_space<vmem>>, %arg9: memref<2x8x128xf32, #tpu.memory_space<vmem>>, %arg10: memref<8x8x128xf32, #tpu.memory_space<vmem>>, %arg11: memref<8x8x512xf32, #tpu.memory_space<vmem>>) attributes {dimension_semantics = [#tpu.dimension_semantics<parallel>, #tpu.dimension_semantics<arbitrary>], iteration_bounds = array<i64: 1, 1>, scalar_prefetch = 0 : i64, scratch_operands = 4 : i64, tpu.core_type = #tpu.core_type<tc>, window_params = [{transform_indices = @transform_0, window_bounds = array<i64: 8, 8, 512>}, {transform_indices = @transform_1, window_bounds = array<i64: 8, 8, 1>}, {pipeline_mode = #tpu.pipeline_mode<synchronous>, transform_indices = @transform_2, window_bounds = array<i64: 2, 128, 512>}, {pipeline_mode = #tpu.pipeline_mode<synchronous>, transform_indices = @transform_3, window_bounds = array<i64: 2, 128, 512>}, {pipeline_mode = #tpu.pipeline_mode<synchronous>, transform_indices = @transform_4, window_bounds = array<i64: 2, 1, 512>}, {transform_indices = @transform_5, window_bounds = array<i64: 8, 8, 128>}]} {
    %c0_i32 = arith.constant 0 : i32
    %0 = arith.cmpi eq, %arg1, %c0_i32 : i32
    %1 = arith.extui %0 : i1 to i32
    %c0_i32_0 = arith.constant 0 : i32
    %2 = arith.cmpi ne, %1, %c0_i32_0 : i32
    scf.if %2 {
      %cst_403 = arith.constant 0.000000e+00 : f32
      %947 = vector.broadcast %cst_403 : f32 to vector<2x8x128xf32>
      %c0_404 = arith.constant 0 : index
      %c0_405 = arith.constant 0 : index
      %c0_406 = arith.constant 0 : index
      %948 = vector.load %arg8[%c0_404, %c0_405, %c0_406] : memref<2x8x128xf32, #tpu.memory_space<vmem>>, vector<2x8x128xf32>
      tpu.vector_store %arg8[%c0_404, %c0_405, %c0_406], %947 {strides = array<i32>} : memref<2x8x128xf32, #tpu.memory_space<vmem>>, vector<2x8x128xf32>,
      %cst_407 = arith.constant 0.000000e+00 : f32
      %949 = vector.broadcast %cst_407 : f32 to vector<2x8x128xf32>
      %c0_408 = arith.constant 0 : index
      %c0_409 = arith.constant 0 : index
      %c0_410 = arith.constant 0 : index
      %950 = vector.load %arg9[%c0_408, %c0_409, %c0_410] : memref<2x8x128xf32, #tpu.memory_space<vmem>>, vector<2x8x128xf32>
      tpu.vector_store %arg9[%c0_408, %c0_409, %c0_410], %949 {strides = array<i32>} : memref<2x8x128xf32, #tpu.memory_space<vmem>>, vector<2x8x128xf32>,
    } else {
    }
    %c0 = arith.constant 0 : index
    %c0_1 = arith.constant 0 : index
    %c0_2 = arith.constant 0 : index
    %3 = vector.load %arg4[%c0, %c0_1, %c0_2] : memref<2x128x512xbf16, #tpu.memory_space<vmem>>, vector<1x128x512xbf16>
    %4 = vector.shape_cast %3 : vector<1x128x512xbf16> to vector<128x512xbf16>
    %c0_i32_3 = arith.constant 0 : i32
    %c0_4 = arith.constant 0 : index
    %c0_5 = arith.constant 0 : index
    %c0_6 = arith.constant 0 : index
    %5 = vector.load %arg8[%c0_4, %c0_5, %c0_6] : memref<2x8x128xf32, #tpu.memory_space<vmem>>, vector<1x8x128xf32>
    %6 = vector.shape_cast %5 : vector<1x8x128xf32> to vector<8x128xf32>
    %c0_7 = arith.constant 0 : index
    %c0_8 = arith.constant 0 : index
    %c0_9 = arith.constant 0 : index
    %7 = vector.load %arg9[%c0_7, %c0_8, %c0_9] : memref<2x8x128xf32, #tpu.memory_space<vmem>>, vector<1x8x128xf32>
    %8 = vector.shape_cast %7 : vector<1x8x128xf32> to vector<8x128xf32>
    %9 = arith.index_cast %c0_i32_3 : i32 to index
    %c0_10 = arith.constant 0 : index
    %c0_11 = arith.constant 0 : index
    %10 = vector.load %arg2[%9, %c0_10, %c0_11] : memref<8x8x512xf32, #tpu.memory_space<vmem>>, vector<1x8x512xf32>
    %11 = vector.shape_cast %10 : vector<1x8x512xf32> to vector<8x512xf32>
    %12 = arith.truncf %6 : vector<8x128xf32> to vector<8x128xbf16>
    %cst = arith.constant dense<0.000000e+00> : vector<8x512xf32>
    %13 = tpu.matmul %12, %4, %cst {dimension_numbers = #tpu.dot_dimension_numbers<[1], [0], [0], [1], [0, 0, 1, 1], [], []>} : vector<8x128xbf16>, vector<128x512xbf16>, vector<8x512xf32> -> vector<8x512xf32>
    %14 = arith.addf %11, %13 : vector<8x512xf32>
    %15 = vector.extract_strided_slice %14 {offsets = [0, 0], sizes = [8, 128], strides = [1, 1]} : vector<8x512xf32> to vector<8x128xf32>
    %16 = arith.negf %15 : vector<8x128xf32>
    %17 = math.exp %16 : vector<8x128xf32>
    %cst_12 = arith.constant 1.000000e+00 : f32
    %18 = vector.broadcast %cst_12 : f32 to vector<8x128xf32>
    %19 = arith.addf %18, %17 : vector<8x128xf32>
    %20 = arith.divf %18, %19 : vector<8x128xf32>
    %21 = vector.extract_strided_slice %14 {offsets = [0, 128], sizes = [8, 128], strides = [1, 1]} : vector<8x512xf32> to vector<8x128xf32>
    %22 = arith.negf %21 : vector<8x128xf32>
    %23 = math.exp %22 : vector<8x128xf32>
    %cst_13 = arith.constant 1.000000e+00 : f32
    %24 = vector.broadcast %cst_13 : f32 to vector<8x128xf32>
    %25 = arith.addf %24, %23 : vector<8x128xf32>
    %26 = arith.divf %24, %25 : vector<8x128xf32>
    %27 = vector.extract_strided_slice %14 {offsets = [0, 256], sizes = [8, 128], strides = [1, 1]} : vector<8x512xf32> to vector<8x128xf32>
    %28 = math.tanh %27 : vector<8x128xf32>
    %29 = vector.extract_strided_slice %14 {offsets = [0, 384], sizes = [8, 128], strides = [1, 1]} : vector<8x512xf32> to vector<8x128xf32>
    %30 = arith.negf %29 : vector<8x128xf32>
    %31 = math.exp %30 : vector<8x128xf32>
    %cst_14 = arith.constant 1.000000e+00 : f32
    %32 = vector.broadcast %cst_14 : f32 to vector<8x128xf32>
    %33 = arith.addf %32, %31 : vector<8x128xf32>
    %34 = arith.divf %32, %33 : vector<8x128xf32>
    %35 = arith.mulf %26, %8 : vector<8x128xf32>
    %36 = arith.mulf %20, %28 : vector<8x128xf32>
    %37 = arith.addf %35, %36 : vector<8x128xf32>
    %38 = math.tanh %37 : vector<8x128xf32>
    %39 = arith.mulf %34, %38 : vector<8x128xf32>
    %40 = arith.index_cast %c0_i32_3 : i32 to index
    %c0_15 = arith.constant 0 : index
    %c0_16 = arith.constant 0 : index
    %41 = vector.load %arg3[%40, %c0_15, %c0_16] : memref<8x8x1xf32, #tpu.memory_space<vmem>>, vector<1x8x1xf32>
    %42 = vector.shape_cast %41 : vector<1x8x1xf32> to vector<8x1xf32>
    %cst_17 = arith.constant 0.000000e+00 : f32
    %43 = vector.broadcast %cst_17 : f32 to vector<8x1xf32>
    %44 = arith.cmpf ogt, %42, %43 : vector<8x1xf32>
    %45 = vector.shape_cast %44 : vector<8x1xi1> to vector<8x1xi1>
    %46 = vector.broadcast %45 : vector<8x1xi1> to vector<8x128xi1>
    %47 = arith.select %46, %39, %6 : vector<8x128xi1>, vector<8x128xf32>
    %48 = vector.shape_cast %44 : vector<8x1xi1> to vector<8x1xi1>
    %49 = vector.broadcast %48 : vector<8x1xi1> to vector<8x128xi1>
    %50 = arith.select %49, %37, %8 : vector<8x128xi1>, vector<8x128xf32>
    %c0_18 = arith.constant 0 : index
    %c0_19 = arith.constant 0 : index
    %c0_20 = arith.constant 0 : index
    %51 = vector.load %arg8[%c0_18, %c0_19, %c0_20] : memref<2x8x128xf32, #tpu.memory_space<vmem>>, vector<1x8x128xf32>
    %52 = vector.shape_cast %51 : vector<1x8x128xf32> to vector<8x128xf32>
    %53 = vector.shape_cast %47 : vector<8x128xf32> to vector<1x8x128xf32>
    tpu.vector_store %arg8[%c0_18, %c0_19, %c0_20], %53 {strides = array<i32>} : memref<2x8x128xf32, #tpu.memory_space<vmem>>, vector<1x8x128xf32>,
    %c0_21 = arith.constant 0 : index
    %c0_22 = arith.constant 0 : index
    %c0_23 = arith.constant 0 : index
    %54 = vector.load %arg9[%c0_21, %c0_22, %c0_23] : memref<2x8x128xf32, #tpu.memory_space<vmem>>, vector<1x8x128xf32>
    %55 = vector.shape_cast %54 : vector<1x8x128xf32> to vector<8x128xf32>
    %56 = vector.shape_cast %50 : vector<8x128xf32> to vector<1x8x128xf32>
    tpu.vector_store %arg9[%c0_21, %c0_22, %c0_23], %56 {strides = array<i32>} : memref<2x8x128xf32, #tpu.memory_space<vmem>>, vector<1x8x128xf32>,
    %57 = arith.index_cast %c0_i32_3 : i32 to index
    %c0_24 = arith.constant 0 : index
    %c0_25 = arith.constant 0 : index
    %58 = vector.load %arg10[%57, %c0_24, %c0_25] : memref<8x8x128xf32, #tpu.memory_space<vmem>>, vector<1x8x128xf32>
    %59 = vector.shape_cast %58 : vector<1x8x128xf32> to vector<8x128xf32>
    %60 = vector.shape_cast %47 : vector<8x128xf32> to vector<1x8x128xf32>
    tpu.vector_store %arg10[%57, %c0_24, %c0_25], %60 {strides = array<i32>} : memref<8x8x128xf32, #tpu.memory_space<vmem>>, vector<1x8x128xf32>,
    %c1_i32 = arith.constant 1 : i32
    %c0_26 = arith.constant 0 : index
    %c0_27 = arith.constant 0 : index
    %c0_28 = arith.constant 0 : index
    %61 = vector.load %arg8[%c0_26, %c0_27, %c0_28] : memref<2x8x128xf32, #tpu.memory_space<vmem>>, vector<1x8x128xf32>
    %62 = vector.shape_cast %61 : vector<1x8x128xf32> to vector<8x128xf32>
    %c0_29 = arith.constant 0 : index
    %c0_30 = arith.constant 0 : index
    %c0_31 = arith.constant 0 : index
    %63 = vector.load %arg9[%c0_29, %c0_30, %c0_31] : memref<2x8x128xf32, #tpu.memory_space<vmem>>, vector<1x8x128xf32>
    %64 = vector.shape_cast %63 : vector<1x8x128xf32> to vector<8x128xf32>
    %65 = arith.index_cast %c1_i32 : i32 to index
    %c0_32 = arith.constant 0 : index
    %c0_33 = arith.constant 0 : index
    %66 = vector.load %arg2[%65, %c0_32, %c0_33] : memref<8x8x512xf32, #tpu.memory_space<vmem>>, vector<1x8x512xf32>
    %67 = vector.shape_cast %66 : vector<1x8x512xf32> to vector<8x512xf32>
    %68 = arith.truncf %62 : vector<8x128xf32> to vector<8x128xbf16>
    %cst_34 = arith.constant dense<0.000000e+00> : vector<8x512xf32>
    %69 = tpu.matmul %68, %4, %cst_34 {dimension_numbers = #tpu.dot_dimension_numbers<[1], [0], [0], [1], [0, 0, 1, 1], [], []>} : vector<8x128xbf16>, vector<128x512xbf16>, vector<8x512xf32> -> vector<8x512xf32>
    %70 = arith.addf %67, %69 : vector<8x512xf32>
    %71 = vector.extract_strided_slice %70 {offsets = [0, 0], sizes = [8, 128], strides = [1, 1]} : vector<8x512xf32> to vector<8x128xf32>
    %72 = arith.negf %71 : vector<8x128xf32>
    %73 = math.exp %72 : vector<8x128xf32>
    %cst_35 = arith.constant 1.000000e+00 : f32
    %74 = vector.broadcast %cst_35 : f32 to vector<8x128xf32>
    %75 = arith.addf %74, %73 : vector<8x128xf32>
    %76 = arith.divf %74, %75 : vector<8x128xf32>
    %77 = vector.extract_strided_slice %70 {offsets = [0, 128], sizes = [8, 128], strides = [1, 1]} : vector<8x512xf32> to vector<8x128xf32>
    %78 = arith.negf %77 : vector<8x128xf32>
    %79 = math.exp %78 : vector<8x128xf32>
    %cst_36 = arith.constant 1.000000e+00 : f32
    %80 = vector.broadcast %cst_36 : f32 to vector<8x128xf32>
    %81 = arith.addf %80, %79 : vector<8x128xf32>
    %82 = arith.divf %80, %81 : vector<8x128xf32>
    %83 = vector.extract_strided_slice %70 {offsets = [0, 256], sizes = [8, 128], strides = [1, 1]} : vector<8x512xf32> to vector<8x128xf32>
    %84 = math.tanh %83 : vector<8x128xf32>
    %85 = vector.extract_strided_slice %70 {offsets = [0, 384], sizes = [8, 128], strides = [1, 1]} : vector<8x512xf32> to vector<8x128xf32>
    %86 = arith.negf %85 : vector<8x128xf32>
    %87 = math.exp %86 : vector<8x128xf32>
    %cst_37 = arith.constant 1.000000e+00 : f32
    %88 = vector.broadcast %cst_37 : f32 to vector<8x128xf32>
    %89 = arith.addf %88, %87 : vector<8x128xf32>
    %90 = arith.divf %88, %89 : vector<8x128xf32>
    %91 = arith.mulf %82, %64 : vector<8x128xf32>
    %92 = arith.mulf %76, %84 : vector<8x128xf32>
    %93 = arith.addf %91, %92 : vector<8x128xf32>
    %94 = math.tanh %93 : vector<8x128xf32>
    %95 = arith.mulf %90, %94 : vector<8x128xf32>
    %96 = arith.index_cast %c1_i32 : i32 to index
    %c0_38 = arith.constant 0 : index
    %c0_39 = arith.constant 0 : index
    %97 = vector.load %arg3[%96, %c0_38, %c0_39] : memref<8x8x1xf32, #tpu.memory_space<vmem>>, vector<1x8x1xf32>
    %98 = vector.shape_cast %97 : vector<1x8x1xf32> to vector<8x1xf32>
    %cst_40 = arith.constant 0.000000e+00 : f32
    %99 = vector.broadcast %cst_40 : f32 to vector<8x1xf32>
    %100 = arith.cmpf ogt, %98, %99 : vector<8x1xf32>
    %101 = vector.shape_cast %100 : vector<8x1xi1> to vector<8x1xi1>
    %102 = vector.broadcast %101 : vector<8x1xi1> to vector<8x128xi1>
    %103 = arith.select %102, %95, %62 : vector<8x128xi1>, vector<8x128xf32>
    %104 = vector.shape_cast %100 : vector<8x1xi1> to vector<8x1xi1>
    %105 = vector.broadcast %104 : vector<8x1xi1> to vector<8x128xi1>
    %106 = arith.select %105, %93, %64 : vector<8x128xi1>, vector<8x128xf32>
    %c0_41 = arith.constant 0 : index
    %c0_42 = arith.constant 0 : index
    %c0_43 = arith.constant 0 : index
    %107 = vector.load %arg8[%c0_41, %c0_42, %c0_43] : memref<2x8x128xf32, #tpu.memory_space<vmem>>, vector<1x8x128xf32>
    %108 = vector.shape_cast %107 : vector<1x8x128xf32> to vector<8x128xf32>
    %109 = vector.shape_cast %103 : vector<8x128xf32> to vector<1x8x128xf32>
    tpu.vector_store %arg8[%c0_41, %c0_42, %c0_43], %109 {strides = array<i32>} : memref<2x8x128xf32, #tpu.memory_space<vmem>>, vector<1x8x128xf32>,
    %c0_44 = arith.constant 0 : index
    %c0_45 = arith.constant 0 : index
    %c0_46 = arith.constant 0 : index
    %110 = vector.load %arg9[%c0_44, %c0_45, %c0_46] : memref<2x8x128xf32, #tpu.memory_space<vmem>>, vector<1x8x128xf32>
    %111 = vector.shape_cast %110 : vector<1x8x128xf32> to vector<8x128xf32>
    %112 = vector.shape_cast %106 : vector<8x128xf32> to vector<1x8x128xf32>
    tpu.vector_store %arg9[%c0_44, %c0_45, %c0_46], %112 {strides = array<i32>} : memref<2x8x128xf32, #tpu.memory_space<vmem>>, vector<1x8x128xf32>,
    %113 = arith.index_cast %c1_i32 : i32 to index
    %c0_47 = arith.constant 0 : index
    %c0_48 = arith.constant 0 : index
    %114 = vector.load %arg10[%113, %c0_47, %c0_48] : memref<8x8x128xf32, #tpu.memory_space<vmem>>, vector<1x8x128xf32>
    %115 = vector.shape_cast %114 : vector<1x8x128xf32> to vector<8x128xf32>
    %116 = vector.shape_cast %103 : vector<8x128xf32> to vector<1x8x128xf32>
    tpu.vector_store %arg10[%113, %c0_47, %c0_48], %116 {strides = array<i32>} : memref<8x8x128xf32, #tpu.memory_space<vmem>>, vector<1x8x128xf32>,
    %c2_i32 = arith.constant 2 : i32
    %c0_49 = arith.constant 0 : index
    %c0_50 = arith.constant 0 : index
    %c0_51 = arith.constant 0 : index
    %117 = vector.load %arg8[%c0_49, %c0_50, %c0_51] : memref<2x8x128xf32, #tpu.memory_space<vmem>>, vector<1x8x128xf32>
    %118 = vector.shape_cast %117 : vector<1x8x128xf32> to vector<8x128xf32>
    %c0_52 = arith.constant 0 : index
    %c0_53 = arith.constant 0 : index
    %c0_54 = arith.constant 0 : index
    %119 = vector.load %arg9[%c0_52, %c0_53, %c0_54] : memref<2x8x128xf32, #tpu.memory_space<vmem>>, vector<1x8x128xf32>
    %120 = vector.shape_cast %119 : vector<1x8x128xf32> to vector<8x128xf32>
    %121 = arith.index_cast %c2_i32 : i32 to index
    %c0_55 = arith.constant 0 : index
    %c0_56 = arith.constant 0 : index
    %122 = vector.load %arg2[%121, %c0_55, %c0_56] : memref<8x8x512xf32, #tpu.memory_space<vmem>>, vector<1x8x512xf32>
    %123 = vector.shape_cast %122 : vector<1x8x512xf32> to vector<8x512xf32>
    %124 = arith.truncf %118 : vector<8x128xf32> to vector<8x128xbf16>
    %cst_57 = arith.constant dense<0.000000e+00> : vector<8x512xf32>
    %125 = tpu.matmul %124, %4, %cst_57 {dimension_numbers = #tpu.dot_dimension_numbers<[1], [0], [0], [1], [0, 0, 1, 1], [], []>} : vector<8x128xbf16>, vector<128x512xbf16>, vector<8x512xf32> -> vector<8x512xf32>
    %126 = arith.addf %123, %125 : vector<8x512xf32>
    %127 = vector.extract_strided_slice %126 {offsets = [0, 0], sizes = [8, 128], strides = [1, 1]} : vector<8x512xf32> to vector<8x128xf32>
    %128 = arith.negf %127 : vector<8x128xf32>
    %129 = math.exp %128 : vector<8x128xf32>
    %cst_58 = arith.constant 1.000000e+00 : f32
    %130 = vector.broadcast %cst_58 : f32 to vector<8x128xf32>
    %131 = arith.addf %130, %129 : vector<8x128xf32>
    %132 = arith.divf %130, %131 : vector<8x128xf32>
    %133 = vector.extract_strided_slice %126 {offsets = [0, 128], sizes = [8, 128], strides = [1, 1]} : vector<8x512xf32> to vector<8x128xf32>
    %134 = arith.negf %133 : vector<8x128xf32>
    %135 = math.exp %134 : vector<8x128xf32>
    %cst_59 = arith.constant 1.000000e+00 : f32
    %136 = vector.broadcast %cst_59 : f32 to vector<8x128xf32>
    %137 = arith.addf %136, %135 : vector<8x128xf32>
    %138 = arith.divf %136, %137 : vector<8x128xf32>
    %139 = vector.extract_strided_slice %126 {offsets = [0, 256], sizes = [8, 128], strides = [1, 1]} : vector<8x512xf32> to vector<8x128xf32>
    %140 = math.tanh %139 : vector<8x128xf32>
    %141 = vector.extract_strided_slice %126 {offsets = [0, 384], sizes = [8, 128], strides = [1, 1]} : vector<8x512xf32> to vector<8x128xf32>
    %142 = arith.negf %141 : vector<8x128xf32>
    %143 = math.exp %142 : vector<8x128xf32>
    %cst_60 = arith.constant 1.000000e+00 : f32
    %144 = vector.broadcast %cst_60 : f32 to vector<8x128xf32>
    %145 = arith.addf %144, %143 : vector<8x128xf32>
    %146 = arith.divf %144, %145 : vector<8x128xf32>
    %147 = arith.mulf %138, %120 : vector<8x128xf32>
    %148 = arith.mulf %132, %140 : vector<8x128xf32>
    %149 = arith.addf %147, %148 : vector<8x128xf32>
    %150 = math.tanh %149 : vector<8x128xf32>
    %151 = arith.mulf %146, %150 : vector<8x128xf32>
    %152 = arith.index_cast %c2_i32 : i32 to index
    %c0_61 = arith.constant 0 : index
    %c0_62 = arith.constant 0 : index
    %153 = vector.load %arg3[%152, %c0_61, %c0_62] : memref<8x8x1xf32, #tpu.memory_space<vmem>>, vector<1x8x1xf32>
    %154 = vector.shape_cast %153 : vector<1x8x1xf32> to vector<8x1xf32>
    %cst_63 = arith.constant 0.000000e+00 : f32
    %155 = vector.broadcast %cst_63 : f32 to vector<8x1xf32>
    %156 = arith.cmpf ogt, %154, %155 : vector<8x1xf32>
    %157 = vector.shape_cast %156 : vector<8x1xi1> to vector<8x1xi1>
    %158 = vector.broadcast %157 : vector<8x1xi1> to vector<8x128xi1>
    %159 = arith.select %158, %151, %118 : vector<8x128xi1>, vector<8x128xf32>
    %160 = vector.shape_cast %156 : vector<8x1xi1> to vector<8x1xi1>
    %161 = vector.broadcast %160 : vector<8x1xi1> to vector<8x128xi1>
    %162 = arith.select %161, %149, %120 : vector<8x128xi1>, vector<8x128xf32>
    %c0_64 = arith.constant 0 : index
    %c0_65 = arith.constant 0 : index
    %c0_66 = arith.constant 0 : index
    %163 = vector.load %arg8[%c0_64, %c0_65, %c0_66] : memref<2x8x128xf32, #tpu.memory_space<vmem>>, vector<1x8x128xf32>
    %164 = vector.shape_cast %163 : vector<1x8x128xf32> to vector<8x128xf32>
    %165 = vector.shape_cast %159 : vector<8x128xf32> to vector<1x8x128xf32>
    tpu.vector_store %arg8[%c0_64, %c0_65, %c0_66], %165 {strides = array<i32>} : memref<2x8x128xf32, #tpu.memory_space<vmem>>, vector<1x8x128xf32>,
    %c0_67 = arith.constant 0 : index
    %c0_68 = arith.constant 0 : index
    %c0_69 = arith.constant 0 : index
    %166 = vector.load %arg9[%c0_67, %c0_68, %c0_69] : memref<2x8x128xf32, #tpu.memory_space<vmem>>, vector<1x8x128xf32>
    %167 = vector.shape_cast %166 : vector<1x8x128xf32> to vector<8x128xf32>
    %168 = vector.shape_cast %162 : vector<8x128xf32> to vector<1x8x128xf32>
    tpu.vector_store %arg9[%c0_67, %c0_68, %c0_69], %168 {strides = array<i32>} : memref<2x8x128xf32, #tpu.memory_space<vmem>>, vector<1x8x128xf32>,
    %169 = arith.index_cast %c2_i32 : i32 to index
    %c0_70 = arith.constant 0 : index
    %c0_71 = arith.constant 0 : index
    %170 = vector.load %arg10[%169, %c0_70, %c0_71] : memref<8x8x128xf32, #tpu.memory_space<vmem>>, vector<1x8x128xf32>
    %171 = vector.shape_cast %170 : vector<1x8x128xf32> to vector<8x128xf32>
    %172 = vector.shape_cast %159 : vector<8x128xf32> to vector<1x8x128xf32>
    tpu.vector_store %arg10[%169, %c0_70, %c0_71], %172 {strides = array<i32>} : memref<8x8x128xf32, #tpu.memory_space<vmem>>, vector<1x8x128xf32>,
    %c3_i32 = arith.constant 3 : i32
    %c0_72 = arith.constant 0 : index
    %c0_73 = arith.constant 0 : index
    %c0_74 = arith.constant 0 : index
    %173 = vector.load %arg8[%c0_72, %c0_73, %c0_74] : memref<2x8x128xf32, #tpu.memory_space<vmem>>, vector<1x8x128xf32>
    %174 = vector.shape_cast %173 : vector<1x8x128xf32> to vector<8x128xf32>
    %c0_75 = arith.constant 0 : index
    %c0_76 = arith.constant 0 : index
    %c0_77 = arith.constant 0 : index
    %175 = vector.load %arg9[%c0_75, %c0_76, %c0_77] : memref<2x8x128xf32, #tpu.memory_space<vmem>>, vector<1x8x128xf32>
    %176 = vector.shape_cast %175 : vector<1x8x128xf32> to vector<8x128xf32>
    %177 = arith.index_cast %c3_i32 : i32 to index
    %c0_78 = arith.constant 0 : index
    %c0_79 = arith.constant 0 : index
    %178 = vector.load %arg2[%177, %c0_78, %c0_79] : memref<8x8x512xf32, #tpu.memory_space<vmem>>, vector<1x8x512xf32>
    %179 = vector.shape_cast %178 : vector<1x8x512xf32> to vector<8x512xf32>
    %180 = arith.truncf %174 : vector<8x128xf32> to vector<8x128xbf16>
    %cst_80 = arith.constant dense<0.000000e+00> : vector<8x512xf32>
    %181 = tpu.matmul %180, %4, %cst_80 {dimension_numbers = #tpu.dot_dimension_numbers<[1], [0], [0], [1], [0, 0, 1, 1], [], []>} : vector<8x128xbf16>, vector<128x512xbf16>, vector<8x512xf32> -> vector<8x512xf32>
    %182 = arith.addf %179, %181 : vector<8x512xf32>
    %183 = vector.extract_strided_slice %182 {offsets = [0, 0], sizes = [8, 128], strides = [1, 1]} : vector<8x512xf32> to vector<8x128xf32>
    %184 = arith.negf %183 : vector<8x128xf32>
    %185 = math.exp %184 : vector<8x128xf32>
    %cst_81 = arith.constant 1.000000e+00 : f32
    %186 = vector.broadcast %cst_81 : f32 to vector<8x128xf32>
    %187 = arith.addf %186, %185 : vector<8x128xf32>
    %188 = arith.divf %186, %187 : vector<8x128xf32>
    %189 = vector.extract_strided_slice %182 {offsets = [0, 128], sizes = [8, 128], strides = [1, 1]} : vector<8x512xf32> to vector<8x128xf32>
    %190 = arith.negf %189 : vector<8x128xf32>
    %191 = math.exp %190 : vector<8x128xf32>
    %cst_82 = arith.constant 1.000000e+00 : f32
    %192 = vector.broadcast %cst_82 : f32 to vector<8x128xf32>
    %193 = arith.addf %192, %191 : vector<8x128xf32>
    %194 = arith.divf %192, %193 : vector<8x128xf32>
    %195 = vector.extract_strided_slice %182 {offsets = [0, 256], sizes = [8, 128], strides = [1, 1]} : vector<8x512xf32> to vector<8x128xf32>
    %196 = math.tanh %195 : vector<8x128xf32>
    %197 = vector.extract_strided_slice %182 {offsets = [0, 384], sizes = [8, 128], strides = [1, 1]} : vector<8x512xf32> to vector<8x128xf32>
    %198 = arith.negf %197 : vector<8x128xf32>
    %199 = math.exp %198 : vector<8x128xf32>
    %cst_83 = arith.constant 1.000000e+00 : f32
    %200 = vector.broadcast %cst_83 : f32 to vector<8x128xf32>
    %201 = arith.addf %200, %199 : vector<8x128xf32>
    %202 = arith.divf %200, %201 : vector<8x128xf32>
    %203 = arith.mulf %194, %176 : vector<8x128xf32>
    %204 = arith.mulf %188, %196 : vector<8x128xf32>
    %205 = arith.addf %203, %204 : vector<8x128xf32>
    %206 = math.tanh %205 : vector<8x128xf32>
    %207 = arith.mulf %202, %206 : vector<8x128xf32>
    %208 = arith.index_cast %c3_i32 : i32 to index
    %c0_84 = arith.constant 0 : index
    %c0_85 = arith.constant 0 : index
    %209 = vector.load %arg3[%208, %c0_84, %c0_85] : memref<8x8x1xf32, #tpu.memory_space<vmem>>, vector<1x8x1xf32>
    %210 = vector.shape_cast %209 : vector<1x8x1xf32> to vector<8x1xf32>
    %cst_86 = arith.constant 0.000000e+00 : f32
    %211 = vector.broadcast %cst_86 : f32 to vector<8x1xf32>
    %212 = arith.cmpf ogt, %210, %211 : vector<8x1xf32>
    %213 = vector.shape_cast %212 : vector<8x1xi1> to vector<8x1xi1>
    %214 = vector.broadcast %213 : vector<8x1xi1> to vector<8x128xi1>
    %215 = arith.select %214, %207, %174 : vector<8x128xi1>, vector<8x128xf32>
    %216 = vector.shape_cast %212 : vector<8x1xi1> to vector<8x1xi1>
    %217 = vector.broadcast %216 : vector<8x1xi1> to vector<8x128xi1>
    %218 = arith.select %217, %205, %176 : vector<8x128xi1>, vector<8x128xf32>
    %c0_87 = arith.constant 0 : index
    %c0_88 = arith.constant 0 : index
    %c0_89 = arith.constant 0 : index
    %219 = vector.load %arg8[%c0_87, %c0_88, %c0_89] : memref<2x8x128xf32, #tpu.memory_space<vmem>>, vector<1x8x128xf32>
    %220 = vector.shape_cast %219 : vector<1x8x128xf32> to vector<8x128xf32>
    %221 = vector.shape_cast %215 : vector<8x128xf32> to vector<1x8x128xf32>
    tpu.vector_store %arg8[%c0_87, %c0_88, %c0_89], %221 {strides = array<i32>} : memref<2x8x128xf32, #tpu.memory_space<vmem>>, vector<1x8x128xf32>,
    %c0_90 = arith.constant 0 : index
    %c0_91 = arith.constant 0 : index
    %c0_92 = arith.constant 0 : index
    %222 = vector.load %arg9[%c0_90, %c0_91, %c0_92] : memref<2x8x128xf32, #tpu.memory_space<vmem>>, vector<1x8x128xf32>
    %223 = vector.shape_cast %222 : vector<1x8x128xf32> to vector<8x128xf32>
    %224 = vector.shape_cast %218 : vector<8x128xf32> to vector<1x8x128xf32>
    tpu.vector_store %arg9[%c0_90, %c0_91, %c0_92], %224 {strides = array<i32>} : memref<2x8x128xf32, #tpu.memory_space<vmem>>, vector<1x8x128xf32>,
    %225 = arith.index_cast %c3_i32 : i32 to index
    %c0_93 = arith.constant 0 : index
    %c0_94 = arith.constant 0 : index
    %226 = vector.load %arg10[%225, %c0_93, %c0_94] : memref<8x8x128xf32, #tpu.memory_space<vmem>>, vector<1x8x128xf32>
    %227 = vector.shape_cast %226 : vector<1x8x128xf32> to vector<8x128xf32>
    %228 = vector.shape_cast %215 : vector<8x128xf32> to vector<1x8x128xf32>
    tpu.vector_store %arg10[%225, %c0_93, %c0_94], %228 {strides = array<i32>} : memref<8x8x128xf32, #tpu.memory_space<vmem>>, vector<1x8x128xf32>,
    %c4_i32 = arith.constant 4 : i32
    %c0_95 = arith.constant 0 : index
    %c0_96 = arith.constant 0 : index
    %c0_97 = arith.constant 0 : index
    %229 = vector.load %arg8[%c0_95, %c0_96, %c0_97] : memref<2x8x128xf32, #tpu.memory_space<vmem>>, vector<1x8x128xf32>
    %230 = vector.shape_cast %229 : vector<1x8x128xf32> to vector<8x128xf32>
    %c0_98 = arith.constant 0 : index
    %c0_99 = arith.constant 0 : index
    %c0_100 = arith.constant 0 : index
    %231 = vector.load %arg9[%c0_98, %c0_99, %c0_100] : memref<2x8x128xf32, #tpu.memory_space<vmem>>, vector<1x8x128xf32>
    %232 = vector.shape_cast %231 : vector<1x8x128xf32> to vector<8x128xf32>
    %233 = arith.index_cast %c4_i32 : i32 to index
    %c0_101 = arith.constant 0 : index
    %c0_102 = arith.constant 0 : index
    %234 = vector.load %arg2[%233, %c0_101, %c0_102] : memref<8x8x512xf32, #tpu.memory_space<vmem>>, vector<1x8x512xf32>
    %235 = vector.shape_cast %234 : vector<1x8x512xf32> to vector<8x512xf32>
    %236 = arith.truncf %230 : vector<8x128xf32> to vector<8x128xbf16>
    %cst_103 = arith.constant dense<0.000000e+00> : vector<8x512xf32>
    %237 = tpu.matmul %236, %4, %cst_103 {dimension_numbers = #tpu.dot_dimension_numbers<[1], [0], [0], [1], [0, 0, 1, 1], [], []>} : vector<8x128xbf16>, vector<128x512xbf16>, vector<8x512xf32> -> vector<8x512xf32>
    %238 = arith.addf %235, %237 : vector<8x512xf32>
    %239 = vector.extract_strided_slice %238 {offsets = [0, 0], sizes = [8, 128], strides = [1, 1]} : vector<8x512xf32> to vector<8x128xf32>
    %240 = arith.negf %239 : vector<8x128xf32>
    %241 = math.exp %240 : vector<8x128xf32>
    %cst_104 = arith.constant 1.000000e+00 : f32
    %242 = vector.broadcast %cst_104 : f32 to vector<8x128xf32>
    %243 = arith.addf %242, %241 : vector<8x128xf32>
    %244 = arith.divf %242, %243 : vector<8x128xf32>
    %245 = vector.extract_strided_slice %238 {offsets = [0, 128], sizes = [8, 128], strides = [1, 1]} : vector<8x512xf32> to vector<8x128xf32>
    %246 = arith.negf %245 : vector<8x128xf32>
    %247 = math.exp %246 : vector<8x128xf32>
    %cst_105 = arith.constant 1.000000e+00 : f32
    %248 = vector.broadcast %cst_105 : f32 to vector<8x128xf32>
    %249 = arith.addf %248, %247 : vector<8x128xf32>
    %250 = arith.divf %248, %249 : vector<8x128xf32>
    %251 = vector.extract_strided_slice %238 {offsets = [0, 256], sizes = [8, 128], strides = [1, 1]} : vector<8x512xf32> to vector<8x128xf32>
    %252 = math.tanh %251 : vector<8x128xf32>
    %253 = vector.extract_strided_slice %238 {offsets = [0, 384], sizes = [8, 128], strides = [1, 1]} : vector<8x512xf32> to vector<8x128xf32>
    %254 = arith.negf %253 : vector<8x128xf32>
    %255 = math.exp %254 : vector<8x128xf32>
    %cst_106 = arith.constant 1.000000e+00 : f32
    %256 = vector.broadcast %cst_106 : f32 to vector<8x128xf32>
    %257 = arith.addf %256, %255 : vector<8x128xf32>
    %258 = arith.divf %256, %257 : vector<8x128xf32>
    %259 = arith.mulf %250, %232 : vector<8x128xf32>
    %260 = arith.mulf %244, %252 : vector<8x128xf32>
    %261 = arith.addf %259, %260 : vector<8x128xf32>
    %262 = math.tanh %261 : vector<8x128xf32>
    %263 = arith.mulf %258, %262 : vector<8x128xf32>
    %264 = arith.index_cast %c4_i32 : i32 to index
    %c0_107 = arith.constant 0 : index
    %c0_108 = arith.constant 0 : index
    %265 = vector.load %arg3[%264, %c0_107, %c0_108] : memref<8x8x1xf32, #tpu.memory_space<vmem>>, vector<1x8x1xf32>
    %266 = vector.shape_cast %265 : vector<1x8x1xf32> to vector<8x1xf32>
    %cst_109 = arith.constant 0.000000e+00 : f32
    %267 = vector.broadcast %cst_109 : f32 to vector<8x1xf32>
    %268 = arith.cmpf ogt, %266, %267 : vector<8x1xf32>
    %269 = vector.shape_cast %268 : vector<8x1xi1> to vector<8x1xi1>
    %270 = vector.broadcast %269 : vector<8x1xi1> to vector<8x128xi1>
    %271 = arith.select %270, %263, %230 : vector<8x128xi1>, vector<8x128xf32>
    %272 = vector.shape_cast %268 : vector<8x1xi1> to vector<8x1xi1>
    %273 = vector.broadcast %272 : vector<8x1xi1> to vector<8x128xi1>
    %274 = arith.select %273, %261, %232 : vector<8x128xi1>, vector<8x128xf32>
    %c0_110 = arith.constant 0 : index
    %c0_111 = arith.constant 0 : index
    %c0_112 = arith.constant 0 : index
    %275 = vector.load %arg8[%c0_110, %c0_111, %c0_112] : memref<2x8x128xf32, #tpu.memory_space<vmem>>, vector<1x8x128xf32>
    %276 = vector.shape_cast %275 : vector<1x8x128xf32> to vector<8x128xf32>
    %277 = vector.shape_cast %271 : vector<8x128xf32> to vector<1x8x128xf32>
    tpu.vector_store %arg8[%c0_110, %c0_111, %c0_112], %277 {strides = array<i32>} : memref<2x8x128xf32, #tpu.memory_space<vmem>>, vector<1x8x128xf32>,
    %c0_113 = arith.constant 0 : index
    %c0_114 = arith.constant 0 : index
    %c0_115 = arith.constant 0 : index
    %278 = vector.load %arg9[%c0_113, %c0_114, %c0_115] : memref<2x8x128xf32, #tpu.memory_space<vmem>>, vector<1x8x128xf32>
    %279 = vector.shape_cast %278 : vector<1x8x128xf32> to vector<8x128xf32>
    %280 = vector.shape_cast %274 : vector<8x128xf32> to vector<1x8x128xf32>
    tpu.vector_store %arg9[%c0_113, %c0_114, %c0_115], %280 {strides = array<i32>} : memref<2x8x128xf32, #tpu.memory_space<vmem>>, vector<1x8x128xf32>,
    %281 = arith.index_cast %c4_i32 : i32 to index
    %c0_116 = arith.constant 0 : index
    %c0_117 = arith.constant 0 : index
    %282 = vector.load %arg10[%281, %c0_116, %c0_117] : memref<8x8x128xf32, #tpu.memory_space<vmem>>, vector<1x8x128xf32>
    %283 = vector.shape_cast %282 : vector<1x8x128xf32> to vector<8x128xf32>
    %284 = vector.shape_cast %271 : vector<8x128xf32> to vector<1x8x128xf32>
    tpu.vector_store %arg10[%281, %c0_116, %c0_117], %284 {strides = array<i32>} : memref<8x8x128xf32, #tpu.memory_space<vmem>>, vector<1x8x128xf32>,
    %c5_i32 = arith.constant 5 : i32
    %c0_118 = arith.constant 0 : index
    %c0_119 = arith.constant 0 : index
    %c0_120 = arith.constant 0 : index
    %285 = vector.load %arg8[%c0_118, %c0_119, %c0_120] : memref<2x8x128xf32, #tpu.memory_space<vmem>>, vector<1x8x128xf32>
    %286 = vector.shape_cast %285 : vector<1x8x128xf32> to vector<8x128xf32>
    %c0_121 = arith.constant 0 : index
    %c0_122 = arith.constant 0 : index
    %c0_123 = arith.constant 0 : index
    %287 = vector.load %arg9[%c0_121, %c0_122, %c0_123] : memref<2x8x128xf32, #tpu.memory_space<vmem>>, vector<1x8x128xf32>
    %288 = vector.shape_cast %287 : vector<1x8x128xf32> to vector<8x128xf32>
    %289 = arith.index_cast %c5_i32 : i32 to index
    %c0_124 = arith.constant 0 : index
    %c0_125 = arith.constant 0 : index
    %290 = vector.load %arg2[%289, %c0_124, %c0_125] : memref<8x8x512xf32, #tpu.memory_space<vmem>>, vector<1x8x512xf32>
    %291 = vector.shape_cast %290 : vector<1x8x512xf32> to vector<8x512xf32>
    %292 = arith.truncf %286 : vector<8x128xf32> to vector<8x128xbf16>
    %cst_126 = arith.constant dense<0.000000e+00> : vector<8x512xf32>
    %293 = tpu.matmul %292, %4, %cst_126 {dimension_numbers = #tpu.dot_dimension_numbers<[1], [0], [0], [1], [0, 0, 1, 1], [], []>} : vector<8x128xbf16>, vector<128x512xbf16>, vector<8x512xf32> -> vector<8x512xf32>
    %294 = arith.addf %291, %293 : vector<8x512xf32>
    %295 = vector.extract_strided_slice %294 {offsets = [0, 0], sizes = [8, 128], strides = [1, 1]} : vector<8x512xf32> to vector<8x128xf32>
    %296 = arith.negf %295 : vector<8x128xf32>
    %297 = math.exp %296 : vector<8x128xf32>
    %cst_127 = arith.constant 1.000000e+00 : f32
    %298 = vector.broadcast %cst_127 : f32 to vector<8x128xf32>
    %299 = arith.addf %298, %297 : vector<8x128xf32>
    %300 = arith.divf %298, %299 : vector<8x128xf32>
    %301 = vector.extract_strided_slice %294 {offsets = [0, 128], sizes = [8, 128], strides = [1, 1]} : vector<8x512xf32> to vector<8x128xf32>
    %302 = arith.negf %301 : vector<8x128xf32>
    %303 = math.exp %302 : vector<8x128xf32>
    %cst_128 = arith.constant 1.000000e+00 : f32
    %304 = vector.broadcast %cst_128 : f32 to vector<8x128xf32>
    %305 = arith.addf %304, %303 : vector<8x128xf32>
    %306 = arith.divf %304, %305 : vector<8x128xf32>
    %307 = vector.extract_strided_slice %294 {offsets = [0, 256], sizes = [8, 128], strides = [1, 1]} : vector<8x512xf32> to vector<8x128xf32>
    %308 = math.tanh %307 : vector<8x128xf32>
    %309 = vector.extract_strided_slice %294 {offsets = [0, 384], sizes = [8, 128], strides = [1, 1]} : vector<8x512xf32> to vector<8x128xf32>
    %310 = arith.negf %309 : vector<8x128xf32>
    %311 = math.exp %310 : vector<8x128xf32>
    %cst_129 = arith.constant 1.000000e+00 : f32
    %312 = vector.broadcast %cst_129 : f32 to vector<8x128xf32>
    %313 = arith.addf %312, %311 : vector<8x128xf32>
    %314 = arith.divf %312, %313 : vector<8x128xf32>
    %315 = arith.mulf %306, %288 : vector<8x128xf32>
    %316 = arith.mulf %300, %308 : vector<8x128xf32>
    %317 = arith.addf %315, %316 : vector<8x128xf32>
    %318 = math.tanh %317 : vector<8x128xf32>
    %319 = arith.mulf %314, %318 : vector<8x128xf32>
    %320 = arith.index_cast %c5_i32 : i32 to index
    %c0_130 = arith.constant 0 : index
    %c0_131 = arith.constant 0 : index
    %321 = vector.load %arg3[%320, %c0_130, %c0_131] : memref<8x8x1xf32, #tpu.memory_space<vmem>>, vector<1x8x1xf32>
    %322 = vector.shape_cast %321 : vector<1x8x1xf32> to vector<8x1xf32>
    %cst_132 = arith.constant 0.000000e+00 : f32
    %323 = vector.broadcast %cst_132 : f32 to vector<8x1xf32>
    %324 = arith.cmpf ogt, %322, %323 : vector<8x1xf32>
    %325 = vector.shape_cast %324 : vector<8x1xi1> to vector<8x1xi1>
    %326 = vector.broadcast %325 : vector<8x1xi1> to vector<8x128xi1>
    %327 = arith.select %326, %319, %286 : vector<8x128xi1>, vector<8x128xf32>
    %328 = vector.shape_cast %324 : vector<8x1xi1> to vector<8x1xi1>
    %329 = vector.broadcast %328 : vector<8x1xi1> to vector<8x128xi1>
    %330 = arith.select %329, %317, %288 : vector<8x128xi1>, vector<8x128xf32>
    %c0_133 = arith.constant 0 : index
    %c0_134 = arith.constant 0 : index
    %c0_135 = arith.constant 0 : index
    %331 = vector.load %arg8[%c0_133, %c0_134, %c0_135] : memref<2x8x128xf32, #tpu.memory_space<vmem>>, vector<1x8x128xf32>
    %332 = vector.shape_cast %331 : vector<1x8x128xf32> to vector<8x128xf32>
    %333 = vector.shape_cast %327 : vector<8x128xf32> to vector<1x8x128xf32>
    tpu.vector_store %arg8[%c0_133, %c0_134, %c0_135], %333 {strides = array<i32>} : memref<2x8x128xf32, #tpu.memory_space<vmem>>, vector<1x8x128xf32>,
    %c0_136 = arith.constant 0 : index
    %c0_137 = arith.constant 0 : index
    %c0_138 = arith.constant 0 : index
    %334 = vector.load %arg9[%c0_136, %c0_137, %c0_138] : memref<2x8x128xf32, #tpu.memory_space<vmem>>, vector<1x8x128xf32>
    %335 = vector.shape_cast %334 : vector<1x8x128xf32> to vector<8x128xf32>
    %336 = vector.shape_cast %330 : vector<8x128xf32> to vector<1x8x128xf32>
    tpu.vector_store %arg9[%c0_136, %c0_137, %c0_138], %336 {strides = array<i32>} : memref<2x8x128xf32, #tpu.memory_space<vmem>>, vector<1x8x128xf32>,
    %337 = arith.index_cast %c5_i32 : i32 to index
    %c0_139 = arith.constant 0 : index
    %c0_140 = arith.constant 0 : index
    %338 = vector.load %arg10[%337, %c0_139, %c0_140] : memref<8x8x128xf32, #tpu.memory_space<vmem>>, vector<1x8x128xf32>
    %339 = vector.shape_cast %338 : vector<1x8x128xf32> to vector<8x128xf32>
    %340 = vector.shape_cast %327 : vector<8x128xf32> to vector<1x8x128xf32>
    tpu.vector_store %arg10[%337, %c0_139, %c0_140], %340 {strides = array<i32>} : memref<8x8x128xf32, #tpu.memory_space<vmem>>, vector<1x8x128xf32>,
    %c6_i32 = arith.constant 6 : i32
    %c0_141 = arith.constant 0 : index
    %c0_142 = arith.constant 0 : index
    %c0_143 = arith.constant 0 : index
    %341 = vector.load %arg8[%c0_141, %c0_142, %c0_143] : memref<2x8x128xf32, #tpu.memory_space<vmem>>, vector<1x8x128xf32>
    %342 = vector.shape_cast %341 : vector<1x8x128xf32> to vector<8x128xf32>
    %c0_144 = arith.constant 0 : index
    %c0_145 = arith.constant 0 : index
    %c0_146 = arith.constant 0 : index
    %343 = vector.load %arg9[%c0_144, %c0_145, %c0_146] : memref<2x8x128xf32, #tpu.memory_space<vmem>>, vector<1x8x128xf32>
    %344 = vector.shape_cast %343 : vector<1x8x128xf32> to vector<8x128xf32>
    %345 = arith.index_cast %c6_i32 : i32 to index
    %c0_147 = arith.constant 0 : index
    %c0_148 = arith.constant 0 : index
    %346 = vector.load %arg2[%345, %c0_147, %c0_148] : memref<8x8x512xf32, #tpu.memory_space<vmem>>, vector<1x8x512xf32>
    %347 = vector.shape_cast %346 : vector<1x8x512xf32> to vector<8x512xf32>
    %348 = arith.truncf %342 : vector<8x128xf32> to vector<8x128xbf16>
    %cst_149 = arith.constant dense<0.000000e+00> : vector<8x512xf32>
    %349 = tpu.matmul %348, %4, %cst_149 {dimension_numbers = #tpu.dot_dimension_numbers<[1], [0], [0], [1], [0, 0, 1, 1], [], []>} : vector<8x128xbf16>, vector<128x512xbf16>, vector<8x512xf32> -> vector<8x512xf32>
    %350 = arith.addf %347, %349 : vector<8x512xf32>
    %351 = vector.extract_strided_slice %350 {offsets = [0, 0], sizes = [8, 128], strides = [1, 1]} : vector<8x512xf32> to vector<8x128xf32>
    %352 = arith.negf %351 : vector<8x128xf32>
    %353 = math.exp %352 : vector<8x128xf32>
    %cst_150 = arith.constant 1.000000e+00 : f32
    %354 = vector.broadcast %cst_150 : f32 to vector<8x128xf32>
    %355 = arith.addf %354, %353 : vector<8x128xf32>
    %356 = arith.divf %354, %355 : vector<8x128xf32>
    %357 = vector.extract_strided_slice %350 {offsets = [0, 128], sizes = [8, 128], strides = [1, 1]} : vector<8x512xf32> to vector<8x128xf32>
    %358 = arith.negf %357 : vector<8x128xf32>
    %359 = math.exp %358 : vector<8x128xf32>
    %cst_151 = arith.constant 1.000000e+00 : f32
    %360 = vector.broadcast %cst_151 : f32 to vector<8x128xf32>
    %361 = arith.addf %360, %359 : vector<8x128xf32>
    %362 = arith.divf %360, %361 : vector<8x128xf32>
    %363 = vector.extract_strided_slice %350 {offsets = [0, 256], sizes = [8, 128], strides = [1, 1]} : vector<8x512xf32> to vector<8x128xf32>
    %364 = math.tanh %363 : vector<8x128xf32>
    %365 = vector.extract_strided_slice %350 {offsets = [0, 384], sizes = [8, 128], strides = [1, 1]} : vector<8x512xf32> to vector<8x128xf32>
    %366 = arith.negf %365 : vector<8x128xf32>
    %367 = math.exp %366 : vector<8x128xf32>
    %cst_152 = arith.constant 1.000000e+00 : f32
    %368 = vector.broadcast %cst_152 : f32 to vector<8x128xf32>
    %369 = arith.addf %368, %367 : vector<8x128xf32>
    %370 = arith.divf %368, %369 : vector<8x128xf32>
    %371 = arith.mulf %362, %344 : vector<8x128xf32>
    %372 = arith.mulf %356, %364 : vector<8x128xf32>
    %373 = arith.addf %371, %372 : vector<8x128xf32>
    %374 = math.tanh %373 : vector<8x128xf32>
    %375 = arith.mulf %370, %374 : vector<8x128xf32>
    %376 = arith.index_cast %c6_i32 : i32 to index
    %c0_153 = arith.constant 0 : index
    %c0_154 = arith.constant 0 : index
    %377 = vector.load %arg3[%376, %c0_153, %c0_154] : memref<8x8x1xf32, #tpu.memory_space<vmem>>, vector<1x8x1xf32>
    %378 = vector.shape_cast %377 : vector<1x8x1xf32> to vector<8x1xf32>
    %cst_155 = arith.constant 0.000000e+00 : f32
    %379 = vector.broadcast %cst_155 : f32 to vector<8x1xf32>
    %380 = arith.cmpf ogt, %378, %379 : vector<8x1xf32>
    %381 = vector.shape_cast %380 : vector<8x1xi1> to vector<8x1xi1>
    %382 = vector.broadcast %381 : vector<8x1xi1> to vector<8x128xi1>
    %383 = arith.select %382, %375, %342 : vector<8x128xi1>, vector<8x128xf32>
    %384 = vector.shape_cast %380 : vector<8x1xi1> to vector<8x1xi1>
    %385 = vector.broadcast %384 : vector<8x1xi1> to vector<8x128xi1>
    %386 = arith.select %385, %373, %344 : vector<8x128xi1>, vector<8x128xf32>
    %c0_156 = arith.constant 0 : index
    %c0_157 = arith.constant 0 : index
    %c0_158 = arith.constant 0 : index
    %387 = vector.load %arg8[%c0_156, %c0_157, %c0_158] : memref<2x8x128xf32, #tpu.memory_space<vmem>>, vector<1x8x128xf32>
    %388 = vector.shape_cast %387 : vector<1x8x128xf32> to vector<8x128xf32>
    %389 = vector.shape_cast %383 : vector<8x128xf32> to vector<1x8x128xf32>
    tpu.vector_store %arg8[%c0_156, %c0_157, %c0_158], %389 {strides = array<i32>} : memref<2x8x128xf32, #tpu.memory_space<vmem>>, vector<1x8x128xf32>,
    %c0_159 = arith.constant 0 : index
    %c0_160 = arith.constant 0 : index
    %c0_161 = arith.constant 0 : index
    %390 = vector.load %arg9[%c0_159, %c0_160, %c0_161] : memref<2x8x128xf32, #tpu.memory_space<vmem>>, vector<1x8x128xf32>
    %391 = vector.shape_cast %390 : vector<1x8x128xf32> to vector<8x128xf32>
    %392 = vector.shape_cast %386 : vector<8x128xf32> to vector<1x8x128xf32>
    tpu.vector_store %arg9[%c0_159, %c0_160, %c0_161], %392 {strides = array<i32>} : memref<2x8x128xf32, #tpu.memory_space<vmem>>, vector<1x8x128xf32>,
    %393 = arith.index_cast %c6_i32 : i32 to index
    %c0_162 = arith.constant 0 : index
    %c0_163 = arith.constant 0 : index
    %394 = vector.load %arg10[%393, %c0_162, %c0_163] : memref<8x8x128xf32, #tpu.memory_space<vmem>>, vector<1x8x128xf32>
    %395 = vector.shape_cast %394 : vector<1x8x128xf32> to vector<8x128xf32>
    %396 = vector.shape_cast %383 : vector<8x128xf32> to vector<1x8x128xf32>
    tpu.vector_store %arg10[%393, %c0_162, %c0_163], %396 {strides = array<i32>} : memref<8x8x128xf32, #tpu.memory_space<vmem>>, vector<1x8x128xf32>,
    %c7_i32 = arith.constant 7 : i32
    %c0_164 = arith.constant 0 : index
    %c0_165 = arith.constant 0 : index
    %c0_166 = arith.constant 0 : index
    %397 = vector.load %arg8[%c0_164, %c0_165, %c0_166] : memref<2x8x128xf32, #tpu.memory_space<vmem>>, vector<1x8x128xf32>
    %398 = vector.shape_cast %397 : vector<1x8x128xf32> to vector<8x128xf32>
    %c0_167 = arith.constant 0 : index
    %c0_168 = arith.constant 0 : index
    %c0_169 = arith.constant 0 : index
    %399 = vector.load %arg9[%c0_167, %c0_168, %c0_169] : memref<2x8x128xf32, #tpu.memory_space<vmem>>, vector<1x8x128xf32>
    %400 = vector.shape_cast %399 : vector<1x8x128xf32> to vector<8x128xf32>
    %401 = arith.index_cast %c7_i32 : i32 to index
    %c0_170 = arith.constant 0 : index
    %c0_171 = arith.constant 0 : index
    %402 = vector.load %arg2[%401, %c0_170, %c0_171] : memref<8x8x512xf32, #tpu.memory_space<vmem>>, vector<1x8x512xf32>
    %403 = vector.shape_cast %402 : vector<1x8x512xf32> to vector<8x512xf32>
    %404 = arith.truncf %398 : vector<8x128xf32> to vector<8x128xbf16>
    %cst_172 = arith.constant dense<0.000000e+00> : vector<8x512xf32>
    %405 = tpu.matmul %404, %4, %cst_172 {dimension_numbers = #tpu.dot_dimension_numbers<[1], [0], [0], [1], [0, 0, 1, 1], [], []>} : vector<8x128xbf16>, vector<128x512xbf16>, vector<8x512xf32> -> vector<8x512xf32>
    %406 = arith.addf %403, %405 : vector<8x512xf32>
    %407 = vector.extract_strided_slice %406 {offsets = [0, 0], sizes = [8, 128], strides = [1, 1]} : vector<8x512xf32> to vector<8x128xf32>
    %408 = arith.negf %407 : vector<8x128xf32>
    %409 = math.exp %408 : vector<8x128xf32>
    %cst_173 = arith.constant 1.000000e+00 : f32
    %410 = vector.broadcast %cst_173 : f32 to vector<8x128xf32>
    %411 = arith.addf %410, %409 : vector<8x128xf32>
    %412 = arith.divf %410, %411 : vector<8x128xf32>
    %413 = vector.extract_strided_slice %406 {offsets = [0, 128], sizes = [8, 128], strides = [1, 1]} : vector<8x512xf32> to vector<8x128xf32>
    %414 = arith.negf %413 : vector<8x128xf32>
    %415 = math.exp %414 : vector<8x128xf32>
    %cst_174 = arith.constant 1.000000e+00 : f32
    %416 = vector.broadcast %cst_174 : f32 to vector<8x128xf32>
    %417 = arith.addf %416, %415 : vector<8x128xf32>
    %418 = arith.divf %416, %417 : vector<8x128xf32>
    %419 = vector.extract_strided_slice %406 {offsets = [0, 256], sizes = [8, 128], strides = [1, 1]} : vector<8x512xf32> to vector<8x128xf32>
    %420 = math.tanh %419 : vector<8x128xf32>
    %421 = vector.extract_strided_slice %406 {offsets = [0, 384], sizes = [8, 128], strides = [1, 1]} : vector<8x512xf32> to vector<8x128xf32>
    %422 = arith.negf %421 : vector<8x128xf32>
    %423 = math.exp %422 : vector<8x128xf32>
    %cst_175 = arith.constant 1.000000e+00 : f32
    %424 = vector.broadcast %cst_175 : f32 to vector<8x128xf32>
    %425 = arith.addf %424, %423 : vector<8x128xf32>
    %426 = arith.divf %424, %425 : vector<8x128xf32>
    %427 = arith.mulf %418, %400 : vector<8x128xf32>
    %428 = arith.mulf %412, %420 : vector<8x128xf32>
    %429 = arith.addf %427, %428 : vector<8x128xf32>
    %430 = math.tanh %429 : vector<8x128xf32>
    %431 = arith.mulf %426, %430 : vector<8x128xf32>
    %432 = arith.index_cast %c7_i32 : i32 to index
    %c0_176 = arith.constant 0 : index
    %c0_177 = arith.constant 0 : index
    %433 = vector.load %arg3[%432, %c0_176, %c0_177] : memref<8x8x1xf32, #tpu.memory_space<vmem>>, vector<1x8x1xf32>
    %434 = vector.shape_cast %433 : vector<1x8x1xf32> to vector<8x1xf32>
    %cst_178 = arith.constant 0.000000e+00 : f32
    %435 = vector.broadcast %cst_178 : f32 to vector<8x1xf32>
    %436 = arith.cmpf ogt, %434, %435 : vector<8x1xf32>
    %437 = vector.shape_cast %436 : vector<8x1xi1> to vector<8x1xi1>
    %438 = vector.broadcast %437 : vector<8x1xi1> to vector<8x128xi1>
    %439 = arith.select %438, %431, %398 : vector<8x128xi1>, vector<8x128xf32>
    %440 = vector.shape_cast %436 : vector<8x1xi1> to vector<8x1xi1>
    %441 = vector.broadcast %440 : vector<8x1xi1> to vector<8x128xi1>
    %442 = arith.select %441, %429, %400 : vector<8x128xi1>, vector<8x128xf32>
    %c0_179 = arith.constant 0 : index
    %c0_180 = arith.constant 0 : index
    %c0_181 = arith.constant 0 : index
    %443 = vector.load %arg8[%c0_179, %c0_180, %c0_181] : memref<2x8x128xf32, #tpu.memory_space<vmem>>, vector<1x8x128xf32>
    %444 = vector.shape_cast %443 : vector<1x8x128xf32> to vector<8x128xf32>
    %445 = vector.shape_cast %439 : vector<8x128xf32> to vector<1x8x128xf32>
    tpu.vector_store %arg8[%c0_179, %c0_180, %c0_181], %445 {strides = array<i32>} : memref<2x8x128xf32, #tpu.memory_space<vmem>>, vector<1x8x128xf32>,
    %c0_182 = arith.constant 0 : index
    %c0_183 = arith.constant 0 : index
    %c0_184 = arith.constant 0 : index
    %446 = vector.load %arg9[%c0_182, %c0_183, %c0_184] : memref<2x8x128xf32, #tpu.memory_space<vmem>>, vector<1x8x128xf32>
    %447 = vector.shape_cast %446 : vector<1x8x128xf32> to vector<8x128xf32>
    %448 = vector.shape_cast %442 : vector<8x128xf32> to vector<1x8x128xf32>
    tpu.vector_store %arg9[%c0_182, %c0_183, %c0_184], %448 {strides = array<i32>} : memref<2x8x128xf32, #tpu.memory_space<vmem>>, vector<1x8x128xf32>,
    %449 = arith.index_cast %c7_i32 : i32 to index
    %c0_185 = arith.constant 0 : index
    %c0_186 = arith.constant 0 : index
    %450 = vector.load %arg10[%449, %c0_185, %c0_186] : memref<8x8x128xf32, #tpu.memory_space<vmem>>, vector<1x8x128xf32>
    %451 = vector.shape_cast %450 : vector<1x8x128xf32> to vector<8x128xf32>
    %452 = vector.shape_cast %439 : vector<8x128xf32> to vector<1x8x128xf32>
    tpu.vector_store %arg10[%449, %c0_185, %c0_186], %452 {strides = array<i32>} : memref<8x8x128xf32, #tpu.memory_space<vmem>>, vector<1x8x128xf32>,
    %c8_i32 = arith.constant 8 : i32
    %c0_187 = arith.constant 0 : index
    %c0_188 = arith.constant 0 : index
    %c0_189 = arith.constant 0 : index
    %453 = vector.load %arg10[%c0_187, %c0_188, %c0_189] : memref<8x8x128xf32, #tpu.memory_space<vmem>>, vector<8x8x128xf32>
    %454 = vector.shape_cast %453 : vector<8x8x128xf32> to vector<64x128xf32>
    %455 = arith.truncf %454 : vector<64x128xf32> to vector<64x128xbf16>
    %c1 = arith.constant 1 : index
    %c0_190 = arith.constant 0 : index
    %c0_191 = arith.constant 0 : index
    %456 = vector.load %arg5[%c1, %c0_190, %c0_191] : memref<2x128x512xbf16, #tpu.memory_space<vmem>>, vector<1x128x512xbf16>
    %457 = vector.shape_cast %456 : vector<1x128x512xbf16> to vector<128x512xbf16>
    %cst_192 = arith.constant dense<0.000000e+00> : vector<64x512xf32>
    %458 = tpu.matmul %455, %457, %cst_192 {dimension_numbers = #tpu.dot_dimension_numbers<[1], [0], [0], [1], [0, 0, 1, 1], [], []>} : vector<64x128xbf16>, vector<128x512xbf16>, vector<64x512xf32> -> vector<64x512xf32>
    %c1_193 = arith.constant 1 : index
    %c0_194 = arith.constant 0 : index
    %c0_195 = arith.constant 0 : index
    %459 = vector.load %arg6[%c1_193, %c0_194, %c0_195] : memref<2x1x512xf32, #tpu.memory_space<vmem>>, vector<1x1x512xf32>
    %460 = vector.shape_cast %459 : vector<1x1x512xf32> to vector<1x512xf32>
    %461 = vector.broadcast %460 : vector<1x512xf32> to vector<64x512xf32>
    %462 = arith.addf %458, %461 : vector<64x512xf32>
    %463 = vector.shape_cast %462 : vector<64x512xf32> to vector<8x8x512xf32>
    %c0_196 = arith.constant 0 : index
    %c0_197 = arith.constant 0 : index
    %c0_198 = arith.constant 0 : index
    %464 = vector.load %arg11[%c0_196, %c0_197, %c0_198] : memref<8x8x512xf32, #tpu.memory_space<vmem>>, vector<8x8x512xf32>
    tpu.vector_store %arg11[%c0_196, %c0_197, %c0_198], %463 {strides = array<i32>} : memref<8x8x512xf32, #tpu.memory_space<vmem>>, vector<8x8x512xf32>,
    %c1_199 = arith.constant 1 : index
    %c0_200 = arith.constant 0 : index
    %c0_201 = arith.constant 0 : index
    %465 = vector.load %arg4[%c1_199, %c0_200, %c0_201] : memref<2x128x512xbf16, #tpu.memory_space<vmem>>, vector<1x128x512xbf16>
    %466 = vector.shape_cast %465 : vector<1x128x512xbf16> to vector<128x512xbf16>
    %c0_i32_202 = arith.constant 0 : i32
    %c1_203 = arith.constant 1 : index
    %c0_204 = arith.constant 0 : index
    %c0_205 = arith.constant 0 : index
    %467 = vector.load %arg8[%c1_203, %c0_204, %c0_205] : memref<2x8x128xf32, #tpu.memory_space<vmem>>, vector<1x8x128xf32>
    %468 = vector.shape_cast %467 : vector<1x8x128xf32> to vector<8x128xf32>
    %c1_206 = arith.constant 1 : index
    %c0_207 = arith.constant 0 : index
    %c0_208 = arith.constant 0 : index
    %469 = vector.load %arg9[%c1_206, %c0_207, %c0_208] : memref<2x8x128xf32, #tpu.memory_space<vmem>>, vector<1x8x128xf32>
    %470 = vector.shape_cast %469 : vector<1x8x128xf32> to vector<8x128xf32>
    %471 = arith.index_cast %c0_i32_202 : i32 to index
    %c0_209 = arith.constant 0 : index
    %c0_210 = arith.constant 0 : index
    %472 = vector.load %arg11[%471, %c0_209, %c0_210] : memref<8x8x512xf32, #tpu.memory_space<vmem>>, vector<1x8x512xf32>
    %473 = vector.shape_cast %472 : vector<1x8x512xf32> to vector<8x512xf32>
    %474 = arith.truncf %468 : vector<8x128xf32> to vector<8x128xbf16>
    %cst_211 = arith.constant dense<0.000000e+00> : vector<8x512xf32>
    %475 = tpu.matmul %474, %466, %cst_211 {dimension_numbers = #tpu.dot_dimension_numbers<[1], [0], [0], [1], [0, 0, 1, 1], [], []>} : vector<8x128xbf16>, vector<128x512xbf16>, vector<8x512xf32> -> vector<8x512xf32>
    %476 = arith.addf %473, %475 : vector<8x512xf32>
    %477 = vector.extract_strided_slice %476 {offsets = [0, 0], sizes = [8, 128], strides = [1, 1]} : vector<8x512xf32> to vector<8x128xf32>
    %478 = arith.negf %477 : vector<8x128xf32>
    %479 = math.exp %478 : vector<8x128xf32>
    %cst_212 = arith.constant 1.000000e+00 : f32
    %480 = vector.broadcast %cst_212 : f32 to vector<8x128xf32>
    %481 = arith.addf %480, %479 : vector<8x128xf32>
    %482 = arith.divf %480, %481 : vector<8x128xf32>
    %483 = vector.extract_strided_slice %476 {offsets = [0, 128], sizes = [8, 128], strides = [1, 1]} : vector<8x512xf32> to vector<8x128xf32>
    %484 = arith.negf %483 : vector<8x128xf32>
    %485 = math.exp %484 : vector<8x128xf32>
    %cst_213 = arith.constant 1.000000e+00 : f32
    %486 = vector.broadcast %cst_213 : f32 to vector<8x128xf32>
    %487 = arith.addf %486, %485 : vector<8x128xf32>
    %488 = arith.divf %486, %487 : vector<8x128xf32>
    %489 = vector.extract_strided_slice %476 {offsets = [0, 256], sizes = [8, 128], strides = [1, 1]} : vector<8x512xf32> to vector<8x128xf32>
    %490 = math.tanh %489 : vector<8x128xf32>
    %491 = vector.extract_strided_slice %476 {offsets = [0, 384], sizes = [8, 128], strides = [1, 1]} : vector<8x512xf32> to vector<8x128xf32>
    %492 = arith.negf %491 : vector<8x128xf32>
    %493 = math.exp %492 : vector<8x128xf32>
    %cst_214 = arith.constant 1.000000e+00 : f32
    %494 = vector.broadcast %cst_214 : f32 to vector<8x128xf32>
    %495 = arith.addf %494, %493 : vector<8x128xf32>
    %496 = arith.divf %494, %495 : vector<8x128xf32>
    %497 = arith.mulf %488, %470 : vector<8x128xf32>
    %498 = arith.mulf %482, %490 : vector<8x128xf32>
    %499 = arith.addf %497, %498 : vector<8x128xf32>
    %500 = math.tanh %499 : vector<8x128xf32>
    %501 = arith.mulf %496, %500 : vector<8x128xf32>
    %502 = arith.index_cast %c0_i32_202 : i32 to index
    %c0_215 = arith.constant 0 : index
    %c0_216 = arith.constant 0 : index
    %503 = vector.load %arg3[%502, %c0_215, %c0_216] : memref<8x8x1xf32, #tpu.memory_space<vmem>>, vector<1x8x1xf32>
    %504 = vector.shape_cast %503 : vector<1x8x1xf32> to vector<8x1xf32>
    %cst_217 = arith.constant 0.000000e+00 : f32
    %505 = vector.broadcast %cst_217 : f32 to vector<8x1xf32>
    %506 = arith.cmpf ogt, %504, %505 : vector<8x1xf32>
    %507 = vector.shape_cast %506 : vector<8x1xi1> to vector<8x1xi1>
    %508 = vector.broadcast %507 : vector<8x1xi1> to vector<8x128xi1>
    %509 = arith.select %508, %501, %468 : vector<8x128xi1>, vector<8x128xf32>
    %510 = vector.shape_cast %506 : vector<8x1xi1> to vector<8x1xi1>
    %511 = vector.broadcast %510 : vector<8x1xi1> to vector<8x128xi1>
    %512 = arith.select %511, %499, %470 : vector<8x128xi1>, vector<8x128xf32>
    %c1_218 = arith.constant 1 : index
    %c0_219 = arith.constant 0 : index
    %c0_220 = arith.constant 0 : index
    %513 = vector.load %arg8[%c1_218, %c0_219, %c0_220] : memref<2x8x128xf32, #tpu.memory_space<vmem>>, vector<1x8x128xf32>
    %514 = vector.shape_cast %513 : vector<1x8x128xf32> to vector<8x128xf32>
    %515 = vector.shape_cast %509 : vector<8x128xf32> to vector<1x8x128xf32>
    tpu.vector_store %arg8[%c1_218, %c0_219, %c0_220], %515 {strides = array<i32>} : memref<2x8x128xf32, #tpu.memory_space<vmem>>, vector<1x8x128xf32>,
    %c1_221 = arith.constant 1 : index
    %c0_222 = arith.constant 0 : index
    %c0_223 = arith.constant 0 : index
    %516 = vector.load %arg9[%c1_221, %c0_222, %c0_223] : memref<2x8x128xf32, #tpu.memory_space<vmem>>, vector<1x8x128xf32>
    %517 = vector.shape_cast %516 : vector<1x8x128xf32> to vector<8x128xf32>
    %518 = vector.shape_cast %512 : vector<8x128xf32> to vector<1x8x128xf32>
    tpu.vector_store %arg9[%c1_221, %c0_222, %c0_223], %518 {strides = array<i32>} : memref<2x8x128xf32, #tpu.memory_space<vmem>>, vector<1x8x128xf32>,
    %cst_224 = arith.constant 0.000000e+00 : f32
    %519 = vector.shape_cast %506 : vector<8x1xi1> to vector<8x1xi1>
    %520 = vector.broadcast %519 : vector<8x1xi1> to vector<8x128xi1>
    %521 = vector.broadcast %cst_224 : f32 to vector<8x128xf32>
    %522 = arith.select %520, %501, %521 : vector<8x128xi1>, vector<8x128xf32>
    %523 = arith.index_cast %c0_i32_202 : i32 to index
    %c0_225 = arith.constant 0 : index
    %c0_226 = arith.constant 0 : index
    %524 = vector.load %arg7[%523, %c0_225, %c0_226] : memref<8x8x128xf32, #tpu.memory_space<vmem>>, vector<1x8x128xf32>
    %525 = vector.shape_cast %524 : vector<1x8x128xf32> to vector<8x128xf32>
    %526 = vector.shape_cast %522 : vector<8x128xf32> to vector<1x8x128xf32>
    tpu.vector_store %arg7[%523, %c0_225, %c0_226], %526 {strides = array<i32>} : memref<8x8x128xf32, #tpu.memory_space<vmem>>, vector<1x8x128xf32>,
    %c1_i32_227 = arith.constant 1 : i32
    %c1_228 = arith.constant 1 : index
    %c0_229 = arith.constant 0 : index
    %c0_230 = arith.constant 0 : index
    %527 = vector.load %arg8[%c1_228, %c0_229, %c0_230] : memref<2x8x128xf32, #tpu.memory_space<vmem>>, vector<1x8x128xf32>
    %528 = vector.shape_cast %527 : vector<1x8x128xf32> to vector<8x128xf32>
    %c1_231 = arith.constant 1 : index
    %c0_232 = arith.constant 0 : index
    %c0_233 = arith.constant 0 : index
    %529 = vector.load %arg9[%c1_231, %c0_232, %c0_233] : memref<2x8x128xf32, #tpu.memory_space<vmem>>, vector<1x8x128xf32>
    %530 = vector.shape_cast %529 : vector<1x8x128xf32> to vector<8x128xf32>
    %531 = arith.index_cast %c1_i32_227 : i32 to index
    %c0_234 = arith.constant 0 : index
    %c0_235 = arith.constant 0 : index
    %532 = vector.load %arg11[%531, %c0_234, %c0_235] : memref<8x8x512xf32, #tpu.memory_space<vmem>>, vector<1x8x512xf32>
    %533 = vector.shape_cast %532 : vector<1x8x512xf32> to vector<8x512xf32>
    %534 = arith.truncf %528 : vector<8x128xf32> to vector<8x128xbf16>
    %cst_236 = arith.constant dense<0.000000e+00> : vector<8x512xf32>
    %535 = tpu.matmul %534, %466, %cst_236 {dimension_numbers = #tpu.dot_dimension_numbers<[1], [0], [0], [1], [0, 0, 1, 1], [], []>} : vector<8x128xbf16>, vector<128x512xbf16>, vector<8x512xf32> -> vector<8x512xf32>
    %536 = arith.addf %533, %535 : vector<8x512xf32>
    %537 = vector.extract_strided_slice %536 {offsets = [0, 0], sizes = [8, 128], strides = [1, 1]} : vector<8x512xf32> to vector<8x128xf32>
    %538 = arith.negf %537 : vector<8x128xf32>
    %539 = math.exp %538 : vector<8x128xf32>
    %cst_237 = arith.constant 1.000000e+00 : f32
    %540 = vector.broadcast %cst_237 : f32 to vector<8x128xf32>
    %541 = arith.addf %540, %539 : vector<8x128xf32>
    %542 = arith.divf %540, %541 : vector<8x128xf32>
    %543 = vector.extract_strided_slice %536 {offsets = [0, 128], sizes = [8, 128], strides = [1, 1]} : vector<8x512xf32> to vector<8x128xf32>
    %544 = arith.negf %543 : vector<8x128xf32>
    %545 = math.exp %544 : vector<8x128xf32>
    %cst_238 = arith.constant 1.000000e+00 : f32
    %546 = vector.broadcast %cst_238 : f32 to vector<8x128xf32>
    %547 = arith.addf %546, %545 : vector<8x128xf32>
    %548 = arith.divf %546, %547 : vector<8x128xf32>
    %549 = vector.extract_strided_slice %536 {offsets = [0, 256], sizes = [8, 128], strides = [1, 1]} : vector<8x512xf32> to vector<8x128xf32>
    %550 = math.tanh %549 : vector<8x128xf32>
    %551 = vector.extract_strided_slice %536 {offsets = [0, 384], sizes = [8, 128], strides = [1, 1]} : vector<8x512xf32> to vector<8x128xf32>
    %552 = arith.negf %551 : vector<8x128xf32>
    %553 = math.exp %552 : vector<8x128xf32>
    %cst_239 = arith.constant 1.000000e+00 : f32
    %554 = vector.broadcast %cst_239 : f32 to vector<8x128xf32>
    %555 = arith.addf %554, %553 : vector<8x128xf32>
    %556 = arith.divf %554, %555 : vector<8x128xf32>
    %557 = arith.mulf %548, %530 : vector<8x128xf32>
    %558 = arith.mulf %542, %550 : vector<8x128xf32>
    %559 = arith.addf %557, %558 : vector<8x128xf32>
    %560 = math.tanh %559 : vector<8x128xf32>
    %561 = arith.mulf %556, %560 : vector<8x128xf32>
    %562 = arith.index_cast %c1_i32_227 : i32 to index
    %c0_240 = arith.constant 0 : index
    %c0_241 = arith.constant 0 : index
    %563 = vector.load %arg3[%562, %c0_240, %c0_241] : memref<8x8x1xf32, #tpu.memory_space<vmem>>, vector<1x8x1xf32>
    %564 = vector.shape_cast %563 : vector<1x8x1xf32> to vector<8x1xf32>
    %cst_242 = arith.constant 0.000000e+00 : f32
    %565 = vector.broadcast %cst_242 : f32 to vector<8x1xf32>
    %566 = arith.cmpf ogt, %564, %565 : vector<8x1xf32>
    %567 = vector.shape_cast %566 : vector<8x1xi1> to vector<8x1xi1>
    %568 = vector.broadcast %567 : vector<8x1xi1> to vector<8x128xi1>
    %569 = arith.select %568, %561, %528 : vector<8x128xi1>, vector<8x128xf32>
    %570 = vector.shape_cast %566 : vector<8x1xi1> to vector<8x1xi1>
    %571 = vector.broadcast %570 : vector<8x1xi1> to vector<8x128xi1>
    %572 = arith.select %571, %559, %530 : vector<8x128xi1>, vector<8x128xf32>
    %c1_243 = arith.constant 1 : index
    %c0_244 = arith.constant 0 : index
    %c0_245 = arith.constant 0 : index
    %573 = vector.load %arg8[%c1_243, %c0_244, %c0_245] : memref<2x8x128xf32, #tpu.memory_space<vmem>>, vector<1x8x128xf32>
    %574 = vector.shape_cast %573 : vector<1x8x128xf32> to vector<8x128xf32>
    %575 = vector.shape_cast %569 : vector<8x128xf32> to vector<1x8x128xf32>
    tpu.vector_store %arg8[%c1_243, %c0_244, %c0_245], %575 {strides = array<i32>} : memref<2x8x128xf32, #tpu.memory_space<vmem>>, vector<1x8x128xf32>,
    %c1_246 = arith.constant 1 : index
    %c0_247 = arith.constant 0 : index
    %c0_248 = arith.constant 0 : index
    %576 = vector.load %arg9[%c1_246, %c0_247, %c0_248] : memref<2x8x128xf32, #tpu.memory_space<vmem>>, vector<1x8x128xf32>
    %577 = vector.shape_cast %576 : vector<1x8x128xf32> to vector<8x128xf32>
    %578 = vector.shape_cast %572 : vector<8x128xf32> to vector<1x8x128xf32>
    tpu.vector_store %arg9[%c1_246, %c0_247, %c0_248], %578 {strides = array<i32>} : memref<2x8x128xf32, #tpu.memory_space<vmem>>, vector<1x8x128xf32>,
    %cst_249 = arith.constant 0.000000e+00 : f32
    %579 = vector.shape_cast %566 : vector<8x1xi1> to vector<8x1xi1>
    %580 = vector.broadcast %579 : vector<8x1xi1> to vector<8x128xi1>
    %581 = vector.broadcast %cst_249 : f32 to vector<8x128xf32>
    %582 = arith.select %580, %561, %581 : vector<8x128xi1>, vector<8x128xf32>
    %583 = arith.index_cast %c1_i32_227 : i32 to index
    %c0_250 = arith.constant 0 : index
    %c0_251 = arith.constant 0 : index
    %584 = vector.load %arg7[%583, %c0_250, %c0_251] : memref<8x8x128xf32, #tpu.memory_space<vmem>>, vector<1x8x128xf32>
    %585 = vector.shape_cast %584 : vector<1x8x128xf32> to vector<8x128xf32>
    %586 = vector.shape_cast %582 : vector<8x128xf32> to vector<1x8x128xf32>
    tpu.vector_store %arg7[%583, %c0_250, %c0_251], %586 {strides = array<i32>} : memref<8x8x128xf32, #tpu.memory_space<vmem>>, vector<1x8x128xf32>,
    %c2_i32_252 = arith.constant 2 : i32
    %c1_253 = arith.constant 1 : index
    %c0_254 = arith.constant 0 : index
    %c0_255 = arith.constant 0 : index
    %587 = vector.load %arg8[%c1_253, %c0_254, %c0_255] : memref<2x8x128xf32, #tpu.memory_space<vmem>>, vector<1x8x128xf32>
    %588 = vector.shape_cast %587 : vector<1x8x128xf32> to vector<8x128xf32>
    %c1_256 = arith.constant 1 : index
    %c0_257 = arith.constant 0 : index
    %c0_258 = arith.constant 0 : index
    %589 = vector.load %arg9[%c1_256, %c0_257, %c0_258] : memref<2x8x128xf32, #tpu.memory_space<vmem>>, vector<1x8x128xf32>
    %590 = vector.shape_cast %589 : vector<1x8x128xf32> to vector<8x128xf32>
    %591 = arith.index_cast %c2_i32_252 : i32 to index
    %c0_259 = arith.constant 0 : index
    %c0_260 = arith.constant 0 : index
    %592 = vector.load %arg11[%591, %c0_259, %c0_260] : memref<8x8x512xf32, #tpu.memory_space<vmem>>, vector<1x8x512xf32>
    %593 = vector.shape_cast %592 : vector<1x8x512xf32> to vector<8x512xf32>
    %594 = arith.truncf %588 : vector<8x128xf32> to vector<8x128xbf16>
    %cst_261 = arith.constant dense<0.000000e+00> : vector<8x512xf32>
    %595 = tpu.matmul %594, %466, %cst_261 {dimension_numbers = #tpu.dot_dimension_numbers<[1], [0], [0], [1], [0, 0, 1, 1], [], []>} : vector<8x128xbf16>, vector<128x512xbf16>, vector<8x512xf32> -> vector<8x512xf32>
    %596 = arith.addf %593, %595 : vector<8x512xf32>
    %597 = vector.extract_strided_slice %596 {offsets = [0, 0], sizes = [8, 128], strides = [1, 1]} : vector<8x512xf32> to vector<8x128xf32>
    %598 = arith.negf %597 : vector<8x128xf32>
    %599 = math.exp %598 : vector<8x128xf32>
    %cst_262 = arith.constant 1.000000e+00 : f32
    %600 = vector.broadcast %cst_262 : f32 to vector<8x128xf32>
    %601 = arith.addf %600, %599 : vector<8x128xf32>
    %602 = arith.divf %600, %601 : vector<8x128xf32>
    %603 = vector.extract_strided_slice %596 {offsets = [0, 128], sizes = [8, 128], strides = [1, 1]} : vector<8x512xf32> to vector<8x128xf32>
    %604 = arith.negf %603 : vector<8x128xf32>
    %605 = math.exp %604 : vector<8x128xf32>
    %cst_263 = arith.constant 1.000000e+00 : f32
    %606 = vector.broadcast %cst_263 : f32 to vector<8x128xf32>
    %607 = arith.addf %606, %605 : vector<8x128xf32>
    %608 = arith.divf %606, %607 : vector<8x128xf32>
    %609 = vector.extract_strided_slice %596 {offsets = [0, 256], sizes = [8, 128], strides = [1, 1]} : vector<8x512xf32> to vector<8x128xf32>
    %610 = math.tanh %609 : vector<8x128xf32>
    %611 = vector.extract_strided_slice %596 {offsets = [0, 384], sizes = [8, 128], strides = [1, 1]} : vector<8x512xf32> to vector<8x128xf32>
    %612 = arith.negf %611 : vector<8x128xf32>
    %613 = math.exp %612 : vector<8x128xf32>
    %cst_264 = arith.constant 1.000000e+00 : f32
    %614 = vector.broadcast %cst_264 : f32 to vector<8x128xf32>
    %615 = arith.addf %614, %613 : vector<8x128xf32>
    %616 = arith.divf %614, %615 : vector<8x128xf32>
    %617 = arith.mulf %608, %590 : vector<8x128xf32>
    %618 = arith.mulf %602, %610 : vector<8x128xf32>
    %619 = arith.addf %617, %618 : vector<8x128xf32>
    %620 = math.tanh %619 : vector<8x128xf32>
    %621 = arith.mulf %616, %620 : vector<8x128xf32>
    %622 = arith.index_cast %c2_i32_252 : i32 to index
    %c0_265 = arith.constant 0 : index
    %c0_266 = arith.constant 0 : index
    %623 = vector.load %arg3[%622, %c0_265, %c0_266] : memref<8x8x1xf32, #tpu.memory_space<vmem>>, vector<1x8x1xf32>
    %624 = vector.shape_cast %623 : vector<1x8x1xf32> to vector<8x1xf32>
    %cst_267 = arith.constant 0.000000e+00 : f32
    %625 = vector.broadcast %cst_267 : f32 to vector<8x1xf32>
    %626 = arith.cmpf ogt, %624, %625 : vector<8x1xf32>
    %627 = vector.shape_cast %626 : vector<8x1xi1> to vector<8x1xi1>
    %628 = vector.broadcast %627 : vector<8x1xi1> to vector<8x128xi1>
    %629 = arith.select %628, %621, %588 : vector<8x128xi1>, vector<8x128xf32>
    %630 = vector.shape_cast %626 : vector<8x1xi1> to vector<8x1xi1>
    %631 = vector.broadcast %630 : vector<8x1xi1> to vector<8x128xi1>
    %632 = arith.select %631, %619, %590 : vector<8x128xi1>, vector<8x128xf32>
    %c1_268 = arith.constant 1 : index
    %c0_269 = arith.constant 0 : index
    %c0_270 = arith.constant 0 : index
    %633 = vector.load %arg8[%c1_268, %c0_269, %c0_270] : memref<2x8x128xf32, #tpu.memory_space<vmem>>, vector<1x8x128xf32>
    %634 = vector.shape_cast %633 : vector<1x8x128xf32> to vector<8x128xf32>
    %635 = vector.shape_cast %629 : vector<8x128xf32> to vector<1x8x128xf32>
    tpu.vector_store %arg8[%c1_268, %c0_269, %c0_270], %635 {strides = array<i32>} : memref<2x8x128xf32, #tpu.memory_space<vmem>>, vector<1x8x128xf32>,
    %c1_271 = arith.constant 1 : index
    %c0_272 = arith.constant 0 : index
    %c0_273 = arith.constant 0 : index
    %636 = vector.load %arg9[%c1_271, %c0_272, %c0_273] : memref<2x8x128xf32, #tpu.memory_space<vmem>>, vector<1x8x128xf32>
    %637 = vector.shape_cast %636 : vector<1x8x128xf32> to vector<8x128xf32>
    %638 = vector.shape_cast %632 : vector<8x128xf32> to vector<1x8x128xf32>
    tpu.vector_store %arg9[%c1_271, %c0_272, %c0_273], %638 {strides = array<i32>} : memref<2x8x128xf32, #tpu.memory_space<vmem>>, vector<1x8x128xf32>,
    %cst_274 = arith.constant 0.000000e+00 : f32
    %639 = vector.shape_cast %626 : vector<8x1xi1> to vector<8x1xi1>
    %640 = vector.broadcast %639 : vector<8x1xi1> to vector<8x128xi1>
    %641 = vector.broadcast %cst_274 : f32 to vector<8x128xf32>
    %642 = arith.select %640, %621, %641 : vector<8x128xi1>, vector<8x128xf32>
    %643 = arith.index_cast %c2_i32_252 : i32 to index
    %c0_275 = arith.constant 0 : index
    %c0_276 = arith.constant 0 : index
    %644 = vector.load %arg7[%643, %c0_275, %c0_276] : memref<8x8x128xf32, #tpu.memory_space<vmem>>, vector<1x8x128xf32>
    %645 = vector.shape_cast %644 : vector<1x8x128xf32> to vector<8x128xf32>
    %646 = vector.shape_cast %642 : vector<8x128xf32> to vector<1x8x128xf32>
    tpu.vector_store %arg7[%643, %c0_275, %c0_276], %646 {strides = array<i32>} : memref<8x8x128xf32, #tpu.memory_space<vmem>>, vector<1x8x128xf32>,
    %c3_i32_277 = arith.constant 3 : i32
    %c1_278 = arith.constant 1 : index
    %c0_279 = arith.constant 0 : index
    %c0_280 = arith.constant 0 : index
    %647 = vector.load %arg8[%c1_278, %c0_279, %c0_280] : memref<2x8x128xf32, #tpu.memory_space<vmem>>, vector<1x8x128xf32>
    %648 = vector.shape_cast %647 : vector<1x8x128xf32> to vector<8x128xf32>
    %c1_281 = arith.constant 1 : index
    %c0_282 = arith.constant 0 : index
    %c0_283 = arith.constant 0 : index
    %649 = vector.load %arg9[%c1_281, %c0_282, %c0_283] : memref<2x8x128xf32, #tpu.memory_space<vmem>>, vector<1x8x128xf32>
    %650 = vector.shape_cast %649 : vector<1x8x128xf32> to vector<8x128xf32>
    %651 = arith.index_cast %c3_i32_277 : i32 to index
    %c0_284 = arith.constant 0 : index
    %c0_285 = arith.constant 0 : index
    %652 = vector.load %arg11[%651, %c0_284, %c0_285] : memref<8x8x512xf32, #tpu.memory_space<vmem>>, vector<1x8x512xf32>
    %653 = vector.shape_cast %652 : vector<1x8x512xf32> to vector<8x512xf32>
    %654 = arith.truncf %648 : vector<8x128xf32> to vector<8x128xbf16>
    %cst_286 = arith.constant dense<0.000000e+00> : vector<8x512xf32>
    %655 = tpu.matmul %654, %466, %cst_286 {dimension_numbers = #tpu.dot_dimension_numbers<[1], [0], [0], [1], [0, 0, 1, 1], [], []>} : vector<8x128xbf16>, vector<128x512xbf16>, vector<8x512xf32> -> vector<8x512xf32>
    %656 = arith.addf %653, %655 : vector<8x512xf32>
    %657 = vector.extract_strided_slice %656 {offsets = [0, 0], sizes = [8, 128], strides = [1, 1]} : vector<8x512xf32> to vector<8x128xf32>
    %658 = arith.negf %657 : vector<8x128xf32>
    %659 = math.exp %658 : vector<8x128xf32>
    %cst_287 = arith.constant 1.000000e+00 : f32
    %660 = vector.broadcast %cst_287 : f32 to vector<8x128xf32>
    %661 = arith.addf %660, %659 : vector<8x128xf32>
    %662 = arith.divf %660, %661 : vector<8x128xf32>
    %663 = vector.extract_strided_slice %656 {offsets = [0, 128], sizes = [8, 128], strides = [1, 1]} : vector<8x512xf32> to vector<8x128xf32>
    %664 = arith.negf %663 : vector<8x128xf32>
    %665 = math.exp %664 : vector<8x128xf32>
    %cst_288 = arith.constant 1.000000e+00 : f32
    %666 = vector.broadcast %cst_288 : f32 to vector<8x128xf32>
    %667 = arith.addf %666, %665 : vector<8x128xf32>
    %668 = arith.divf %666, %667 : vector<8x128xf32>
    %669 = vector.extract_strided_slice %656 {offsets = [0, 256], sizes = [8, 128], strides = [1, 1]} : vector<8x512xf32> to vector<8x128xf32>
    %670 = math.tanh %669 : vector<8x128xf32>
    %671 = vector.extract_strided_slice %656 {offsets = [0, 384], sizes = [8, 128], strides = [1, 1]} : vector<8x512xf32> to vector<8x128xf32>
    %672 = arith.negf %671 : vector<8x128xf32>
    %673 = math.exp %672 : vector<8x128xf32>
    %cst_289 = arith.constant 1.000000e+00 : f32
    %674 = vector.broadcast %cst_289 : f32 to vector<8x128xf32>
    %675 = arith.addf %674, %673 : vector<8x128xf32>
    %676 = arith.divf %674, %675 : vector<8x128xf32>
    %677 = arith.mulf %668, %650 : vector<8x128xf32>
    %678 = arith.mulf %662, %670 : vector<8x128xf32>
    %679 = arith.addf %677, %678 : vector<8x128xf32>
    %680 = math.tanh %679 : vector<8x128xf32>
    %681 = arith.mulf %676, %680 : vector<8x128xf32>
    %682 = arith.index_cast %c3_i32_277 : i32 to index
    %c0_290 = arith.constant 0 : index
    %c0_291 = arith.constant 0 : index
    %683 = vector.load %arg3[%682, %c0_290, %c0_291] : memref<8x8x1xf32, #tpu.memory_space<vmem>>, vector<1x8x1xf32>
    %684 = vector.shape_cast %683 : vector<1x8x1xf32> to vector<8x1xf32>
    %cst_292 = arith.constant 0.000000e+00 : f32
    %685 = vector.broadcast %cst_292 : f32 to vector<8x1xf32>
    %686 = arith.cmpf ogt, %684, %685 : vector<8x1xf32>
    %687 = vector.shape_cast %686 : vector<8x1xi1> to vector<8x1xi1>
    %688 = vector.broadcast %687 : vector<8x1xi1> to vector<8x128xi1>
    %689 = arith.select %688, %681, %648 : vector<8x128xi1>, vector<8x128xf32>
    %690 = vector.shape_cast %686 : vector<8x1xi1> to vector<8x1xi1>
    %691 = vector.broadcast %690 : vector<8x1xi1> to vector<8x128xi1>
    %692 = arith.select %691, %679, %650 : vector<8x128xi1>, vector<8x128xf32>
    %c1_293 = arith.constant 1 : index
    %c0_294 = arith.constant 0 : index
    %c0_295 = arith.constant 0 : index
    %693 = vector.load %arg8[%c1_293, %c0_294, %c0_295] : memref<2x8x128xf32, #tpu.memory_space<vmem>>, vector<1x8x128xf32>
    %694 = vector.shape_cast %693 : vector<1x8x128xf32> to vector<8x128xf32>
    %695 = vector.shape_cast %689 : vector<8x128xf32> to vector<1x8x128xf32>
    tpu.vector_store %arg8[%c1_293, %c0_294, %c0_295], %695 {strides = array<i32>} : memref<2x8x128xf32, #tpu.memory_space<vmem>>, vector<1x8x128xf32>,
    %c1_296 = arith.constant 1 : index
    %c0_297 = arith.constant 0 : index
    %c0_298 = arith.constant 0 : index
    %696 = vector.load %arg9[%c1_296, %c0_297, %c0_298] : memref<2x8x128xf32, #tpu.memory_space<vmem>>, vector<1x8x128xf32>
    %697 = vector.shape_cast %696 : vector<1x8x128xf32> to vector<8x128xf32>
    %698 = vector.shape_cast %692 : vector<8x128xf32> to vector<1x8x128xf32>
    tpu.vector_store %arg9[%c1_296, %c0_297, %c0_298], %698 {strides = array<i32>} : memref<2x8x128xf32, #tpu.memory_space<vmem>>, vector<1x8x128xf32>,
    %cst_299 = arith.constant 0.000000e+00 : f32
    %699 = vector.shape_cast %686 : vector<8x1xi1> to vector<8x1xi1>
    %700 = vector.broadcast %699 : vector<8x1xi1> to vector<8x128xi1>
    %701 = vector.broadcast %cst_299 : f32 to vector<8x128xf32>
    %702 = arith.select %700, %681, %701 : vector<8x128xi1>, vector<8x128xf32>
    %703 = arith.index_cast %c3_i32_277 : i32 to index
    %c0_300 = arith.constant 0 : index
    %c0_301 = arith.constant 0 : index
    %704 = vector.load %arg7[%703, %c0_300, %c0_301] : memref<8x8x128xf32, #tpu.memory_space<vmem>>, vector<1x8x128xf32>
    %705 = vector.shape_cast %704 : vector<1x8x128xf32> to vector<8x128xf32>
    %706 = vector.shape_cast %702 : vector<8x128xf32> to vector<1x8x128xf32>
    tpu.vector_store %arg7[%703, %c0_300, %c0_301], %706 {strides = array<i32>} : memref<8x8x128xf32, #tpu.memory_space<vmem>>, vector<1x8x128xf32>,
    %c4_i32_302 = arith.constant 4 : i32
    %c1_303 = arith.constant 1 : index
    %c0_304 = arith.constant 0 : index
    %c0_305 = arith.constant 0 : index
    %707 = vector.load %arg8[%c1_303, %c0_304, %c0_305] : memref<2x8x128xf32, #tpu.memory_space<vmem>>, vector<1x8x128xf32>
    %708 = vector.shape_cast %707 : vector<1x8x128xf32> to vector<8x128xf32>
    %c1_306 = arith.constant 1 : index
    %c0_307 = arith.constant 0 : index
    %c0_308 = arith.constant 0 : index
    %709 = vector.load %arg9[%c1_306, %c0_307, %c0_308] : memref<2x8x128xf32, #tpu.memory_space<vmem>>, vector<1x8x128xf32>
    %710 = vector.shape_cast %709 : vector<1x8x128xf32> to vector<8x128xf32>
    %711 = arith.index_cast %c4_i32_302 : i32 to index
    %c0_309 = arith.constant 0 : index
    %c0_310 = arith.constant 0 : index
    %712 = vector.load %arg11[%711, %c0_309, %c0_310] : memref<8x8x512xf32, #tpu.memory_space<vmem>>, vector<1x8x512xf32>
    %713 = vector.shape_cast %712 : vector<1x8x512xf32> to vector<8x512xf32>
    %714 = arith.truncf %708 : vector<8x128xf32> to vector<8x128xbf16>
    %cst_311 = arith.constant dense<0.000000e+00> : vector<8x512xf32>
    %715 = tpu.matmul %714, %466, %cst_311 {dimension_numbers = #tpu.dot_dimension_numbers<[1], [0], [0], [1], [0, 0, 1, 1], [], []>} : vector<8x128xbf16>, vector<128x512xbf16>, vector<8x512xf32> -> vector<8x512xf32>
    %716 = arith.addf %713, %715 : vector<8x512xf32>
    %717 = vector.extract_strided_slice %716 {offsets = [0, 0], sizes = [8, 128], strides = [1, 1]} : vector<8x512xf32> to vector<8x128xf32>
    %718 = arith.negf %717 : vector<8x128xf32>
    %719 = math.exp %718 : vector<8x128xf32>
    %cst_312 = arith.constant 1.000000e+00 : f32
    %720 = vector.broadcast %cst_312 : f32 to vector<8x128xf32>
    %721 = arith.addf %720, %719 : vector<8x128xf32>
    %722 = arith.divf %720, %721 : vector<8x128xf32>
    %723 = vector.extract_strided_slice %716 {offsets = [0, 128], sizes = [8, 128], strides = [1, 1]} : vector<8x512xf32> to vector<8x128xf32>
    %724 = arith.negf %723 : vector<8x128xf32>
    %725 = math.exp %724 : vector<8x128xf32>
    %cst_313 = arith.constant 1.000000e+00 : f32
    %726 = vector.broadcast %cst_313 : f32 to vector<8x128xf32>
    %727 = arith.addf %726, %725 : vector<8x128xf32>
    %728 = arith.divf %726, %727 : vector<8x128xf32>
    %729 = vector.extract_strided_slice %716 {offsets = [0, 256], sizes = [8, 128], strides = [1, 1]} : vector<8x512xf32> to vector<8x128xf32>
    %730 = math.tanh %729 : vector<8x128xf32>
    %731 = vector.extract_strided_slice %716 {offsets = [0, 384], sizes = [8, 128], strides = [1, 1]} : vector<8x512xf32> to vector<8x128xf32>
    %732 = arith.negf %731 : vector<8x128xf32>
    %733 = math.exp %732 : vector<8x128xf32>
    %cst_314 = arith.constant 1.000000e+00 : f32
    %734 = vector.broadcast %cst_314 : f32 to vector<8x128xf32>
    %735 = arith.addf %734, %733 : vector<8x128xf32>
    %736 = arith.divf %734, %735 : vector<8x128xf32>
    %737 = arith.mulf %728, %710 : vector<8x128xf32>
    %738 = arith.mulf %722, %730 : vector<8x128xf32>
    %739 = arith.addf %737, %738 : vector<8x128xf32>
    %740 = math.tanh %739 : vector<8x128xf32>
    %741 = arith.mulf %736, %740 : vector<8x128xf32>
    %742 = arith.index_cast %c4_i32_302 : i32 to index
    %c0_315 = arith.constant 0 : index
    %c0_316 = arith.constant 0 : index
    %743 = vector.load %arg3[%742, %c0_315, %c0_316] : memref<8x8x1xf32, #tpu.memory_space<vmem>>, vector<1x8x1xf32>
    %744 = vector.shape_cast %743 : vector<1x8x1xf32> to vector<8x1xf32>
    %cst_317 = arith.constant 0.000000e+00 : f32
    %745 = vector.broadcast %cst_317 : f32 to vector<8x1xf32>
    %746 = arith.cmpf ogt, %744, %745 : vector<8x1xf32>
    %747 = vector.shape_cast %746 : vector<8x1xi1> to vector<8x1xi1>
    %748 = vector.broadcast %747 : vector<8x1xi1> to vector<8x128xi1>
    %749 = arith.select %748, %741, %708 : vector<8x128xi1>, vector<8x128xf32>
    %750 = vector.shape_cast %746 : vector<8x1xi1> to vector<8x1xi1>
    %751 = vector.broadcast %750 : vector<8x1xi1> to vector<8x128xi1>
    %752 = arith.select %751, %739, %710 : vector<8x128xi1>, vector<8x128xf32>
    %c1_318 = arith.constant 1 : index
    %c0_319 = arith.constant 0 : index
    %c0_320 = arith.constant 0 : index
    %753 = vector.load %arg8[%c1_318, %c0_319, %c0_320] : memref<2x8x128xf32, #tpu.memory_space<vmem>>, vector<1x8x128xf32>
    %754 = vector.shape_cast %753 : vector<1x8x128xf32> to vector<8x128xf32>
    %755 = vector.shape_cast %749 : vector<8x128xf32> to vector<1x8x128xf32>
    tpu.vector_store %arg8[%c1_318, %c0_319, %c0_320], %755 {strides = array<i32>} : memref<2x8x128xf32, #tpu.memory_space<vmem>>, vector<1x8x128xf32>,
    %c1_321 = arith.constant 1 : index
    %c0_322 = arith.constant 0 : index
    %c0_323 = arith.constant 0 : index
    %756 = vector.load %arg9[%c1_321, %c0_322, %c0_323] : memref<2x8x128xf32, #tpu.memory_space<vmem>>, vector<1x8x128xf32>
    %757 = vector.shape_cast %756 : vector<1x8x128xf32> to vector<8x128xf32>
    %758 = vector.shape_cast %752 : vector<8x128xf32> to vector<1x8x128xf32>
    tpu.vector_store %arg9[%c1_321, %c0_322, %c0_323], %758 {strides = array<i32>} : memref<2x8x128xf32, #tpu.memory_space<vmem>>, vector<1x8x128xf32>,
    %cst_324 = arith.constant 0.000000e+00 : f32
    %759 = vector.shape_cast %746 : vector<8x1xi1> to vector<8x1xi1>
    %760 = vector.broadcast %759 : vector<8x1xi1> to vector<8x128xi1>
    %761 = vector.broadcast %cst_324 : f32 to vector<8x128xf32>
    %762 = arith.select %760, %741, %761 : vector<8x128xi1>, vector<8x128xf32>
    %763 = arith.index_cast %c4_i32_302 : i32 to index
    %c0_325 = arith.constant 0 : index
    %c0_326 = arith.constant 0 : index
    %764 = vector.load %arg7[%763, %c0_325, %c0_326] : memref<8x8x128xf32, #tpu.memory_space<vmem>>, vector<1x8x128xf32>
    %765 = vector.shape_cast %764 : vector<1x8x128xf32> to vector<8x128xf32>
    %766 = vector.shape_cast %762 : vector<8x128xf32> to vector<1x8x128xf32>
    tpu.vector_store %arg7[%763, %c0_325, %c0_326], %766 {strides = array<i32>} : memref<8x8x128xf32, #tpu.memory_space<vmem>>, vector<1x8x128xf32>,
    %c5_i32_327 = arith.constant 5 : i32
    %c1_328 = arith.constant 1 : index
    %c0_329 = arith.constant 0 : index
    %c0_330 = arith.constant 0 : index
    %767 = vector.load %arg8[%c1_328, %c0_329, %c0_330] : memref<2x8x128xf32, #tpu.memory_space<vmem>>, vector<1x8x128xf32>
    %768 = vector.shape_cast %767 : vector<1x8x128xf32> to vector<8x128xf32>
    %c1_331 = arith.constant 1 : index
    %c0_332 = arith.constant 0 : index
    %c0_333 = arith.constant 0 : index
    %769 = vector.load %arg9[%c1_331, %c0_332, %c0_333] : memref<2x8x128xf32, #tpu.memory_space<vmem>>, vector<1x8x128xf32>
    %770 = vector.shape_cast %769 : vector<1x8x128xf32> to vector<8x128xf32>
    %771 = arith.index_cast %c5_i32_327 : i32 to index
    %c0_334 = arith.constant 0 : index
    %c0_335 = arith.constant 0 : index
    %772 = vector.load %arg11[%771, %c0_334, %c0_335] : memref<8x8x512xf32, #tpu.memory_space<vmem>>, vector<1x8x512xf32>
    %773 = vector.shape_cast %772 : vector<1x8x512xf32> to vector<8x512xf32>
    %774 = arith.truncf %768 : vector<8x128xf32> to vector<8x128xbf16>
    %cst_336 = arith.constant dense<0.000000e+00> : vector<8x512xf32>
    %775 = tpu.matmul %774, %466, %cst_336 {dimension_numbers = #tpu.dot_dimension_numbers<[1], [0], [0], [1], [0, 0, 1, 1], [], []>} : vector<8x128xbf16>, vector<128x512xbf16>, vector<8x512xf32> -> vector<8x512xf32>
    %776 = arith.addf %773, %775 : vector<8x512xf32>
    %777 = vector.extract_strided_slice %776 {offsets = [0, 0], sizes = [8, 128], strides = [1, 1]} : vector<8x512xf32> to vector<8x128xf32>
    %778 = arith.negf %777 : vector<8x128xf32>
    %779 = math.exp %778 : vector<8x128xf32>
    %cst_337 = arith.constant 1.000000e+00 : f32
    %780 = vector.broadcast %cst_337 : f32 to vector<8x128xf32>
    %781 = arith.addf %780, %779 : vector<8x128xf32>
    %782 = arith.divf %780, %781 : vector<8x128xf32>
    %783 = vector.extract_strided_slice %776 {offsets = [0, 128], sizes = [8, 128], strides = [1, 1]} : vector<8x512xf32> to vector<8x128xf32>
    %784 = arith.negf %783 : vector<8x128xf32>
    %785 = math.exp %784 : vector<8x128xf32>
    %cst_338 = arith.constant 1.000000e+00 : f32
    %786 = vector.broadcast %cst_338 : f32 to vector<8x128xf32>
    %787 = arith.addf %786, %785 : vector<8x128xf32>
    %788 = arith.divf %786, %787 : vector<8x128xf32>
    %789 = vector.extract_strided_slice %776 {offsets = [0, 256], sizes = [8, 128], strides = [1, 1]} : vector<8x512xf32> to vector<8x128xf32>
    %790 = math.tanh %789 : vector<8x128xf32>
    %791 = vector.extract_strided_slice %776 {offsets = [0, 384], sizes = [8, 128], strides = [1, 1]} : vector<8x512xf32> to vector<8x128xf32>
    %792 = arith.negf %791 : vector<8x128xf32>
    %793 = math.exp %792 : vector<8x128xf32>
    %cst_339 = arith.constant 1.000000e+00 : f32
    %794 = vector.broadcast %cst_339 : f32 to vector<8x128xf32>
    %795 = arith.addf %794, %793 : vector<8x128xf32>
    %796 = arith.divf %794, %795 : vector<8x128xf32>
    %797 = arith.mulf %788, %770 : vector<8x128xf32>
    %798 = arith.mulf %782, %790 : vector<8x128xf32>
    %799 = arith.addf %797, %798 : vector<8x128xf32>
    %800 = math.tanh %799 : vector<8x128xf32>
    %801 = arith.mulf %796, %800 : vector<8x128xf32>
    %802 = arith.index_cast %c5_i32_327 : i32 to index
    %c0_340 = arith.constant 0 : index
    %c0_341 = arith.constant 0 : index
    %803 = vector.load %arg3[%802, %c0_340, %c0_341] : memref<8x8x1xf32, #tpu.memory_space<vmem>>, vector<1x8x1xf32>
    %804 = vector.shape_cast %803 : vector<1x8x1xf32> to vector<8x1xf32>
    %cst_342 = arith.constant 0.000000e+00 : f32
    %805 = vector.broadcast %cst_342 : f32 to vector<8x1xf32>
    %806 = arith.cmpf ogt, %804, %805 : vector<8x1xf32>
    %807 = vector.shape_cast %806 : vector<8x1xi1> to vector<8x1xi1>
    %808 = vector.broadcast %807 : vector<8x1xi1> to vector<8x128xi1>
    %809 = arith.select %808, %801, %768 : vector<8x128xi1>, vector<8x128xf32>
    %810 = vector.shape_cast %806 : vector<8x1xi1> to vector<8x1xi1>
    %811 = vector.broadcast %810 : vector<8x1xi1> to vector<8x128xi1>
    %812 = arith.select %811, %799, %770 : vector<8x128xi1>, vector<8x128xf32>
    %c1_343 = arith.constant 1 : index
    %c0_344 = arith.constant 0 : index
    %c0_345 = arith.constant 0 : index
    %813 = vector.load %arg8[%c1_343, %c0_344, %c0_345] : memref<2x8x128xf32, #tpu.memory_space<vmem>>, vector<1x8x128xf32>
    %814 = vector.shape_cast %813 : vector<1x8x128xf32> to vector<8x128xf32>
    %815 = vector.shape_cast %809 : vector<8x128xf32> to vector<1x8x128xf32>
    tpu.vector_store %arg8[%c1_343, %c0_344, %c0_345], %815 {strides = array<i32>} : memref<2x8x128xf32, #tpu.memory_space<vmem>>, vector<1x8x128xf32>,
    %c1_346 = arith.constant 1 : index
    %c0_347 = arith.constant 0 : index
    %c0_348 = arith.constant 0 : index
    %816 = vector.load %arg9[%c1_346, %c0_347, %c0_348] : memref<2x8x128xf32, #tpu.memory_space<vmem>>, vector<1x8x128xf32>
    %817 = vector.shape_cast %816 : vector<1x8x128xf32> to vector<8x128xf32>
    %818 = vector.shape_cast %812 : vector<8x128xf32> to vector<1x8x128xf32>
    tpu.vector_store %arg9[%c1_346, %c0_347, %c0_348], %818 {strides = array<i32>} : memref<2x8x128xf32, #tpu.memory_space<vmem>>, vector<1x8x128xf32>,
    %cst_349 = arith.constant 0.000000e+00 : f32
    %819 = vector.shape_cast %806 : vector<8x1xi1> to vector<8x1xi1>
    %820 = vector.broadcast %819 : vector<8x1xi1> to vector<8x128xi1>
    %821 = vector.broadcast %cst_349 : f32 to vector<8x128xf32>
    %822 = arith.select %820, %801, %821 : vector<8x128xi1>, vector<8x128xf32>
    %823 = arith.index_cast %c5_i32_327 : i32 to index
    %c0_350 = arith.constant 0 : index
    %c0_351 = arith.constant 0 : index
    %824 = vector.load %arg7[%823, %c0_350, %c0_351] : memref<8x8x128xf32, #tpu.memory_space<vmem>>, vector<1x8x128xf32>
    %825 = vector.shape_cast %824 : vector<1x8x128xf32> to vector<8x128xf32>
    %826 = vector.shape_cast %822 : vector<8x128xf32> to vector<1x8x128xf32>
    tpu.vector_store %arg7[%823, %c0_350, %c0_351], %826 {strides = array<i32>} : memref<8x8x128xf32, #tpu.memory_space<vmem>>, vector<1x8x128xf32>,
    %c6_i32_352 = arith.constant 6 : i32
    %c1_353 = arith.constant 1 : index
    %c0_354 = arith.constant 0 : index
    %c0_355 = arith.constant 0 : index
    %827 = vector.load %arg8[%c1_353, %c0_354, %c0_355] : memref<2x8x128xf32, #tpu.memory_space<vmem>>, vector<1x8x128xf32>
    %828 = vector.shape_cast %827 : vector<1x8x128xf32> to vector<8x128xf32>
    %c1_356 = arith.constant 1 : index
    %c0_357 = arith.constant 0 : index
    %c0_358 = arith.constant 0 : index
    %829 = vector.load %arg9[%c1_356, %c0_357, %c0_358] : memref<2x8x128xf32, #tpu.memory_space<vmem>>, vector<1x8x128xf32>
    %830 = vector.shape_cast %829 : vector<1x8x128xf32> to vector<8x128xf32>
    %831 = arith.index_cast %c6_i32_352 : i32 to index
    %c0_359 = arith.constant 0 : index
    %c0_360 = arith.constant 0 : index
    %832 = vector.load %arg11[%831, %c0_359, %c0_360] : memref<8x8x512xf32, #tpu.memory_space<vmem>>, vector<1x8x512xf32>
    %833 = vector.shape_cast %832 : vector<1x8x512xf32> to vector<8x512xf32>
    %834 = arith.truncf %828 : vector<8x128xf32> to vector<8x128xbf16>
    %cst_361 = arith.constant dense<0.000000e+00> : vector<8x512xf32>
    %835 = tpu.matmul %834, %466, %cst_361 {dimension_numbers = #tpu.dot_dimension_numbers<[1], [0], [0], [1], [0, 0, 1, 1], [], []>} : vector<8x128xbf16>, vector<128x512xbf16>, vector<8x512xf32> -> vector<8x512xf32>
    %836 = arith.addf %833, %835 : vector<8x512xf32>
    %837 = vector.extract_strided_slice %836 {offsets = [0, 0], sizes = [8, 128], strides = [1, 1]} : vector<8x512xf32> to vector<8x128xf32>
    %838 = arith.negf %837 : vector<8x128xf32>
    %839 = math.exp %838 : vector<8x128xf32>
    %cst_362 = arith.constant 1.000000e+00 : f32
    %840 = vector.broadcast %cst_362 : f32 to vector<8x128xf32>
    %841 = arith.addf %840, %839 : vector<8x128xf32>
    %842 = arith.divf %840, %841 : vector<8x128xf32>
    %843 = vector.extract_strided_slice %836 {offsets = [0, 128], sizes = [8, 128], strides = [1, 1]} : vector<8x512xf32> to vector<8x128xf32>
    %844 = arith.negf %843 : vector<8x128xf32>
    %845 = math.exp %844 : vector<8x128xf32>
    %cst_363 = arith.constant 1.000000e+00 : f32
    %846 = vector.broadcast %cst_363 : f32 to vector<8x128xf32>
    %847 = arith.addf %846, %845 : vector<8x128xf32>
    %848 = arith.divf %846, %847 : vector<8x128xf32>
    %849 = vector.extract_strided_slice %836 {offsets = [0, 256], sizes = [8, 128], strides = [1, 1]} : vector<8x512xf32> to vector<8x128xf32>
    %850 = math.tanh %849 : vector<8x128xf32>
    %851 = vector.extract_strided_slice %836 {offsets = [0, 384], sizes = [8, 128], strides = [1, 1]} : vector<8x512xf32> to vector<8x128xf32>
    %852 = arith.negf %851 : vector<8x128xf32>
    %853 = math.exp %852 : vector<8x128xf32>
    %cst_364 = arith.constant 1.000000e+00 : f32
    %854 = vector.broadcast %cst_364 : f32 to vector<8x128xf32>
    %855 = arith.addf %854, %853 : vector<8x128xf32>
    %856 = arith.divf %854, %855 : vector<8x128xf32>
    %857 = arith.mulf %848, %830 : vector<8x128xf32>
    %858 = arith.mulf %842, %850 : vector<8x128xf32>
    %859 = arith.addf %857, %858 : vector<8x128xf32>
    %860 = math.tanh %859 : vector<8x128xf32>
    %861 = arith.mulf %856, %860 : vector<8x128xf32>
    %862 = arith.index_cast %c6_i32_352 : i32 to index
    %c0_365 = arith.constant 0 : index
    %c0_366 = arith.constant 0 : index
    %863 = vector.load %arg3[%862, %c0_365, %c0_366] : memref<8x8x1xf32, #tpu.memory_space<vmem>>, vector<1x8x1xf32>
    %864 = vector.shape_cast %863 : vector<1x8x1xf32> to vector<8x1xf32>
    %cst_367 = arith.constant 0.000000e+00 : f32
    %865 = vector.broadcast %cst_367 : f32 to vector<8x1xf32>
    %866 = arith.cmpf ogt, %864, %865 : vector<8x1xf32>
    %867 = vector.shape_cast %866 : vector<8x1xi1> to vector<8x1xi1>
    %868 = vector.broadcast %867 : vector<8x1xi1> to vector<8x128xi1>
    %869 = arith.select %868, %861, %828 : vector<8x128xi1>, vector<8x128xf32>
    %870 = vector.shape_cast %866 : vector<8x1xi1> to vector<8x1xi1>
    %871 = vector.broadcast %870 : vector<8x1xi1> to vector<8x128xi1>
    %872 = arith.select %871, %859, %830 : vector<8x128xi1>, vector<8x128xf32>
    %c1_368 = arith.constant 1 : index
    %c0_369 = arith.constant 0 : index
    %c0_370 = arith.constant 0 : index
    %873 = vector.load %arg8[%c1_368, %c0_369, %c0_370] : memref<2x8x128xf32, #tpu.memory_space<vmem>>, vector<1x8x128xf32>
    %874 = vector.shape_cast %873 : vector<1x8x128xf32> to vector<8x128xf32>
    %875 = vector.shape_cast %869 : vector<8x128xf32> to vector<1x8x128xf32>
    tpu.vector_store %arg8[%c1_368, %c0_369, %c0_370], %875 {strides = array<i32>} : memref<2x8x128xf32, #tpu.memory_space<vmem>>, vector<1x8x128xf32>,
    %c1_371 = arith.constant 1 : index
    %c0_372 = arith.constant 0 : index
    %c0_373 = arith.constant 0 : index
    %876 = vector.load %arg9[%c1_371, %c0_372, %c0_373] : memref<2x8x128xf32, #tpu.memory_space<vmem>>, vector<1x8x128xf32>
    %877 = vector.shape_cast %876 : vector<1x8x128xf32> to vector<8x128xf32>
    %878 = vector.shape_cast %872 : vector<8x128xf32> to vector<1x8x128xf32>
    tpu.vector_store %arg9[%c1_371, %c0_372, %c0_373], %878 {strides = array<i32>} : memref<2x8x128xf32, #tpu.memory_space<vmem>>, vector<1x8x128xf32>,
    %cst_374 = arith.constant 0.000000e+00 : f32
    %879 = vector.shape_cast %866 : vector<8x1xi1> to vector<8x1xi1>
    %880 = vector.broadcast %879 : vector<8x1xi1> to vector<8x128xi1>
    %881 = vector.broadcast %cst_374 : f32 to vector<8x128xf32>
    %882 = arith.select %880, %861, %881 : vector<8x128xi1>, vector<8x128xf32>
    %883 = arith.index_cast %c6_i32_352 : i32 to index
    %c0_375 = arith.constant 0 : index
    %c0_376 = arith.constant 0 : index
    %884 = vector.load %arg7[%883, %c0_375, %c0_376] : memref<8x8x128xf32, #tpu.memory_space<vmem>>, vector<1x8x128xf32>
    %885 = vector.shape_cast %884 : vector<1x8x128xf32> to vector<8x128xf32>
    %886 = vector.shape_cast %882 : vector<8x128xf32> to vector<1x8x128xf32>
    tpu.vector_store %arg7[%883, %c0_375, %c0_376], %886 {strides = array<i32>} : memref<8x8x128xf32, #tpu.memory_space<vmem>>, vector<1x8x128xf32>,
    %c7_i32_377 = arith.constant 7 : i32
    %c1_378 = arith.constant 1 : index
    %c0_379 = arith.constant 0 : index
    %c0_380 = arith.constant 0 : index
    %887 = vector.load %arg8[%c1_378, %c0_379, %c0_380] : memref<2x8x128xf32, #tpu.memory_space<vmem>>, vector<1x8x128xf32>
    %888 = vector.shape_cast %887 : vector<1x8x128xf32> to vector<8x128xf32>
    %c1_381 = arith.constant 1 : index
    %c0_382 = arith.constant 0 : index
    %c0_383 = arith.constant 0 : index
    %889 = vector.load %arg9[%c1_381, %c0_382, %c0_383] : memref<2x8x128xf32, #tpu.memory_space<vmem>>, vector<1x8x128xf32>
    %890 = vector.shape_cast %889 : vector<1x8x128xf32> to vector<8x128xf32>
    %891 = arith.index_cast %c7_i32_377 : i32 to index
    %c0_384 = arith.constant 0 : index
    %c0_385 = arith.constant 0 : index
    %892 = vector.load %arg11[%891, %c0_384, %c0_385] : memref<8x8x512xf32, #tpu.memory_space<vmem>>, vector<1x8x512xf32>
    %893 = vector.shape_cast %892 : vector<1x8x512xf32> to vector<8x512xf32>
    %894 = arith.truncf %888 : vector<8x128xf32> to vector<8x128xbf16>
    %cst_386 = arith.constant dense<0.000000e+00> : vector<8x512xf32>
    %895 = tpu.matmul %894, %466, %cst_386 {dimension_numbers = #tpu.dot_dimension_numbers<[1], [0], [0], [1], [0, 0, 1, 1], [], []>} : vector<8x128xbf16>, vector<128x512xbf16>, vector<8x512xf32> -> vector<8x512xf32>
    %896 = arith.addf %893, %895 : vector<8x512xf32>
    %897 = vector.extract_strided_slice %896 {offsets = [0, 0], sizes = [8, 128], strides = [1, 1]} : vector<8x512xf32> to vector<8x128xf32>
    %898 = arith.negf %897 : vector<8x128xf32>
    %899 = math.exp %898 : vector<8x128xf32>
    %cst_387 = arith.constant 1.000000e+00 : f32
    %900 = vector.broadcast %cst_387 : f32 to vector<8x128xf32>
    %901 = arith.addf %900, %899 : vector<8x128xf32>
    %902 = arith.divf %900, %901 : vector<8x128xf32>
    %903 = vector.extract_strided_slice %896 {offsets = [0, 128], sizes = [8, 128], strides = [1, 1]} : vector<8x512xf32> to vector<8x128xf32>
    %904 = arith.negf %903 : vector<8x128xf32>
    %905 = math.exp %904 : vector<8x128xf32>
    %cst_388 = arith.constant 1.000000e+00 : f32
    %906 = vector.broadcast %cst_388 : f32 to vector<8x128xf32>
    %907 = arith.addf %906, %905 : vector<8x128xf32>
    %908 = arith.divf %906, %907 : vector<8x128xf32>
    %909 = vector.extract_strided_slice %896 {offsets = [0, 256], sizes = [8, 128], strides = [1, 1]} : vector<8x512xf32> to vector<8x128xf32>
    %910 = math.tanh %909 : vector<8x128xf32>
    %911 = vector.extract_strided_slice %896 {offsets = [0, 384], sizes = [8, 128], strides = [1, 1]} : vector<8x512xf32> to vector<8x128xf32>
    %912 = arith.negf %911 : vector<8x128xf32>
    %913 = math.exp %912 : vector<8x128xf32>
    %cst_389 = arith.constant 1.000000e+00 : f32
    %914 = vector.broadcast %cst_389 : f32 to vector<8x128xf32>
    %915 = arith.addf %914, %913 : vector<8x128xf32>
    %916 = arith.divf %914, %915 : vector<8x128xf32>
    %917 = arith.mulf %908, %890 : vector<8x128xf32>
    %918 = arith.mulf %902, %910 : vector<8x128xf32>
    %919 = arith.addf %917, %918 : vector<8x128xf32>
    %920 = math.tanh %919 : vector<8x128xf32>
    %921 = arith.mulf %916, %920 : vector<8x128xf32>
    %922 = arith.index_cast %c7_i32_377 : i32 to index
    %c0_390 = arith.constant 0 : index
    %c0_391 = arith.constant 0 : index
    %923 = vector.load %arg3[%922, %c0_390, %c0_391] : memref<8x8x1xf32, #tpu.memory_space<vmem>>, vector<1x8x1xf32>
    %924 = vector.shape_cast %923 : vector<1x8x1xf32> to vector<8x1xf32>
    %cst_392 = arith.constant 0.000000e+00 : f32
    %925 = vector.broadcast %cst_392 : f32 to vector<8x1xf32>
    %926 = arith.cmpf ogt, %924, %925 : vector<8x1xf32>
    %927 = vector.shape_cast %926 : vector<8x1xi1> to vector<8x1xi1>
    %928 = vector.broadcast %927 : vector<8x1xi1> to vector<8x128xi1>
    %929 = arith.select %928, %921, %888 : vector<8x128xi1>, vector<8x128xf32>
    %930 = vector.shape_cast %926 : vector<8x1xi1> to vector<8x1xi1>
    %931 = vector.broadcast %930 : vector<8x1xi1> to vector<8x128xi1>
    %932 = arith.select %931, %919, %890 : vector<8x128xi1>, vector<8x128xf32>
    %c1_393 = arith.constant 1 : index
    %c0_394 = arith.constant 0 : index
    %c0_395 = arith.constant 0 : index
    %933 = vector.load %arg8[%c1_393, %c0_394, %c0_395] : memref<2x8x128xf32, #tpu.memory_space<vmem>>, vector<1x8x128xf32>
    %934 = vector.shape_cast %933 : vector<1x8x128xf32> to vector<8x128xf32>
    %935 = vector.shape_cast %929 : vector<8x128xf32> to vector<1x8x128xf32>
    tpu.vector_store %arg8[%c1_393, %c0_394, %c0_395], %935 {strides = array<i32>} : memref<2x8x128xf32, #tpu.memory_space<vmem>>, vector<1x8x128xf32>,
    %c1_396 = arith.constant 1 : index
    %c0_397 = arith.constant 0 : index
    %c0_398 = arith.constant 0 : index
    %936 = vector.load %arg9[%c1_396, %c0_397, %c0_398] : memref<2x8x128xf32, #tpu.memory_space<vmem>>, vector<1x8x128xf32>
    %937 = vector.shape_cast %936 : vector<1x8x128xf32> to vector<8x128xf32>
    %938 = vector.shape_cast %932 : vector<8x128xf32> to vector<1x8x128xf32>
    tpu.vector_store %arg9[%c1_396, %c0_397, %c0_398], %938 {strides = array<i32>} : memref<2x8x128xf32, #tpu.memory_space<vmem>>, vector<1x8x128xf32>,
    %cst_399 = arith.constant 0.000000e+00 : f32
    %939 = vector.shape_cast %926 : vector<8x1xi1> to vector<8x1xi1>
    %940 = vector.broadcast %939 : vector<8x1xi1> to vector<8x128xi1>
    %941 = vector.broadcast %cst_399 : f32 to vector<8x128xf32>
    %942 = arith.select %940, %921, %941 : vector<8x128xi1>, vector<8x128xf32>
    %943 = arith.index_cast %c7_i32_377 : i32 to index
    %c0_400 = arith.constant 0 : index
    %c0_401 = arith.constant 0 : index
    %944 = vector.load %arg7[%943, %c0_400, %c0_401] : memref<8x8x128xf32, #tpu.memory_space<vmem>>, vector<1x8x128xf32>
    %945 = vector.shape_cast %944 : vector<1x8x128xf32> to vector<8x128xf32>
    %946 = vector.shape_cast %942 : vector<8x128xf32> to vector<1x8x128xf32>
    tpu.vector_store %arg7[%943, %c0_400, %c0_401], %946 {strides = array<i32>} : memref<8x8x128xf32, #tpu.memory_space<vmem>>, vector<1x8x128xf32>,
    %c8_i32_402 = arith.constant 8 : i32
    return
  }
  func.func @transform_0(%arg0: i32, %arg1: i32) -> (i32, i32, i32) {
    %c0_i32 = arith.constant 0 : i32
    %c0_i32_0 = arith.constant 0 : i32
    return %arg1, %arg0, %c0_i32 : i32, i32, i32
  }
  func.func @transform_1(%arg0: i32, %arg1: i32) -> (i32, i32, i32) {
    %c0_i32 = arith.constant 0 : i32
    %c0_i32_0 = arith.constant 0 : i32
    return %arg1, %arg0, %c0_i32 : i32, i32, i32
  }
  func.func @transform_2(%arg0: i32, %arg1: i32) -> (i32, i32, i32) {
    %c0_i32 = arith.constant 0 : i32
    %c0_i32_0 = arith.constant 0 : i32
    %c0_i32_1 = arith.constant 0 : i32
    %c0_i32_2 = arith.constant 0 : i32
    return %c0_i32, %c0_i32_0, %c0_i32_1 : i32, i32, i32
  }
  func.func @transform_3(%arg0: i32, %arg1: i32) -> (i32, i32, i32) {
    %c0_i32 = arith.constant 0 : i32
    %c0_i32_0 = arith.constant 0 : i32
    %c0_i32_1 = arith.constant 0 : i32
    %c0_i32_2 = arith.constant 0 : i32
    return %c0_i32, %c0_i32_0, %c0_i32_1 : i32, i32, i32
  }
  func.func @transform_4(%arg0: i32, %arg1: i32) -> (i32, i32, i32) {
    %c0_i32 = arith.constant 0 : i32
    %c0_i32_0 = arith.constant 0 : i32
    %c0_i32_1 = arith.constant 0 : i32
    %c0_i32_2 = arith.constant 0 : i32
    return %c0_i32, %c0_i32_0, %c0_i32_1 : i32, i32, i32
  }
  func.func @transform_5(%arg0: i32, %arg1: i32) -> (i32, i32, i32) {
    %c0_i32 = arith.constant 0 : i32
    %c0_i32_0 = arith.constant 0 : i32
    return %arg1, %arg0, %c0_i32 : i32, i32, i32
  }
}

</mosaic_0001>

<llo_original>
// kernel: tpu_custom_call.1
$region0: #{tpu_custom_call.1}
  #allocation0 [shape = 'u32[]', space=smem, size = 0x4, offset = 0x4, fixed_abs, tag = 'smem constant byte address 0x4 - core index']
  #allocation1 [shape = 'u32[144,128]{1,0:T(1,128)}', space=vmem, size = 0x12000, scoped, tag = 'internal scratch']
  #allocation2 [shape = 'f32[2,8,128]{2,1,0:T(8,128)}', space=vmem, size = 0x2000, scoped, tag = 'scratch operand']
  #allocation3 [shape = 'f32[2,8,128]{2,1,0:T(8,128)}', space=vmem, size = 0x2000, scoped, tag = 'scratch operand']
  #allocation4 [shape = 'f32[8,8,128]{2,1,0:T(8,128)}', space=vmem, size = 0x8000, scoped, tag = 'scratch operand']
  #allocation5 [shape = 'f32[8,8,512]{2,1,0:T(8,128)}', space=vmem, size = 0x20000, scoped, tag = 'scratch operand']
  %s0 = inlined_call_operand.hbm [shape: f32[8,8,512], index: 0, kind: input, shape index: {}]
  %s1 = inlined_call_operand.vmem [shape: f32[8,8,1], index: 1, kind: input, shape index: {}]
  %s2 = inlined_call_operand.hbm [shape: bf16[2,128,512], index: 2, kind: input, shape index: {}]
  %s3 = inlined_call_operand.hbm [shape: bf16[2,128,512], index: 3, kind: input, shape index: {}]
  %s4 = inlined_call_operand.vmem [shape: f32[2,1,512], index: 4, kind: input, shape index: {}]
  %s5 = inlined_call_operand.hbm [shape: f32[8,8,128], index: 5, kind: output, shape index: {}]
  %s6 = sld [smem:[#allocation0]]
  $region46: #{tpu_custom_call.1} parent=0
    _
  %s8 = ssub.s32 1, %s6
  %s9 = scalar_select 0, %s8, %s6
  $region1: #{tpu_custom_call.1} parent=0
    #allocation6 [shape = 'u8[131072]{0}', space=vmem, size = 0x20000, scoped, tag = 'input window, operand 0, single buffered']
    #allocation7 [shape = 's32[1]{0}', space=sflag, size = 0x4, scoped, tag = 'scoped memory for tpu_custom_call.1']
    #allocation8 [shape = 's32[1]{0}', space=sflag, size = 0x4, scoped, tag = 'scoped memory for tpu_custom_call.1']
    #allocation9 [shape = 'u8[262144]{0}', space=vmem, size = 0x40000, scoped, tag = 'input window, operand 2, single buffered']
    #allocation10 [shape = 's32[1]{0}', space=sflag, size = 0x4, scoped, tag = 'scoped memory for tpu_custom_call.1']
    #allocation11 [shape = 'u8[262144]{0}', space=vmem, size = 0x40000, scoped, tag = 'input window, operand 3, single buffered']
    #allocation12 [shape = 'u8[32768]{0}', space=vmem, size = 0x8000, scoped, tag = 'output window, operand 0, single buffered']
    %10 = vsyncpa [#allocation7], 0
    %11 = vsyncpa [#allocation10], 0
    %12 = vsyncpa [#allocation8], 0
    // Predicated region
    $region2: #{tpu_custom_call.1} parent=1 // pred_check
      _
    $region3: #{tpu_custom_call.1} parent=1 // pred_check_branch
      %14 = sbr.rel (0) target = $region5
    $region4: #{tpu_custom_call.1} parent=1 // pred_region
      %s16 = ssub.s32 4096, 4096
      %17 = vsyncadd [#allocation7], %s16
      %s18 = sshll.u32 [#allocation6], 4
      %s19 = int_to_ptr.vmem [resolvable:$true] %s18
      %24 = dma.hbm_to_vmem [thread:$0]  %s0, 4096, %s19, [#allocation7], 512, 512, 32
    $region5: #{tpu_custom_call.1} parent=1 // pred_fallthru
      _
    // Predicated region
    $region6: #{tpu_custom_call.1} parent=1 // pred_check
      _
    $region7: #{tpu_custom_call.1} parent=1 // pred_check_branch
      %26 = sbr.rel (0) target = $region9
    $region8: #{tpu_custom_call.1} parent=1 // pred_region
      _
    $region9: #{tpu_custom_call.1} parent=1 // pred_fallthru
      _
    // Predicated region
    $region10: #{tpu_custom_call.1} parent=1 // pred_check
      _
    $region11: #{tpu_custom_call.1} parent=1 // pred_check_branch
      %28 = sbr.rel (0) target = $region13
    $region12: #{tpu_custom_call.1} parent=1 // pred_region
      %s30 = ssub.s32 8192, 8192
      %31 = vsyncadd [#allocation10], %s30
      %s32 = sshll.u32 [#allocation9], 4
      %s33 = int_to_ptr.vmem [resolvable:$true] %s32
      %38 = dma.hbm_to_vmem [thread:$0]  %s2, 8192, %s33, [#allocation10], 256, 256, 16
    $region13: #{tpu_custom_call.1} parent=1 // pred_fallthru
      _
    // Predicated region
    $region14: #{tpu_custom_call.1} parent=1 // pred_check
      _
    $region15: #{tpu_custom_call.1} parent=1 // pred_check_branch
      %40 = sbr.rel (0) target = $region17
    $region16: #{tpu_custom_call.1} parent=1 // pred_region
      %s42 = ssub.s32 8192, 8192
      %43 = vsyncadd [#allocation10], %s42
      %s44 = sshll.u32 [#allocation11], 4
      %s45 = int_to_ptr.vmem [resolvable:$true] %s44
      %50 = dma.hbm_to_vmem [thread:$0]  %s3, 8192, %s45, [#allocation10], 256, 256, 16
    $region17: #{tpu_custom_call.1} parent=1 // pred_fallthru
      _
    // Predicated region
    $region18: #{tpu_custom_call.1} parent=1 // pred_check
      _
    $region19: #{tpu_custom_call.1} parent=1 // pred_check_branch
      %52 = sbr.rel (0) target = $region21
    $region20: #{tpu_custom_call.1} parent=1 // pred_region
      _
    $region21: #{tpu_custom_call.1} parent=1 // pred_fallthru
      _
    // Predicated region
    $region22: #{tpu_custom_call.1} parent=1 // pred_check
      _
    $region23: #{tpu_custom_call.1} parent=1 // pred_check_branch
      %54 = sbr.rel (0) target = $region25
    $region24: #{tpu_custom_call.1} parent=1 // pred_region
      %55 = dma.done [#allocation7], 4096
    $region25: #{tpu_custom_call.1} parent=1 // pred_fallthru
      _
    // Predicated region
    $region26: #{tpu_custom_call.1} parent=1 // pred_check
      _
    $region27: #{tpu_custom_call.1} parent=1 // pred_check_branch
      %57 = sbr.rel (0) target = $region29
    $region28: #{tpu_custom_call.1} parent=1 // pred_region
      %58 = dma.done [#allocation10], 8192
    $region29: #{tpu_custom_call.1} parent=1 // pred_fallthru
      _
    // Predicated region
    $region30: #{tpu_custom_call.1} parent=1 // pred_check
      _
    $region31: #{tpu_custom_call.1} parent=1 // pred_check_branch
      %60 = sbr.rel (0) target = $region33
    $region32: #{tpu_custom_call.1} parent=1 // pred_region
      %61 = dma.done [#allocation10], 8192
    $region33: #{tpu_custom_call.1} parent=1 // pred_fallthru
      _
    %p63 = scmp.eq.s32.totalorder 0, 0
    // Predicated region
    $region34: #{tpu_custom_call.1} parent=1 // pred_check
      %p64 = pneg %p63
    $region35: #{tpu_custom_call.1} parent=1 // pred_check_branch
      %66 = sbr.rel (%p64) target = $region37
    $region36: #{tpu_custom_call.1} parent=1 // pred_region
      %67 = vst [vmem:[#allocation2] sm:$0xff] 0.0
      %68 = vst [vmem:[#allocation2 + $0x8] sm:$0xff] 0.0
      %69 = vst [vmem:[#allocation3] sm:$0xff] 0.0
      %70 = vst [vmem:[#allocation3 + $0x8] sm:$0xff] 0.0
    $region37: #{tpu_custom_call.1} parent=1 // pred_fallthru
      _
    %v71 = vld [vmem:[#allocation9] sm:$0xff]
    %v72 = vld [vmem:[#allocation9 + $0x8] sm:$0xff]
    %v73 = vld [vmem:[#allocation9 + $0x10] sm:$0xff]
    %v74 = vld [vmem:[#allocation9 + $0x18] sm:$0xff]
    %v75 = vld [vmem:[#allocation9 + $0x20] sm:$0xff]
    %v76 = vld [vmem:[#allocation9 + $0x28] sm:$0xff]
    %v77 = vld [vmem:[#allocation9 + $0x30] sm:$0xff]
    %v78 = vld [vmem:[#allocation9 + $0x38] sm:$0xff]
    %v79 = vld [vmem:[#allocation9 + $0x40] sm:$0xff]
    %v80 = vld [vmem:[#allocation9 + $0x48] sm:$0xff]
    %v81 = vld [vmem:[#allocation9 + $0x50] sm:$0xff]
    %v82 = vld [vmem:[#allocation9 + $0x58] sm:$0xff]
    %v83 = vld [vmem:[#allocation9 + $0x60] sm:$0xff]
    %v84 = vld [vmem:[#allocation9 + $0x68] sm:$0xff]
    %v85 = vld [vmem:[#allocation9 + $0x70] sm:$0xff]
    %v86 = vld [vmem:[#allocation9 + $0x78] sm:$0xff]
    %v87 = vld [vmem:[#allocation9 + $0x80] sm:$0xff]
    %v88 = vld [vmem:[#allocation9 + $0x88] sm:$0xff]
    %v89 = vld [vmem:[#allocation9 + $0x90] sm:$0xff]
    %v90 = vld [vmem:[#allocation9 + $0x98] sm:$0xff]
    %v91 = vld [vmem:[#allocation9 + $0xa0] sm:$0xff]
    %v92 = vld [vmem:[#allocation9 + $0xa8] sm:$0xff]
    %v93 = vld [vmem:[#allocation9 + $0xb0] sm:$0xff]
    %v94 = vld [vmem:[#allocation9 + $0xb8] sm:$0xff]
    %v95 = vld [vmem:[#allocation9 + $0xc0] sm:$0xff]
    %v96 = vld [vmem:[#allocation9 + $0xc8] sm:$0xff]
    %v97 = vld [vmem:[#allocation9 + $0xd0] sm:$0xff]
    %v98 = vld [vmem:[#allocation9 + $0xd8] sm:$0xff]
    %v99 = vld [vmem:[#allocation9 + $0xe0] sm:$0xff]
    %v100 = vld [vmem:[#allocation9 + $0xe8] sm:$0xff]
    %v101 = vld [vmem:[#allocation9 + $0xf0] sm:$0xff]
    %v102 = vld [vmem:[#allocation9 + $0xf8] sm:$0xff]
    %v103 = vld [vmem:[#allocation2] sm:$0xff]
    %v104 = vld [vmem:[#allocation3] sm:$0xff]
    %v105 = vld [vmem:[#allocation6] sm:$0xff]
    %v106 = vld [vmem:[#allocation6 + $0x8] sm:$0xff]
    %v107 = vld [vmem:[#allocation6 + $0x10] sm:$0xff]
    %v108 = vld [vmem:[#allocation6 + $0x18] sm:$0xff]
    %v109 = vpack.c.bf16 %v103, %v103
    %v142 = vunpack.c.l.b16 %v71
    %v143 = vunpack.c.h.b16 %v71
    %v144 = vunpack.c.l.b16 %v72
    %v145 = vunpack.c.h.b16 %v72
    %v146 = vunpack.c.l.b16 %v73
    %v147 = vunpack.c.h.b16 %v73
    %v148 = vunpack.c.l.b16 %v74
    %v149 = vunpack.c.h.b16 %v74
    %v150 = vunpack.c.l.b16 %v75
    %v151 = vunpack.c.h.b16 %v75
    %v152 = vunpack.c.l.b16 %v76
    %v153 = vunpack.c.h.b16 %v76
    %v154 = vunpack.c.l.b16 %v77
    %v155 = vunpack.c.h.b16 %v77
    %v156 = vunpack.c.l.b16 %v78
    %v157 = vunpack.c.h.b16 %v78
    %v158 = vunpack.c.l.b16 %v79
    %v159 = vunpack.c.h.b16 %v79
    %v160 = vunpack.c.l.b16 %v80
    %v161 = vunpack.c.h.b16 %v80
    %v162 = vunpack.c.l.b16 %v81
    %v163 = vunpack.c.h.b16 %v81
    %v164 = vunpack.c.l.b16 %v82
    %v165 = vunpack.c.h.b16 %v82
    %v166 = vunpack.c.l.b16 %v83
    %v167 = vunpack.c.h.b16 %v83
    %v168 = vunpack.c.l.b16 %v84
    %v169 = vunpack.c.h.b16 %v84
    %v170 = vunpack.c.l.b16 %v85
    %v171 = vunpack.c.h.b16 %v85
    %v172 = vunpack.c.l.b16 %v86
    %v173 = vunpack.c.h.b16 %v86
    %v174 = vunpack.c.l.b16 %v87
    %v175 = vunpack.c.h.b16 %v87
    %v176 = vunpack.c.l.b16 %v88
    %v177 = vunpack.c.h.b16 %v88
    %v178 = vunpack.c.l.b16 %v89
    %v179 = vunpack.c.h.b16 %v89
    %v180 = vunpack.c.l.b16 %v90
    %v181 = vunpack.c.h.b16 %v90
    %v182 = vunpack.c.l.b16 %v91
    %v183 = vunpack.c.h.b16 %v91
    %v184 = vunpack.c.l.b16 %v92
    %v185 = vunpack.c.h.b16 %v92
    %v186 = vunpack.c.l.b16 %v93
    %v187 = vunpack.c.h.b16 %v93
    %v188 = vunpack.c.l.b16 %v94
    %v189 = vunpack.c.h.b16 %v94
    %v190 = vunpack.c.l.b16 %v95
    %v191 = vunpack.c.h.b16 %v95
    %v192 = vunpack.c.l.b16 %v96
    %v193 = vunpack.c.h.b16 %v96
    %v194 = vunpack.c.l.b16 %v97
    %v195 = vunpack.c.h.b16 %v97
    %v196 = vunpack.c.l.b16 %v98
    %v197 = vunpack.c.h.b16 %v98
    %v198 = vunpack.c.l.b16 %v99
    %v199 = vunpack.c.h.b16 %v99
    %v200 = vunpack.c.l.b16 %v100
    %v201 = vunpack.c.h.b16 %v100
    %v202 = vunpack.c.l.b16 %v101
    %v203 = vunpack.c.h.b16 %v101
    %v204 = vunpack.c.l.b16 %v102
    %v205 = vunpack.c.h.b16 %v102
    %v206 = vpack.c.b16 %v146, %v142
    %v207 = vpack.c.b16 %v147, %v143
    %v208 = vpack.c.b16 %v148, %v144
    %v209 = vpack.c.b16 %v149, %v145
    %v210 = vpack.c.b16 %v154, %v150
    %v211 = vpack.c.b16 %v155, %v151
    %v212 = vpack.c.b16 %v156, %v152
    %v213 = vpack.c.b16 %v157, %v153
    %v214 = vpack.c.b16 %v162, %v158
    %v215 = vpack.c.b16 %v163, %v159
    %v216 = vpack.c.b16 %v164, %v160
    %v217 = vpack.c.b16 %v165, %v161
    %v218 = vpack.c.b16 %v170, %v166
    %v219 = vpack.c.b16 %v171, %v167
    %v220 = vpack.c.b16 %v172, %v168
    %v221 = vpack.c.b16 %v173, %v169
    %v222 = vpack.c.b16 %v178, %v174
    %v223 = vpack.c.b16 %v179, %v175
    %v224 = vpack.c.b16 %v180, %v176
    %v225 = vpack.c.b16 %v181, %v177
    %v226 = vpack.c.b16 %v186, %v182
    %v227 = vpack.c.b16 %v187, %v183
    %v228 = vpack.c.b16 %v188, %v184
    %v229 = vpack.c.b16 %v189, %v185
    %v230 = vpack.c.b16 %v194, %v190
    %v231 = vpack.c.b16 %v195, %v191
    %v232 = vpack.c.b16 %v196, %v192
    %v233 = vpack.c.b16 %v197, %v193
    %v234 = vpack.c.b16 %v202, %v198
    %v235 = vpack.c.b16 %v203, %v199
    %v236 = vpack.c.b16 %v204, %v200
    %v237 = vpack.c.b16 %v205, %v201
    %270 = vmatprep.subr.bf16.mxu0 %v207
    %271 = vmatpush1.bf16.msra.mxu0 %v206
    %272 = vmatprep.subr.bf16.mxu0 %v211
    %273 = vmatpush1.bf16.msra.mxu0 %v210
    %274 = vmatprep.subr.bf16.mxu0 %v215
    %275 = vmatpush1.bf16.msra.mxu0 %v214
    %276 = vmatprep.subr.bf16.mxu0 %v219
    %277 = vmatpush1.bf16.msra.mxu0 %v218
    %278 = vmatprep.subr.bf16.mxu0 %v223
    %279 = vmatpush1.bf16.msra.mxu0 %v222
    %280 = vmatprep.subr.bf16.mxu0 %v227
    %281 = vmatpush1.bf16.msra.mxu0 %v226
    %282 = vmatprep.subr.bf16.mxu0 %v231
    %283 = vmatpush1.bf16.msra.mxu0 %v230
    %284 = vmatprep.subr.bf16.mxu0 %v235
    %285 = vmatpush1.bf16.msra.mxu0 %v234
    %286 = vmatprep.subr.bf16.mxu0 0
    %287 = vmatpush1.bf16.msra.mxu0 0
    %288 = vmatprep.subr.bf16.mxu0 0
    %289 = vmatpush1.bf16.msra.mxu0 0
    %290 = vmatprep.subr.bf16.mxu0 0
    %291 = vmatpush1.bf16.msra.mxu0 0
    %292 = vmatprep.subr.bf16.mxu0 0
    %293 = vmatpush1.bf16.msra.mxu0 0
    %294 = vmatprep.subr.bf16.mxu0 0
    %295 = vmatpush1.bf16.msra.mxu0 0
    %296 = vmatprep.subr.bf16.mxu0 0
    %297 = vmatpush1.bf16.msra.mxu0 0
    %298 = vmatprep.subr.bf16.mxu0 0
    %299 = vmatpush1.bf16.msra.mxu0 0
    %300 = vmatprep.subr.bf16.mxu0 0
    %301 = vmatpush1.bf16.msra.mxu0 0
    %302 = vmatprep.mubr.bf16.mxu0 0
    %303 = vmatmul.mubr.bf16.gmra.mrb[0].mxu0 %v109
    %v304 = vpop.f32.mrb[0].mxu0
    %v305 = vadd.f32 0.0, %v304
    %v306 = vpop.f32.mrb[0].mxu0
    %v307 = vadd.f32 0.0, %v306
    %v308 = vpop.f32.mrb[0].mxu0
    %v309 = vpop.f32.mrb[0].mxu0
    %310 = vdwg.mxu0
    %311 = vmatprep.subr.bf16.mxu0 %v209
    %312 = vmatpush1.bf16.msra.mxu0 %v208
    %313 = vmatprep.subr.bf16.mxu0 %v213
    %314 = vmatpush1.bf16.msra.mxu0 %v212
    %315 = vmatprep.subr.bf16.mxu0 %v217
    %316 = vmatpush1.bf16.msra.mxu0 %v216
    %317 = vmatprep.subr.bf16.mxu0 %v221
    %318 = vmatpush1.bf16.msra.mxu0 %v220
    %319 = vmatprep.subr.bf16.mxu0 %v225
    %320 = vmatpush1.bf16.msra.mxu0 %v224
    %321 = vmatprep.subr.bf16.mxu0 %v229
    %322 = vmatpush1.bf16.msra.mxu0 %v228
    %323 = vmatprep.subr.bf16.mxu0 %v233
    %324 = vmatpush1.bf16.msra.mxu0 %v232
    %325 = vmatprep.subr.bf16.mxu0 %v237
    %326 = vmatpush1.bf16.msra.mxu0 %v236
    %327 = vmatprep.subr.bf16.mxu0 0
    %328 = vmatpush1.bf16.msra.mxu0 0
    %329 = vmatprep.subr.bf16.mxu0 0
    %330 = vmatpush1.bf16.msra.mxu0 0
    %331 = vmatprep.subr.bf16.mxu0 0
    %332 = vmatpush1.bf16.msra.mxu0 0
    %333 = vmatprep.subr.bf16.mxu0 0
    %334 = vmatpush1.bf16.msra.mxu0 0
    %335 = vmatprep.subr.bf16.mxu0 0
    %336 = vmatpush1.bf16.msra.mxu0 0
    %337 = vmatprep.subr.bf16.mxu0 0
    %338 = vmatpush1.bf16.msra.mxu0 0
    %339 = vmatprep.subr.bf16.mxu0 0
    %340 = vmatpush1.bf16.msra.mxu0 0
    %341 = vmatprep.subr.bf16.mxu0 0
    %342 = vmatpush1.bf16.msra.mxu0 0
    %343 = vmatprep.mubr.bf16.mxu0 0
    %344 = vmatmul.mubr.bf16.gmra.mrb[0].mxu0 %v109
    %v345 = vpop.f32.mrb[0].mxu0
    %v346 = vadd.f32 0.0, %v345
    %v347 = vpop.f32.mrb[0].mxu0
    %v348 = vadd.f32 0.0, %v347
    %v349 = vpop.f32.mrb[0].mxu0
    %v350 = vpop.f32.mrb[0].mxu0
    %351 = vdwg.mxu0
    %v352 = vadd.f32 %v105, %v305
    %v353 = vadd.f32 %v106, %v307
    %v354 = vadd.f32 %v107, %v346
    %v355 = vadd.f32 %v108, %v348
    %v356 = vxor.u32 %v352, 2147483648
    %v357 = vmul.f32 %v356, 1.442695
    %v358 = vpow.pop %v357
    %v359 = vadd.f32 %v358, 1.0
    %v360 = vrcp.pop %v359
    %v361 = vmul.f32 1.0, %v360
    %v362 = vxor.u32 %v353, 2147483648
    %v363 = vmul.f32 %v362, 1.442695
    %v364 = vpow.pop %v363
    %v365 = vadd.f32 %v364, 1.0
    %v366 = vrcp.pop %v365
    %v367 = vmul.f32 1.0, %v366
    %v368 = vtanh.pop %v354
    %v369 = vxor.u32 %v355, 2147483648
    %v370 = vmul.f32 %v369, 1.442695
    %v371 = vpow.pop %v370
    %v372 = vadd.f32 %v371, 1.0
    %v373 = vrcp.pop %v372
    %v374 = vmul.f32 1.0, %v373
    %v375 = vmul.f32 %v367, %v104
    %v376 = vmul.f32 %v361, %v368
    %v377 = vadd.f32 %v375, %v376
    %v378 = vtanh.pop %v377
    %v379 = vmul.f32 %v374, %v378
    %v380 = vld [vmem:[%s1] sm:$0xff]
    %vm381 = vcmp.gt.f32.partialorder %v380, 0.0
    %v382 = vsel %vm381, 1, 0
    %383 = vset.pattern.permute.xlu0 0
    %384 = vperm.xlu0 %383, %v382
    %v385 = vpop.permute.xlu0 %384
    %vm386 = vcmp.eq.s32.totalorder %v385, 1
    %v387 = vsel %vm386, %v379, %v103
    %v388 = vsel %vm386, %v377, %v104
    %389 = vst [vmem:[#allocation2] sm:$0xff] %v387
    %390 = vst [vmem:[#allocation3] sm:$0xff] %v388
    %391 = vst [vmem:[#allocation4] sm:$0xff] %v387
    %v392 = vld [vmem:[#allocation2] sm:$0xff]
    %v393 = vld [vmem:[#allocation3] sm:$0xff]
    %s394 = scalar_lea.vmem [#allocation6], 32
    %v395 = vld [vmem:[%s394] sm:$0xff]
    %v396 = vld [vmem:[%s394 + $0x8] sm:$0xff]
    %v397 = vld [vmem:[%s394 + $0x10] sm:$0xff]
    %v398 = vld [vmem:[%s394 + $0x18] sm:$0xff]
    %v399 = vpack.c.bf16 %v392, %v392
    %400 = vmatprep.subr.bf16.mxu0 %v207
    %401 = vmatpush1.bf16.msra.mxu0 %v206
    %402 = vmatprep.subr.bf16.mxu0 %v211
    %403 = vmatpush1.bf16.msra.mxu0 %v210
    %404 = vmatprep.subr.bf16.mxu0 %v215
    %405 = vmatpush1.bf16.msra.mxu0 %v214
    %406 = vmatprep.subr.bf16.mxu0 %v219
    %407 = vmatpush1.bf16.msra.mxu0 %v218
    %408 = vmatprep.subr.bf16.mxu0 %v223
    %409 = vmatpush1.bf16.msra.mxu0 %v222
    %410 = vmatprep.subr.bf16.mxu0 %v227
    %411 = vmatpush1.bf16.msra.mxu0 %v226
    %412 = vmatprep.subr.bf16.mxu0 %v231
    %413 = vmatpush1.bf16.msra.mxu0 %v230
    %414 = vmatprep.subr.bf16.mxu0 %v235
    %415 = vmatpush1.bf16.msra.mxu0 %v234
    %416 = vmatprep.subr.bf16.mxu0 0
    %417 = vmatpush1.bf16.msra.mxu0 0
    %418 = vmatprep.subr.bf16.mxu0 0
    %419 = vmatpush1.bf16.msra.mxu0 0
    %420 = vmatprep.subr.bf16.mxu0 0
    %421 = vmatpush1.bf16.msra.mxu0 0
    %422 = vmatprep.subr.bf16.mxu0 0
    %423 = vmatpush1.bf16.msra.mxu0 0
    %424 = vmatprep.subr.bf16.mxu0 0
    %425 = vmatpush1.bf16.msra.mxu0 0
    %426 = vmatprep.subr.bf16.mxu0 0
    %427 = vmatpush1.bf16.msra.mxu0 0
    %428 = vmatprep.subr.bf16.mxu0 0
    %429 = vmatpush1.bf16.msra.mxu0 0
    %430 = vmatprep.subr.bf16.mxu0 0
    %431 = vmatpush1.bf16.msra.mxu0 0
    %432 = vmatprep.mubr.bf16.mxu0 0
    %433 = vmatmul.mubr.bf16.gmra.mrb[0].mxu0 %v399
    %v434 = vpop.f32.mrb[0].mxu0
    %v435 = vadd.f32 0.0, %v434
    %v436 = vpop.f32.mrb[0].mxu0
    %v437 = vadd.f32 0.0, %v436
    %v438 = vpop.f32.mrb[0].mxu0
    %v439 = vpop.f32.mrb[0].mxu0
    %440 = vdwg.mxu0
    %441 = vmatprep.subr.bf16.mxu0 %v209
    %442 = vmatpush1.bf16.msra.mxu0 %v208
    %443 = vmatprep.subr.bf16.mxu0 %v213
    %444 = vmatpush1.bf16.msra.mxu0 %v212
    %445 = vmatprep.subr.bf16.mxu0 %v217
    %446 = vmatpush1.bf16.msra.mxu0 %v216
    %447 = vmatprep.subr.bf16.mxu0 %v221
    %448 = vmatpush1.bf16.msra.mxu0 %v220
    %449 = vmatprep.subr.bf16.mxu0 %v225
    %450 = vmatpush1.bf16.msra.mxu0 %v224
    %451 = vmatprep.subr.bf16.mxu0 %v229
    %452 = vmatpush1.bf16.msra.mxu0 %v228
    %453 = vmatprep.subr.bf16.mxu0 %v233
    %454 = vmatpush1.bf16.msra.mxu0 %v232
    %455 = vmatprep.subr.bf16.mxu0 %v237
    %456 = vmatpush1.bf16.msra.mxu0 %v236
    %457 = vmatprep.subr.bf16.mxu0 0
    %458 = vmatpush1.bf16.msra.mxu0 0
    %459 = vmatprep.subr.bf16.mxu0 0
    %460 = vmatpush1.bf16.msra.mxu0 0
    %461 = vmatprep.subr.bf16.mxu0 0
    %462 = vmatpush1.bf16.msra.mxu0 0
    %463 = vmatprep.subr.bf16.mxu0 0
    %464 = vmatpush1.bf16.msra.mxu0 0
    %465 = vmatprep.subr.bf16.mxu0 0
    %466 = vmatpush1.bf16.msra.mxu0 0
    %467 = vmatprep.subr.bf16.mxu0 0
    %468 = vmatpush1.bf16.msra.mxu0 0
    %469 = vmatprep.subr.bf16.mxu0 0
    %470 = vmatpush1.bf16.msra.mxu0 0
    %471 = vmatprep.subr.bf16.mxu0 0
    %472 = vmatpush1.bf16.msra.mxu0 0
    %473 = vmatprep.mubr.bf16.mxu0 0
    %474 = vmatmul.mubr.bf16.gmra.mrb[0].mxu0 %v399
    %v475 = vpop.f32.mrb[0].mxu0
    %v476 = vadd.f32 0.0, %v475
    %v477 = vpop.f32.mrb[0].mxu0
    %v478 = vadd.f32 0.0, %v477
    %v479 = vpop.f32.mrb[0].mxu0
    %v480 = vpop.f32.mrb[0].mxu0
    %481 = vdwg.mxu0
    %v482 = vadd.f32 %v395, %v435
    %v483 = vadd.f32 %v396, %v437
    %v484 = vadd.f32 %v397, %v476
    %v485 = vadd.f32 %v398, %v478
    %v486 = vxor.u32 %v482, 2147483648
    %v487 = vmul.f32 %v486, 1.442695
    %v488 = vpow.pop %v487
    %v489 = vadd.f32 %v488, 1.0
    %v490 = vrcp.pop %v489
    %v491 = vmul.f32 1.0, %v490
    %v492 = vxor.u32 %v483, 2147483648
    %v493 = vmul.f32 %v492, 1.442695
    %v494 = vpow.pop %v493
    %v495 = vadd.f32 %v494, 1.0
    %v496 = vrcp.pop %v495
    %v497 = vmul.f32 1.0, %v496
    %v498 = vtanh.pop %v484
    %v499 = vxor.u32 %v485, 2147483648
    %v500 = vmul.f32 %v499, 1.442695
    %v501 = vpow.pop %v500
    %v502 = vadd.f32 %v501, 1.0
    %v503 = vrcp.pop %v502
    %v504 = vmul.f32 1.0, %v503
    %v505 = vmul.f32 %v497, %v393
    %v506 = vmul.f32 %v491, %v498
    %v507 = vadd.f32 %v505, %v506
    %v508 = vtanh.pop %v507
    %v509 = vmul.f32 %v504, %v508
    %s510 = scalar_lea.vmem %s1, 8
    %v511 = vld [vmem:[%s510] sm:$0xff]
    %vm512 = vcmp.gt.f32.partialorder %v511, 0.0
    %v513 = vsel %vm512, 1, 0
    %514 = vset.pattern.permute.xlu0 0
    %515 = vperm.xlu0 %514, %v513
    %v516 = vpop.permute.xlu0 %515
    %vm517 = vcmp.eq.s32.totalorder %v516, 1
    %v518 = vsel %vm517, %v509, %v392
    %v519 = vsel %vm517, %v507, %v393
    %520 = vst [vmem:[#allocation2] sm:$0xff] %v518
    %521 = vst [vmem:[#allocation3] sm:$0xff] %v519
    %s522 = scalar_lea.vmem [#allocation4], 8
    %523 = vst [vmem:[%s522] sm:$0xff] %v518
    %v524 = vld [vmem:[#allocation2] sm:$0xff]
    %v525 = vld [vmem:[#allocation3] sm:$0xff]
    %s526 = scalar_lea.vmem [#allocation6], 64
    %v527 = vld [vmem:[%s526] sm:$0xff]
    %v528 = vld [vmem:[%s526 + $0x8] sm:$0xff]
    %v529 = vld [vmem:[%s526 + $0x10] sm:$0xff]
    %v530 = vld [vmem:[%s526 + $0x18] sm:$0xff]
    %v531 = vpack.c.bf16 %v524, %v524
    %532 = vmatprep.subr.bf16.mxu0 %v207
    %533 = vmatpush1.bf16.msra.mxu0 %v206
    %534 = vmatprep.subr.bf16.mxu0 %v211
    %535 = vmatpush1.bf16.msra.mxu0 %v210
    %536 = vmatprep.subr.bf16.mxu0 %v215
    %537 = vmatpush1.bf16.msra.mxu0 %v214
    %538 = vmatprep.subr.bf16.mxu0 %v219
    %539 = vmatpush1.bf16.msra.mxu0 %v218
    %540 = vmatprep.subr.bf16.mxu0 %v223
    %541 = vmatpush1.bf16.msra.mxu0 %v222
    %542 = vmatprep.subr.bf16.mxu0 %v227
    %543 = vmatpush1.bf16.msra.mxu0 %v226
    %544 = vmatprep.subr.bf16.mxu0 %v231
    %545 = vmatpush1.bf16.msra.mxu0 %v230
    %546 = vmatprep.subr.bf16.mxu0 %v235
    %547 = vmatpush1.bf16.msra.mxu0 %v234
    %548 = vmatprep.subr.bf16.mxu0 0
    %549 = vmatpush1.bf16.msra.mxu0 0
    %550 = vmatprep.subr.bf16.mxu0 0
    %551 = vmatpush1.bf16.msra.mxu0 0
    %552 = vmatprep.subr.bf16.mxu0 0
    %553 = vmatpush1.bf16.msra.mxu0 0
    %554 = vmatprep.subr.bf16.mxu0 0
    %555 = vmatpush1.bf16.msra.mxu0 0
    %556 = vmatprep.subr.bf16.mxu0 0
    %557 = vmatpush1.bf16.msra.mxu0 0
    %558 = vmatprep.subr.bf16.mxu0 0
    %559 = vmatpush1.bf16.msra.mxu0 0
    %560 = vmatprep.subr.bf16.mxu0 0
    %561 = vmatpush1.bf16.msra.mxu0 0
    %562 = vmatprep.subr.bf16.mxu0 0
    %563 = vmatpush1.bf16.msra.mxu0 0
    %564 = vmatprep.mubr.bf16.mxu0 0
    %565 = vmatmul.mubr.bf16.gmra.mrb[0].mxu0 %v531
    %v566 = vpop.f32.mrb[0].mxu0
    %v567 = vadd.f32 0.0, %v566
    %v568 = vpop.f32.mrb[0].mxu0
    %v569 = vadd.f32 0.0, %v568
    %v570 = vpop.f32.mrb[0].mxu0
    %v571 = vpop.f32.mrb[0].mxu0
    %572 = vdwg.mxu0
    %573 = vmatprep.subr.bf16.mxu0 %v209
    %574 = vmatpush1.bf16.msra.mxu0 %v208
    %575 = vmatprep.subr.bf16.mxu0 %v213
    %576 = vmatpush1.bf16.msra.mxu0 %v212
    %577 = vmatprep.subr.bf16.mxu0 %v217
    %578 = vmatpush1.bf16.msra.mxu0 %v216
    %579 = vmatprep.subr.bf16.mxu0 %v221
    %580 = vmatpush1.bf16.msra.mxu0 %v220
    %581 = vmatprep.subr.bf16.mxu0 %v225
    %582 = vmatpush1.bf16.msra.mxu0 %v224
    %583 = vmatprep.subr.bf16.mxu0 %v229
    %584 = vmatpush1.bf16.msra.mxu0 %v228
    %585 = vmatprep.subr.bf16.mxu0 %v233
    %586 = vmatpush1.bf16.msra.mxu0 %v232
    %587 = vmatprep.subr.bf16.mxu0 %v237
    %588 = vmatpush1.bf16.msra.mxu0 %v236
    %589 = vmatprep.subr.bf16.mxu0 0
    %590 = vmatpush1.bf16.msra.mxu0 0
    %591 = vmatprep.subr.bf16.mxu0 0
    %592 = vmatpush1.bf16.msra.mxu0 0
    %593 = vmatprep.subr.bf16.mxu0 0
    %594 = vmatpush1.bf16.msra.mxu0 0
    %595 = vmatprep.subr.bf16.mxu0 0
    %596 = vmatpush1.bf16.msra.mxu0 0
    %597 = vmatprep.subr.bf16.mxu0 0
    %598 = vmatpush1.bf16.msra.mxu0 0
    %599 = vmatprep.subr.bf16.mxu0 0
    %600 = vmatpush1.bf16.msra.mxu0 0
    %601 = vmatprep.subr.bf16.mxu0 0
    %602 = vmatpush1.bf16.msra.mxu0 0
    %603 = vmatprep.subr.bf16.mxu0 0
    %604 = vmatpush1.bf16.msra.mxu0 0
    %605 = vmatprep.mubr.bf16.mxu0 0
    %606 = vmatmul.mubr.bf16.gmra.mrb[0].mxu0 %v531
    %v607 = vpop.f32.mrb[0].mxu0
    %v608 = vadd.f32 0.0, %v607
    %v609 = vpop.f32.mrb[0].mxu0
    %v610 = vadd.f32 0.0, %v609
    %v611 = vpop.f32.mrb[0].mxu0
    %v612 = vpop.f32.mrb[0].mxu0
    %613 = vdwg.mxu0
    %v614 = vadd.f32 %v527, %v567
    %v615 = vadd.f32 %v528, %v569
    %v616 = vadd.f32 %v529, %v608
    %v617 = vadd.f32 %v530, %v610
    %v618 = vxor.u32 %v614, 2147483648
    %v619 = vmul.f32 %v618, 1.442695
    %v620 = vpow.pop %v619
    %v621 = vadd.f32 %v620, 1.0
    %v622 = vrcp.pop %v621
    %v623 = vmul.f32 1.0, %v622
    %v624 = vxor.u32 %v615, 2147483648
    %v625 = vmul.f32 %v624, 1.442695
    %v626 = vpow.pop %v625
    %v627 = vadd.f32 %v626, 1.0
    %v628 = vrcp.pop %v627
    %v629 = vmul.f32 1.0, %v628
    %v630 = vtanh.pop %v616
    %v631 = vxor.u32 %v617, 2147483648
    %v632 = vmul.f32 %v631, 1.442695
    %v633 = vpow.pop %v632
    %v634 = vadd.f32 %v633, 1.0
    %v635 = vrcp.pop %v634
    %v636 = vmul.f32 1.0, %v635
    %v637 = vmul.f32 %v629, %v525
    %v638 = vmul.f32 %v623, %v630
    %v639 = vadd.f32 %v637, %v638
    %v640 = vtanh.pop %v639
    %v641 = vmul.f32 %v636, %v640
    %s642 = scalar_lea.vmem %s1, 16
    %v643 = vld [vmem:[%s642] sm:$0xff]
    %vm644 = vcmp.gt.f32.partialorder %v643, 0.0
    %v645 = vsel %vm644, 1, 0
    %646 = vset.pattern.permute.xlu0 0
    %647 = vperm.xlu0 %646, %v645
    %v648 = vpop.permute.xlu0 %647
    %vm649 = vcmp.eq.s32.totalorder %v648, 1
    %v650 = vsel %vm649, %v641, %v524
    %v651 = vsel %vm649, %v639, %v525
    %652 = vst [vmem:[#allocation2] sm:$0xff] %v650
    %653 = vst [vmem:[#allocation3] sm:$0xff] %v651
    %s654 = scalar_lea.vmem [#allocation4], 16
    %655 = vst [vmem:[%s654] sm:$0xff] %v650
    %v656 = vld [vmem:[#allocation2] sm:$0xff]
    %v657 = vld [vmem:[#allocation3] sm:$0xff]
    %s658 = scalar_lea.vmem [#allocation6], 96
    %v659 = vld [vmem:[%s658] sm:$0xff]
    %v660 = vld [vmem:[%s658 + $0x8] sm:$0xff]
    %v661 = vld [vmem:[%s658 + $0x10] sm:$0xff]
    %v662 = vld [vmem:[%s658 + $0x18] sm:$0xff]
    %v663 = vpack.c.bf16 %v656, %v656
    %664 = vmatprep.subr.bf16.mxu0 %v207
    %665 = vmatpush1.bf16.msra.mxu0 %v206
    %666 = vmatprep.subr.bf16.mxu0 %v211
    %667 = vmatpush1.bf16.msra.mxu0 %v210
    %668 = vmatprep.subr.bf16.mxu0 %v215
    %669 = vmatpush1.bf16.msra.mxu0 %v214
    %670 = vmatprep.subr.bf16.mxu0 %v219
    %671 = vmatpush1.bf16.msra.mxu0 %v218
    %672 = vmatprep.subr.bf16.mxu0 %v223
    %673 = vmatpush1.bf16.msra.mxu0 %v222
    %674 = vmatprep.subr.bf16.mxu0 %v227
    %675 = vmatpush1.bf16.msra.mxu0 %v226
    %676 = vmatprep.subr.bf16.mxu0 %v231
    %677 = vmatpush1.bf16.msra.mxu0 %v230
    %678 = vmatprep.subr.bf16.mxu0 %v235
    %679 = vmatpush1.bf16.msra.mxu0 %v234
    %680 = vmatprep.subr.bf16.mxu0 0
    %681 = vmatpush1.bf16.msra.mxu0 0
    %682 = vmatprep.subr.bf16.mxu0 0
    %683 = vmatpush1.bf16.msra.mxu0 0
    %684 = vmatprep.subr.bf16.mxu0 0
    %685 = vmatpush1.bf16.msra.mxu0 0
    %686 = vmatprep.subr.bf16.mxu0 0
    %687 = vmatpush1.bf16.msra.mxu0 0
    %688 = vmatprep.subr.bf16.mxu0 0
    %689 = vmatpush1.bf16.msra.mxu0 0
    %690 = vmatprep.subr.bf16.mxu0 0
    %691 = vmatpush1.bf16.msra.mxu0 0
    %692 = vmatprep.subr.bf16.mxu0 0
    %693 = vmatpush1.bf16.msra.mxu0 0
    %694 = vmatprep.subr.bf16.mxu0 0
    %695 = vmatpush1.bf16.msra.mxu0 0
    %696 = vmatprep.mubr.bf16.mxu0 0
    %697 = vmatmul.mubr.bf16.gmra.mrb[0].mxu0 %v663
    %v698 = vpop.f32.mrb[0].mxu0
    %v699 = vadd.f32 0.0, %v698
    %v700 = vpop.f32.mrb[0].mxu0
    %v701 = vadd.f32 0.0, %v700
    %v702 = vpop.f32.mrb[0].mxu0
    %v703 = vpop.f32.mrb[0].mxu0
    %704 = vdwg.mxu0
    %705 = vmatprep.subr.bf16.mxu0 %v209
    %706 = vmatpush1.bf16.msra.mxu0 %v208
    %707 = vmatprep.subr.bf16.mxu0 %v213
    %708 = vmatpush1.bf16.msra.mxu0 %v212
    %709 = vmatprep.subr.bf16.mxu0 %v217
    %710 = vmatpush1.bf16.msra.mxu0 %v216
    %711 = vmatprep.subr.bf16.mxu0 %v221
    %712 = vmatpush1.bf16.msra.mxu0 %v220
    %713 = vmatprep.subr.bf16.mxu0 %v225
    %714 = vmatpush1.bf16.msra.mxu0 %v224
    %715 = vmatprep.subr.bf16.mxu0 %v229
    %716 = vmatpush1.bf16.msra.mxu0 %v228
    %717 = vmatprep.subr.bf16.mxu0 %v233
    %718 = vmatpush1.bf16.msra.mxu0 %v232
    %719 = vmatprep.subr.bf16.mxu0 %v237
    %720 = vmatpush1.bf16.msra.mxu0 %v236
    %721 = vmatprep.subr.bf16.mxu0 0
    %722 = vmatpush1.bf16.msra.mxu0 0
    %723 = vmatprep.subr.bf16.mxu0 0
    %724 = vmatpush1.bf16.msra.mxu0 0
    %725 = vmatprep.subr.bf16.mxu0 0
    %726 = vmatpush1.bf16.msra.mxu0 0
    %727 = vmatprep.subr.bf16.mxu0 0
    %728 = vmatpush1.bf16.msra.mxu0 0
    %729 = vmatprep.subr.bf16.mxu0 0
    %730 = vmatpush1.bf16.msra.mxu0 0
    %731 = vmatprep.subr.bf16.mxu0 0
    %732 = vmatpush1.bf16.msra.mxu0 0
    %733 = vmatprep.subr.bf16.mxu0 0
    %734 = vmatpush1.bf16.msra.mxu0 0
    %735 = vmatprep.subr.bf16.mxu0 0
    %736 = vmatpush1.bf16.msra.mxu0 0
    %737 = vmatprep.mubr.bf16.mxu0 0
    %738 = vmatmul.mubr.bf16.gmra.mrb[0].mxu0 %v663
    %v739 = vpop.f32.mrb[0].mxu0
    %v740 = vadd.f32 0.0, %v739
    %v741 = vpop.f32.mrb[0].mxu0
    %v742 = vadd.f32 0.0, %v741
    %v743 = vpop.f32.mrb[0].mxu0
    %v744 = vpop.f32.mrb[0].mxu0
    %745 = vdwg.mxu0
    %v746 = vadd.f32 %v659, %v699
    %v747 = vadd.f32 %v660, %v701
    %v748 = vadd.f32 %v661, %v740
    %v749 = vadd.f32 %v662, %v742
    %v750 = vxor.u32 %v746, 2147483648
    %v751 = vmul.f32 %v750, 1.442695
    %v752 = vpow.pop %v751
    %v753 = vadd.f32 %v752, 1.0
    %v754 = vrcp.pop %v753
    %v755 = vmul.f32 1.0, %v754
    %v756 = vxor.u32 %v747, 2147483648
    %v757 = vmul.f32 %v756, 1.442695
    %v758 = vpow.pop %v757
    %v759 = vadd.f32 %v758, 1.0
    %v760 = vrcp.pop %v759
    %v761 = vmul.f32 1.0, %v760
    %v762 = vtanh.pop %v748
    %v763 = vxor.u32 %v749, 2147483648
    %v764 = vmul.f32 %v763, 1.442695
    %v765 = vpow.pop %v764
    %v766 = vadd.f32 %v765, 1.0
    %v767 = vrcp.pop %v766
    %v768 = vmul.f32 1.0, %v767
    %v769 = vmul.f32 %v761, %v657
    %v770 = vmul.f32 %v755, %v762
    %v771 = vadd.f32 %v769, %v770
    %v772 = vtanh.pop %v771
    %v773 = vmul.f32 %v768, %v772
    %s774 = scalar_lea.vmem %s1, 24
    %v775 = vld [vmem:[%s774] sm:$0xff]
    %vm776 = vcmp.gt.f32.partialorder %v775, 0.0
    %v777 = vsel %vm776, 1, 0
    %778 = vset.pattern.permute.xlu0 0
    %779 = vperm.xlu0 %778, %v777
    %v780 = vpop.permute.xlu0 %779
    %vm781 = vcmp.eq.s32.totalorder %v780, 1
    %v782 = vsel %vm781, %v773, %v656
    %v783 = vsel %vm781, %v771, %v657
    %784 = vst [vmem:[#allocation2] sm:$0xff] %v782
    %785 = vst [vmem:[#allocation3] sm:$0xff] %v783
    %s786 = scalar_lea.vmem [#allocation4], 24
    %787 = vst [vmem:[%s786] sm:$0xff] %v782
    %v788 = vld [vmem:[#allocation2] sm:$0xff]
    %v789 = vld [vmem:[#allocation3] sm:$0xff]
    %s790 = scalar_lea.vmem [#allocation6], 128
    %v791 = vld [vmem:[%s790] sm:$0xff]
    %v792 = vld [vmem:[%s790 + $0x8] sm:$0xff]
    %v793 = vld [vmem:[%s790 + $0x10] sm:$0xff]
    %v794 = vld [vmem:[%s790 + $0x18] sm:$0xff]
    %v795 = vpack.c.bf16 %v788, %v788
    %796 = vmatprep.subr.bf16.mxu0 %v207
    %797 = vmatpush1.bf16.msra.mxu0 %v206
    %798 = vmatprep.subr.bf16.mxu0 %v211
    %799 = vmatpush1.bf16.msra.mxu0 %v210
    %800 = vmatprep.subr.bf16.mxu0 %v215
    %801 = vmatpush1.bf16.msra.mxu0 %v214
    %802 = vmatprep.subr.bf16.mxu0 %v219
    %803 = vmatpush1.bf16.msra.mxu0 %v218
    %804 = vmatprep.subr.bf16.mxu0 %v223
    %805 = vmatpush1.bf16.msra.mxu0 %v222
    %806 = vmatprep.subr.bf16.mxu0 %v227
    %807 = vmatpush1.bf16.msra.mxu0 %v226
    %808 = vmatprep.subr.bf16.mxu0 %v231
    %809 = vmatpush1.bf16.msra.mxu0 %v230
    %810 = vmatprep.subr.bf16.mxu0 %v235
    %811 = vmatpush1.bf16.msra.mxu0 %v234
    %812 = vmatprep.subr.bf16.mxu0 0
    %813 = vmatpush1.bf16.msra.mxu0 0
    %814 = vmatprep.subr.bf16.mxu0 0
    %815 = vmatpush1.bf16.msra.mxu0 0
    %816 = vmatprep.subr.bf16.mxu0 0
    %817 = vmatpush1.bf16.msra.mxu0 0
    %818 = vmatprep.subr.bf16.mxu0 0
    %819 = vmatpush1.bf16.msra.mxu0 0
    %820 = vmatprep.subr.bf16.mxu0 0
    %821 = vmatpush1.bf16.msra.mxu0 0
    %822 = vmatprep.subr.bf16.mxu0 0
    %823 = vmatpush1.bf16.msra.mxu0 0
    %824 = vmatprep.subr.bf16.mxu0 0
    %825 = vmatpush1.bf16.msra.mxu0 0
    %826 = vmatprep.subr.bf16.mxu0 0
    %827 = vmatpush1.bf16.msra.mxu0 0
    %828 = vmatprep.mubr.bf16.mxu0 0
    %829 = vmatmul.mubr.bf16.gmra.mrb[0].mxu0 %v795
    %v830 = vpop.f32.mrb[0].mxu0
    %v831 = vadd.f32 0.0, %v830
    %v832 = vpop.f32.mrb[0].mxu0
    %v833 = vadd.f32 0.0, %v832
    %v834 = vpop.f32.mrb[0].mxu0
    %v835 = vpop.f32.mrb[0].mxu0
    %836 = vdwg.mxu0
    %837 = vmatprep.subr.bf16.mxu0 %v209
    %838 = vmatpush1.bf16.msra.mxu0 %v208
    %839 = vmatprep.subr.bf16.mxu0 %v213
    %840 = vmatpush1.bf16.msra.mxu0 %v212
    %841 = vmatprep.subr.bf16.mxu0 %v217
    %842 = vmatpush1.bf16.msra.mxu0 %v216
    %843 = vmatprep.subr.bf16.mxu0 %v221
    %844 = vmatpush1.bf16.msra.mxu0 %v220
    %845 = vmatprep.subr.bf16.mxu0 %v225
    %846 = vmatpush1.bf16.msra.mxu0 %v224
    %847 = vmatprep.subr.bf16.mxu0 %v229
    %848 = vmatpush1.bf16.msra.mxu0 %v228
    %849 = vmatprep.subr.bf16.mxu0 %v233
    %850 = vmatpush1.bf16.msra.mxu0 %v232
    %851 = vmatprep.subr.bf16.mxu0 %v237
    %852 = vmatpush1.bf16.msra.mxu0 %v236
    %853 = vmatprep.subr.bf16.mxu0 0
    %854 = vmatpush1.bf16.msra.mxu0 0
    %855 = vmatprep.subr.bf16.mxu0 0
    %856 = vmatpush1.bf16.msra.mxu0 0
    %857 = vmatprep.subr.bf16.mxu0 0
    %858 = vmatpush1.bf16.msra.mxu0 0
    %859 = vmatprep.subr.bf16.mxu0 0
    %860 = vmatpush1.bf16.msra.mxu0 0
    %861 = vmatprep.subr.bf16.mxu0 0
    %862 = vmatpush1.bf16.msra.mxu0 0
    %863 = vmatprep.subr.bf16.mxu0 0
    %864 = vmatpush1.bf16.msra.mxu0 0
    %865 = vmatprep.subr.bf16.mxu0 0
    %866 = vmatpush1.bf16.msra.mxu0 0
    %867 = vmatprep.subr.bf16.mxu0 0
    %868 = vmatpush1.bf16.msra.mxu0 0
    %869 = vmatprep.mubr.bf16.mxu0 0
    %870 = vmatmul.mubr.bf16.gmra.mrb[0].mxu0 %v795
    %v871 = vpop.f32.mrb[0].mxu0
    %v872 = vadd.f32 0.0, %v871
    %v873 = vpop.f32.mrb[0].mxu0
    %v874 = vadd.f32 0.0, %v873
    %v875 = vpop.f32.mrb[0].mxu0
    %v876 = vpop.f32.mrb[0].mxu0
    %877 = vdwg.mxu0
    %v878 = vadd.f32 %v791, %v831
    %v879 = vadd.f32 %v792, %v833
    %v880 = vadd.f32 %v793, %v872
    %v881 = vadd.f32 %v794, %v874
    %v882 = vxor.u32 %v878, 2147483648
    %v883 = vmul.f32 %v882, 1.442695
    %v884 = vpow.pop %v883
    %v885 = vadd.f32 %v884, 1.0
    %v886 = vrcp.pop %v885
    %v887 = vmul.f32 1.0, %v886
    %v888 = vxor.u32 %v879, 2147483648
    %v889 = vmul.f32 %v888, 1.442695
    %v890 = vpow.pop %v889
    %v891 = vadd.f32 %v890, 1.0
    %v892 = vrcp.pop %v891
    %v893 = vmul.f32 1.0, %v892
    %v894 = vtanh.pop %v880
    %v895 = vxor.u32 %v881, 2147483648
    %v896 = vmul.f32 %v895, 1.442695
    %v897 = vpow.pop %v896
    %v898 = vadd.f32 %v897, 1.0
    %v899 = vrcp.pop %v898
    %v900 = vmul.f32 1.0, %v899
    %v901 = vmul.f32 %v893, %v789
    %v902 = vmul.f32 %v887, %v894
    %v903 = vadd.f32 %v901, %v902
    %v904 = vtanh.pop %v903
    %v905 = vmul.f32 %v900, %v904
    %s906 = scalar_lea.vmem %s1, 32
    %v907 = vld [vmem:[%s906] sm:$0xff]
    %vm908 = vcmp.gt.f32.partialorder %v907, 0.0
    %v909 = vsel %vm908, 1, 0
    %910 = vset.pattern.permute.xlu0 0
    %911 = vperm.xlu0 %910, %v909
    %v912 = vpop.permute.xlu0 %911
    %vm913 = vcmp.eq.s32.totalorder %v912, 1
    %v914 = vsel %vm913, %v905, %v788
    %v915 = vsel %vm913, %v903, %v789
    %916 = vst [vmem:[#allocation2] sm:$0xff] %v914
    %917 = vst [vmem:[#allocation3] sm:$0xff] %v915
    %s918 = scalar_lea.vmem [#allocation4], 32
    %919 = vst [vmem:[%s918] sm:$0xff] %v914
    %v920 = vld [vmem:[#allocation2] sm:$0xff]
    %v921 = vld [vmem:[#allocation3] sm:$0xff]
    %s922 = scalar_lea.vmem [#allocation6], 160
    %v923 = vld [vmem:[%s922] sm:$0xff]
    %v924 = vld [vmem:[%s922 + $0x8] sm:$0xff]
    %v925 = vld [vmem:[%s922 + $0x10] sm:$0xff]
    %v926 = vld [vmem:[%s922 + $0x18] sm:$0xff]
    %v927 = vpack.c.bf16 %v920, %v920
    %928 = vmatprep.subr.bf16.mxu0 %v207
    %929 = vmatpush1.bf16.msra.mxu0 %v206
    %930 = vmatprep.subr.bf16.mxu0 %v211
    %931 = vmatpush1.bf16.msra.mxu0 %v210
    %932 = vmatprep.subr.bf16.mxu0 %v215
    %933 = vmatpush1.bf16.msra.mxu0 %v214
    %934 = vmatprep.subr.bf16.mxu0 %v219
    %935 = vmatpush1.bf16.msra.mxu0 %v218
    %936 = vmatprep.subr.bf16.mxu0 %v223
    %937 = vmatpush1.bf16.msra.mxu0 %v222
    %938 = vmatprep.subr.bf16.mxu0 %v227
    %939 = vmatpush1.bf16.msra.mxu0 %v226
    %940 = vmatprep.subr.bf16.mxu0 %v231
    %941 = vmatpush1.bf16.msra.mxu0 %v230
    %942 = vmatprep.subr.bf16.mxu0 %v235
    %943 = vmatpush1.bf16.msra.mxu0 %v234
    %944 = vmatprep.subr.bf16.mxu0 0
    %945 = vmatpush1.bf16.msra.mxu0 0
    %946 = vmatprep.subr.bf16.mxu0 0
    %947 = vmatpush1.bf16.msra.mxu0 0
    %948 = vmatprep.subr.bf16.mxu0 0
    %949 = vmatpush1.bf16.msra.mxu0 0
    %950 = vmatprep.subr.bf16.mxu0 0
    %951 = vmatpush1.bf16.msra.mxu0 0
    %952 = vmatprep.subr.bf16.mxu0 0
    %953 = vmatpush1.bf16.msra.mxu0 0
    %954 = vmatprep.subr.bf16.mxu0 0
    %955 = vmatpush1.bf16.msra.mxu0 0
    %956 = vmatprep.subr.bf16.mxu0 0
    %957 = vmatpush1.bf16.msra.mxu0 0
    %958 = vmatprep.subr.bf16.mxu0 0
    %959 = vmatpush1.bf16.msra.mxu0 0
    %960 = vmatprep.mubr.bf16.mxu0 0
    %961 = vmatmul.mubr.bf16.gmra.mrb[0].mxu0 %v927
    %v962 = vpop.f32.mrb[0].mxu0
    %v963 = vadd.f32 0.0, %v962
    %v964 = vpop.f32.mrb[0].mxu0
    %v965 = vadd.f32 0.0, %v964
    %v966 = vpop.f32.mrb[0].mxu0
    %v967 = vpop.f32.mrb[0].mxu0
    %968 = vdwg.mxu0
    %969 = vmatprep.subr.bf16.mxu0 %v209
    %970 = vmatpush1.bf16.msra.mxu0 %v208
    %971 = vmatprep.subr.bf16.mxu0 %v213
    %972 = vmatpush1.bf16.msra.mxu0 %v212
    %973 = vmatprep.subr.bf16.mxu0 %v217
    %974 = vmatpush1.bf16.msra.mxu0 %v216
    %975 = vmatprep.subr.bf16.mxu0 %v221
    %976 = vmatpush1.bf16.msra.mxu0 %v220
    %977 = vmatprep.subr.bf16.mxu0 %v225
    %978 = vmatpush1.bf16.msra.mxu0 %v224
    %979 = vmatprep.subr.bf16.mxu0 %v229
    %980 = vmatpush1.bf16.msra.mxu0 %v228
    %981 = vmatprep.subr.bf16.mxu0 %v233
    %982 = vmatpush1.bf16.msra.mxu0 %v232
    %983 = vmatprep.subr.bf16.mxu0 %v237
    %984 = vmatpush1.bf16.msra.mxu0 %v236
    %985 = vmatprep.subr.bf16.mxu0 0
    %986 = vmatpush1.bf16.msra.mxu0 0
    %987 = vmatprep.subr.bf16.mxu0 0
    %988 = vmatpush1.bf16.msra.mxu0 0
    %989 = vmatprep.subr.bf16.mxu0 0
    %990 = vmatpush1.bf16.msra.mxu0 0
    %991 = vmatprep.subr.bf16.mxu0 0
    %992 = vmatpush1.bf16.msra.mxu0 0
    %993 = vmatprep.subr.bf16.mxu0 0
    %994 = vmatpush1.bf16.msra.mxu0 0
    %995 = vmatprep.subr.bf16.mxu0 0
    %996 = vmatpush1.bf16.msra.mxu0 0
    %997 = vmatprep.subr.bf16.mxu0 0
    %998 = vmatpush1.bf16.msra.mxu0 0
    %999 = vmatprep.subr.bf16.mxu0 0
    %1000 = vmatpush1.bf16.msra.mxu0 0
    %1001 = vmatprep.mubr.bf16.mxu0 0
    %1002 = vmatmul.mubr.bf16.gmra.mrb[0].mxu0 %v927
    %v1003 = vpop.f32.mrb[0].mxu0
    %v1004 = vadd.f32 0.0, %v1003
    %v1005 = vpop.f32.mrb[0].mxu0
    %v1006 = vadd.f32 0.0, %v1005
    %v1007 = vpop.f32.mrb[0].mxu0
    %v1008 = vpop.f32.mrb[0].mxu0
    %1009 = vdwg.mxu0
    %v1010 = vadd.f32 %v923, %v963
    %v1011 = vadd.f32 %v924, %v965
    %v1012 = vadd.f32 %v925, %v1004
    %v1013 = vadd.f32 %v926, %v1006
    %v1014 = vxor.u32 %v1010, 2147483648
    %v1015 = vmul.f32 %v1014, 1.442695
    %v1016 = vpow.pop %v1015
    %v1017 = vadd.f32 %v1016, 1.0
    %v1018 = vrcp.pop %v1017
    %v1019 = vmul.f32 1.0, %v1018
    %v1020 = vxor.u32 %v1011, 2147483648
    %v1021 = vmul.f32 %v1020, 1.442695
    %v1022 = vpow.pop %v1021
    %v1023 = vadd.f32 %v1022, 1.0
    %v1024 = vrcp.pop %v1023
    %v1025 = vmul.f32 1.0, %v1024
    %v1026 = vtanh.pop %v1012
    %v1027 = vxor.u32 %v1013, 2147483648
    %v1028 = vmul.f32 %v1027, 1.442695
    %v1029 = vpow.pop %v1028
    %v1030 = vadd.f32 %v1029, 1.0
    %v1031 = vrcp.pop %v1030
    %v1032 = vmul.f32 1.0, %v1031
    %v1033 = vmul.f32 %v1025, %v921
    %v1034 = vmul.f32 %v1019, %v1026
    %v1035 = vadd.f32 %v1033, %v1034
    %v1036 = vtanh.pop %v1035
    %v1037 = vmul.f32 %v1032, %v1036
    %s1038 = scalar_lea.vmem %s1, 40
    %v1039 = vld [vmem:[%s1038] sm:$0xff]
    %vm1040 = vcmp.gt.f32.partialorder %v1039, 0.0
    %v1041 = vsel %vm1040, 1, 0
    %1042 = vset.pattern.permute.xlu0 0
    %1043 = vperm.xlu0 %1042, %v1041
    %v1044 = vpop.permute.xlu0 %1043
    %vm1045 = vcmp.eq.s32.totalorder %v1044, 1
    %v1046 = vsel %vm1045, %v1037, %v920
    %v1047 = vsel %vm1045, %v1035, %v921
    %1048 = vst [vmem:[#allocation2] sm:$0xff] %v1046
    %1049 = vst [vmem:[#allocation3] sm:$0xff] %v1047
    %s1050 = scalar_lea.vmem [#allocation4], 40
    %1051 = vst [vmem:[%s1050] sm:$0xff] %v1046
    %v1052 = vld [vmem:[#allocation2] sm:$0xff]
    %v1053 = vld [vmem:[#allocation3] sm:$0xff]
    %s1054 = scalar_lea.vmem [#allocation6], 192
    %v1055 = vld [vmem:[%s1054] sm:$0xff]
    %v1056 = vld [vmem:[%s1054 + $0x8] sm:$0xff]
    %v1057 = vld [vmem:[%s1054 + $0x10] sm:$0xff]
    %v1058 = vld [vmem:[%s1054 + $0x18] sm:$0xff]
    %v1059 = vpack.c.bf16 %v1052, %v1052
    %1060 = vmatprep.subr.bf16.mxu0 %v207
    %1061 = vmatpush1.bf16.msra.mxu0 %v206
    %1062 = vmatprep.subr.bf16.mxu0 %v211
    %1063 = vmatpush1.bf16.msra.mxu0 %v210
    %1064 = vmatprep.subr.bf16.mxu0 %v215
    %1065 = vmatpush1.bf16.msra.mxu0 %v214
    %1066 = vmatprep.subr.bf16.mxu0 %v219
    %1067 = vmatpush1.bf16.msra.mxu0 %v218
    %1068 = vmatprep.subr.bf16.mxu0 %v223
    %1069 = vmatpush1.bf16.msra.mxu0 %v222
    %1070 = vmatprep.subr.bf16.mxu0 %v227
    %1071 = vmatpush1.bf16.msra.mxu0 %v226
    %1072 = vmatprep.subr.bf16.mxu0 %v231
    %1073 = vmatpush1.bf16.msra.mxu0 %v230
    %1074 = vmatprep.subr.bf16.mxu0 %v235
    %1075 = vmatpush1.bf16.msra.mxu0 %v234
    %1076 = vmatprep.subr.bf16.mxu0 0
    %1077 = vmatpush1.bf16.msra.mxu0 0
    %1078 = vmatprep.subr.bf16.mxu0 0
    %1079 = vmatpush1.bf16.msra.mxu0 0
    %1080 = vmatprep.subr.bf16.mxu0 0
    %1081 = vmatpush1.bf16.msra.mxu0 0
    %1082 = vmatprep.subr.bf16.mxu0 0
    %1083 = vmatpush1.bf16.msra.mxu0 0
    %1084 = vmatprep.subr.bf16.mxu0 0
    %1085 = vmatpush1.bf16.msra.mxu0 0
    %1086 = vmatprep.subr.bf16.mxu0 0
    %1087 = vmatpush1.bf16.msra.mxu0 0
    %1088 = vmatprep.subr.bf16.mxu0 0
    %1089 = vmatpush1.bf16.msra.mxu0 0
    %1090 = vmatprep.subr.bf16.mxu0 0
    %1091 = vmatpush1.bf16.msra.mxu0 0
    %1092 = vmatprep.mubr.bf16.mxu0 0
    %1093 = vmatmul.mubr.bf16.gmra.mrb[0].mxu0 %v1059
    %v1094 = vpop.f32.mrb[0].mxu0
    %v1095 = vadd.f32 0.0, %v1094
    %v1096 = vpop.f32.mrb[0].mxu0
    %v1097 = vadd.f32 0.0, %v1096
    %v1098 = vpop.f32.mrb[0].mxu0
    %v1099 = vpop.f32.mrb[0].mxu0
    %1100 = vdwg.mxu0
    %1101 = vmatprep.subr.bf16.mxu0 %v209
    %1102 = vmatpush1.bf16.msra.mxu0 %v208
    %1103 = vmatprep.subr.bf16.mxu0 %v213
    %1104 = vmatpush1.bf16.msra.mxu0 %v212
    %1105 = vmatprep.subr.bf16.mxu0 %v217
    %1106 = vmatpush1.bf16.msra.mxu0 %v216
    %1107 = vmatprep.subr.bf16.mxu0 %v221
    %1108 = vmatpush1.bf16.msra.mxu0 %v220
    %1109 = vmatprep.subr.bf16.mxu0 %v225
    %1110 = vmatpush1.bf16.msra.mxu0 %v224
    %1111 = vmatprep.subr.bf16.mxu0 %v229
    %1112 = vmatpush1.bf16.msra.mxu0 %v228
    %1113 = vmatprep.subr.bf16.mxu0 %v233
    %1114 = vmatpush1.bf16.msra.mxu0 %v232
    %1115 = vmatprep.subr.bf16.mxu0 %v237
    %1116 = vmatpush1.bf16.msra.mxu0 %v236
    %1117 = vmatprep.subr.bf16.mxu0 0
    %1118 = vmatpush1.bf16.msra.mxu0 0
    %1119 = vmatprep.subr.bf16.mxu0 0
    %1120 = vmatpush1.bf16.msra.mxu0 0
    %1121 = vmatprep.subr.bf16.mxu0 0
    %1122 = vmatpush1.bf16.msra.mxu0 0
    %1123 = vmatprep.subr.bf16.mxu0 0
    %1124 = vmatpush1.bf16.msra.mxu0 0
    %1125 = vmatprep.subr.bf16.mxu0 0
    %1126 = vmatpush1.bf16.msra.mxu0 0
    %1127 = vmatprep.subr.bf16.mxu0 0
    %1128 = vmatpush1.bf16.msra.mxu0 0
    %1129 = vmatprep.subr.bf16.mxu0 0
    %1130 = vmatpush1.bf16.msra.mxu0 0
    %1131 = vmatprep.subr.bf16.mxu0 0
    %1132 = vmatpush1.bf16.msra.mxu0 0
    %1133 = vmatprep.mubr.bf16.mxu0 0
    %1134 = vmatmul.mubr.bf16.gmra.mrb[0].mxu0 %v1059
    %v1135 = vpop.f32.mrb[0].mxu0
    %v1136 = vadd.f32 0.0, %v1135
    %v1137 = vpop.f32.mrb[0].mxu0
    %v1138 = vadd.f32 0.0, %v1137
    %v1139 = vpop.f32.mrb[0].mxu0
    %v1140 = vpop.f32.mrb[0].mxu0
    %1141 = vdwg.mxu0
    %v1142 = vadd.f32 %v1055, %v1095
    %v1143 = vadd.f32 %v1056, %v1097
    %v1144 = vadd.f32 %v1057, %v1136
    %v1145 = vadd.f32 %v1058, %v1138
    %v1146 = vxor.u32 %v1142, 2147483648
    %v1147 = vmul.f32 %v1146, 1.442695
    %v1148 = vpow.pop %v1147
    %v1149 = vadd.f32 %v1148, 1.0
    %v1150 = vrcp.pop %v1149
    %v1151 = vmul.f32 1.0, %v1150
    %v1152 = vxor.u32 %v1143, 2147483648
    %v1153 = vmul.f32 %v1152, 1.442695
    %v1154 = vpow.pop %v1153
    %v1155 = vadd.f32 %v1154, 1.0
    %v1156 = vrcp.pop %v1155
    %v1157 = vmul.f32 1.0, %v1156
    %v1158 = vtanh.pop %v1144
    %v1159 = vxor.u32 %v1145, 2147483648
    %v1160 = vmul.f32 %v1159, 1.442695
    %v1161 = vpow.pop %v1160
    %v1162 = vadd.f32 %v1161, 1.0
    %v1163 = vrcp.pop %v1162
    %v1164 = vmul.f32 1.0, %v1163
    %v1165 = vmul.f32 %v1157, %v1053
    %v1166 = vmul.f32 %v1151, %v1158
    %v1167 = vadd.f32 %v1165, %v1166
    %v1168 = vtanh.pop %v1167
    %v1169 = vmul.f32 %v1164, %v1168
    %s1170 = scalar_lea.vmem %s1, 48
    %v1171 = vld [vmem:[%s1170] sm:$0xff]
    %vm1172 = vcmp.gt.f32.partialorder %v1171, 0.0
    %v1173 = vsel %vm1172, 1, 0
    %1174 = vset.pattern.permute.xlu0 0
    %1175 = vperm.xlu0 %1174, %v1173
    %v1176 = vpop.permute.xlu0 %1175
    %vm1177 = vcmp.eq.s32.totalorder %v1176, 1
    %v1178 = vsel %vm1177, %v1169, %v1052
    %v1179 = vsel %vm1177, %v1167, %v1053
    %1180 = vst [vmem:[#allocation2] sm:$0xff] %v1178
    %1181 = vst [vmem:[#allocation3] sm:$0xff] %v1179
    %s1182 = scalar_lea.vmem [#allocation4], 48
    %1183 = vst [vmem:[%s1182] sm:$0xff] %v1178
    %v1184 = vld [vmem:[#allocation2] sm:$0xff]
    %v1185 = vld [vmem:[#allocation3] sm:$0xff]
    %s1186 = scalar_lea.vmem [#allocation6], 224
    %v1187 = vld [vmem:[%s1186] sm:$0xff]
    %v1188 = vld [vmem:[%s1186 + $0x8] sm:$0xff]
    %v1189 = vld [vmem:[%s1186 + $0x10] sm:$0xff]
    %v1190 = vld [vmem:[%s1186 + $0x18] sm:$0xff]
    %v1191 = vpack.c.bf16 %v1184, %v1184
    %1192 = vmatprep.subr.bf16.mxu0 %v207
    %1193 = vmatpush1.bf16.msra.mxu0 %v206
    %1194 = vmatprep.subr.bf16.mxu0 %v211
    %1195 = vmatpush1.bf16.msra.mxu0 %v210
    %1196 = vmatprep.subr.bf16.mxu0 %v215
    %1197 = vmatpush1.bf16.msra.mxu0 %v214
    %1198 = vmatprep.subr.bf16.mxu0 %v219
    %1199 = vmatpush1.bf16.msra.mxu0 %v218
    %1200 = vmatprep.subr.bf16.mxu0 %v223
    %1201 = vmatpush1.bf16.msra.mxu0 %v222
    %1202 = vmatprep.subr.bf16.mxu0 %v227
    %1203 = vmatpush1.bf16.msra.mxu0 %v226
    %1204 = vmatprep.subr.bf16.mxu0 %v231
    %1205 = vmatpush1.bf16.msra.mxu0 %v230
    %1206 = vmatprep.subr.bf16.mxu0 %v235
    %1207 = vmatpush1.bf16.msra.mxu0 %v234
    %1208 = vmatprep.subr.bf16.mxu0 0
    %1209 = vmatpush1.bf16.msra.mxu0 0
    %1210 = vmatprep.subr.bf16.mxu0 0
    %1211 = vmatpush1.bf16.msra.mxu0 0
    %1212 = vmatprep.subr.bf16.mxu0 0
    %1213 = vmatpush1.bf16.msra.mxu0 0
    %1214 = vmatprep.subr.bf16.mxu0 0
    %1215 = vmatpush1.bf16.msra.mxu0 0
    %1216 = vmatprep.subr.bf16.mxu0 0
    %1217 = vmatpush1.bf16.msra.mxu0 0
    %1218 = vmatprep.subr.bf16.mxu0 0
    %1219 = vmatpush1.bf16.msra.mxu0 0
    %1220 = vmatprep.subr.bf16.mxu0 0
    %1221 = vmatpush1.bf16.msra.mxu0 0
    %1222 = vmatprep.subr.bf16.mxu0 0
    %1223 = vmatpush1.bf16.msra.mxu0 0
    %1224 = vmatprep.mubr.bf16.mxu0 0
    %1225 = vmatmul.mubr.bf16.gmra.mrb[0].mxu0 %v1191
    %v1226 = vpop.f32.mrb[0].mxu0
    %v1227 = vadd.f32 0.0, %v1226
    %v1228 = vpop.f32.mrb[0].mxu0
    %v1229 = vadd.f32 0.0, %v1228
    %v1230 = vpop.f32.mrb[0].mxu0
    %v1231 = vpop.f32.mrb[0].mxu0
    %1232 = vdwg.mxu0
    %1233 = vmatprep.subr.bf16.mxu0 %v209
    %1234 = vmatpush1.bf16.msra.mxu0 %v208
    %1235 = vmatprep.subr.bf16.mxu0 %v213
    %1236 = vmatpush1.bf16.msra.mxu0 %v212
    %1237 = vmatprep.subr.bf16.mxu0 %v217
    %1238 = vmatpush1.bf16.msra.mxu0 %v216
    %1239 = vmatprep.subr.bf16.mxu0 %v221
    %1240 = vmatpush1.bf16.msra.mxu0 %v220
    %1241 = vmatprep.subr.bf16.mxu0 %v225
    %1242 = vmatpush1.bf16.msra.mxu0 %v224
    %1243 = vmatprep.subr.bf16.mxu0 %v229
    %1244 = vmatpush1.bf16.msra.mxu0 %v228
    %1245 = vmatprep.subr.bf16.mxu0 %v233
    %1246 = vmatpush1.bf16.msra.mxu0 %v232
    %1247 = vmatprep.subr.bf16.mxu0 %v237
    %1248 = vmatpush1.bf16.msra.mxu0 %v236
    %1249 = vmatprep.subr.bf16.mxu0 0
    %1250 = vmatpush1.bf16.msra.mxu0 0
    %1251 = vmatprep.subr.bf16.mxu0 0
    %1252 = vmatpush1.bf16.msra.mxu0 0
    %1253 = vmatprep.subr.bf16.mxu0 0
    %1254 = vmatpush1.bf16.msra.mxu0 0
    %1255 = vmatprep.subr.bf16.mxu0 0
    %1256 = vmatpush1.bf16.msra.mxu0 0
    %1257 = vmatprep.subr.bf16.mxu0 0
    %1258 = vmatpush1.bf16.msra.mxu0 0
    %1259 = vmatprep.subr.bf16.mxu0 0
    %1260 = vmatpush1.bf16.msra.mxu0 0
    %1261 = vmatprep.subr.bf16.mxu0 0
    %1262 = vmatpush1.bf16.msra.mxu0 0
    %1263 = vmatprep.subr.bf16.mxu0 0
    %1264 = vmatpush1.bf16.msra.mxu0 0
    %1265 = vmatprep.mubr.bf16.mxu0 0
    %1266 = vmatmul.mubr.bf16.gmra.mrb[0].mxu0 %v1191
    %v1267 = vpop.f32.mrb[0].mxu0
    %v1268 = vadd.f32 0.0, %v1267
    %v1269 = vpop.f32.mrb[0].mxu0
    %v1270 = vadd.f32 0.0, %v1269
    %v1271 = vpop.f32.mrb[0].mxu0
    %v1272 = vpop.f32.mrb[0].mxu0
    %1273 = vdwg.mxu0
    %v1274 = vadd.f32 %v1187, %v1227
    %v1275 = vadd.f32 %v1188, %v1229
    %v1276 = vadd.f32 %v1189, %v1268
    %v1277 = vadd.f32 %v1190, %v1270
    %v1278 = vxor.u32 %v1274, 2147483648
    %v1279 = vmul.f32 %v1278, 1.442695
    %v1280 = vpow.pop %v1279
    %v1281 = vadd.f32 %v1280, 1.0
    %v1282 = vrcp.pop %v1281
    %v1283 = vmul.f32 1.0, %v1282
    %v1284 = vxor.u32 %v1275, 2147483648
    %v1285 = vmul.f32 %v1284, 1.442695
    %v1286 = vpow.pop %v1285
    %v1287 = vadd.f32 %v1286, 1.0
    %v1288 = vrcp.pop %v1287
    %v1289 = vmul.f32 1.0, %v1288
    %v1290 = vtanh.pop %v1276
    %v1291 = vxor.u32 %v1277, 2147483648
    %v1292 = vmul.f32 %v1291, 1.442695
    %v1293 = vpow.pop %v1292
    %v1294 = vadd.f32 %v1293, 1.0
    %v1295 = vrcp.pop %v1294
    %v1296 = vmul.f32 1.0, %v1295
    %v1297 = vmul.f32 %v1289, %v1185
    %v1298 = vmul.f32 %v1283, %v1290
    %v1299 = vadd.f32 %v1297, %v1298
    %v1300 = vtanh.pop %v1299
    %v1301 = vmul.f32 %v1296, %v1300
    %s1302 = scalar_lea.vmem %s1, 56
    %v1303 = vld [vmem:[%s1302] sm:$0xff]
    %vm1304 = vcmp.gt.f32.partialorder %v1303, 0.0
    %v1305 = vsel %vm1304, 1, 0
    %1306 = vset.pattern.permute.xlu0 0
    %1307 = vperm.xlu0 %1306, %v1305
    %v1308 = vpop.permute.xlu0 %1307
    %vm1309 = vcmp.eq.s32.totalorder %v1308, 1
    %v1310 = vsel %vm1309, %v1301, %v1184
    %v1311 = vsel %vm1309, %v1299, %v1185
    %1312 = vst [vmem:[#allocation2] sm:$0xff] %v1310
    %1313 = vst [vmem:[#allocation3] sm:$0xff] %v1311
    %s1314 = scalar_lea.vmem [#allocation4], 56
    %1315 = vst [vmem:[%s1314] sm:$0xff] %v1310
    %v1316 = vld [vmem:[#allocation4] sm:$0xff]
    %v1317 = vld [vmem:[#allocation4 + $0x8] sm:$0xff]
    %v1318 = vld [vmem:[#allocation4 + $0x10] sm:$0xff]
    %v1319 = vld [vmem:[#allocation4 + $0x18] sm:$0xff]
    %v1320 = vld [vmem:[#allocation4 + $0x20] sm:$0xff]
    %v1321 = vld [vmem:[#allocation4 + $0x28] sm:$0xff]
    %v1322 = vld [vmem:[#allocation4 + $0x30] sm:$0xff]
    %v1323 = vld [vmem:[#allocation4 + $0x38] sm:$0xff]
    %v1324 = vpack.c.bf16 %v1317, %v1316
    %v1325 = vpack.c.bf16 %v1319, %v1318
    %v1326 = vpack.c.bf16 %v1321, %v1320
    %v1327 = vpack.c.bf16 %v1323, %v1322
    %s1328 = scalar_lea.vmem [#allocation11], 256
    %v1329 = vld [vmem:[%s1328] sm:$0xff]
    %v1330 = vld [vmem:[%s1328 + $0x8] sm:$0xff]
    %v1331 = vld [vmem:[%s1328 + $0x10] sm:$0xff]
    %v1332 = vld [vmem:[%s1328 + $0x18] sm:$0xff]
    %v1333 = vld [vmem:[%s1328 + $0x20] sm:$0xff]
    %v1334 = vld [vmem:[%s1328 + $0x28] sm:$0xff]
    %v1335 = vld [vmem:[%s1328 + $0x30] sm:$0xff]
    %v1336 = vld [vmem:[%s1328 + $0x38] sm:$0xff]
    %v1337 = vld [vmem:[%s1328 + $0x40] sm:$0xff]
    %v1338 = vld [vmem:[%s1328 + $0x48] sm:$0xff]
    %v1339 = vld [vmem:[%s1328 + $0x50] sm:$0xff]
    %v1340 = vld [vmem:[%s1328 + $0x58] sm:$0xff]
    %v1341 = vld [vmem:[%s1328 + $0x60] sm:$0xff]
    %v1342 = vld [vmem:[%s1328 + $0x68] sm:$0xff]
    %v1343 = vld [vmem:[%s1328 + $0x70] sm:$0xff]
    %v1344 = vld [vmem:[%s1328 + $0x78] sm:$0xff]
    %v1345 = vld [vmem:[%s1328 + $0x80] sm:$0xff]
    %v1346 = vld [vmem:[%s1328 + $0x88] sm:$0xff]
    %v1347 = vld [vmem:[%s1328 + $0x90] sm:$0xff]
    %v1348 = vld [vmem:[%s1328 + $0x98] sm:$0xff]
    %v1349 = vld [vmem:[%s1328 + $0xa0] sm:$0xff]
    %v1350 = vld [vmem:[%s1328 + $0xa8] sm:$0xff]
    %v1351 = vld [vmem:[%s1328 + $0xb0] sm:$0xff]
    %v1352 = vld [vmem:[%s1328 + $0xb8] sm:$0xff]
    %v1353 = vld [vmem:[%s1328 + $0xc0] sm:$0xff]
    %v1354 = vld [vmem:[%s1328 + $0xc8] sm:$0xff]
    %v1355 = vld [vmem:[%s1328 + $0xd0] sm:$0xff]
    %v1356 = vld [vmem:[%s1328 + $0xd8] sm:$0xff]
    %v1357 = vld [vmem:[%s1328 + $0xe0] sm:$0xff]
    %v1358 = vld [vmem:[%s1328 + $0xe8] sm:$0xff]
    %v1359 = vld [vmem:[%s1328 + $0xf0] sm:$0xff]
    %v1360 = vld [vmem:[%s1328 + $0xf8] sm:$0xff]
    %s1361 = scalar_lea.vmem %s4, 4
    %v1362 = vld [vmem:[%s1361] sm:$0xf]
    %v1364 = vlaneseq
    %v1365 = vshrl.u32 %v1364, 7
    %v1366 = vsub.s32 0, %v1365
    %v1367 = vrot.slane %v1362, %v1366
    %v1368 = vlaneseq
    %v1369 = vshrl.u32 %v1368, 7
    %v1370 = vsub.s32 1, %v1369
    %v1371 = vrot.slane %v1362, %v1370
    %v1372 = vlaneseq
    %v1373 = vshrl.u32 %v1372, 7
    %v1374 = vsub.s32 2, %v1373
    %v1375 = vrot.slane %v1362, %v1374
    %v1376 = vlaneseq
    %v1377 = vshrl.u32 %v1376, 7
    %v1378 = vsub.s32 3, %v1377
    %v1379 = vrot.slane %v1362, %v1378
    %v1416 = vunpack.c.l.b16 %v1329
    %v1417 = vunpack.c.h.b16 %v1329
    %v1418 = vunpack.c.l.b16 %v1330
    %v1419 = vunpack.c.h.b16 %v1330
    %v1420 = vunpack.c.l.b16 %v1331
    %v1421 = vunpack.c.h.b16 %v1331
    %v1422 = vunpack.c.l.b16 %v1332
    %v1423 = vunpack.c.h.b16 %v1332
    %v1424 = vunpack.c.l.b16 %v1333
    %v1425 = vunpack.c.h.b16 %v1333
    %v1426 = vunpack.c.l.b16 %v1334
    %v1427 = vunpack.c.h.b16 %v1334
    %v1428 = vunpack.c.l.b16 %v1335
    %v1429 = vunpack.c.h.b16 %v1335
    %v1430 = vunpack.c.l.b16 %v1336
    %v1431 = vunpack.c.h.b16 %v1336
    %v1432 = vunpack.c.l.b16 %v1337
    %v1433 = vunpack.c.h.b16 %v1337
    %v1434 = vunpack.c.l.b16 %v1338
    %v1435 = vunpack.c.h.b16 %v1338
    %v1436 = vunpack.c.l.b16 %v1339
    %v1437 = vunpack.c.h.b16 %v1339
    %v1438 = vunpack.c.l.b16 %v1340
    %v1439 = vunpack.c.h.b16 %v1340
    %v1440 = vunpack.c.l.b16 %v1341
    %v1441 = vunpack.c.h.b16 %v1341
    %v1442 = vunpack.c.l.b16 %v1342
    %v1443 = vunpack.c.h.b16 %v1342
    %v1444 = vunpack.c.l.b16 %v1343
    %v1445 = vunpack.c.h.b16 %v1343
    %v1446 = vunpack.c.l.b16 %v1344
    %v1447 = vunpack.c.h.b16 %v1344
    %v1448 = vunpack.c.l.b16 %v1345
    %v1449 = vunpack.c.h.b16 %v1345
    %v1450 = vunpack.c.l.b16 %v1346
    %v1451 = vunpack.c.h.b16 %v1346
    %v1452 = vunpack.c.l.b16 %v1347
    %v1453 = vunpack.c.h.b16 %v1347
    %v1454 = vunpack.c.l.b16 %v1348
    %v1455 = vunpack.c.h.b16 %v1348
    %v1456 = vunpack.c.l.b16 %v1349
    %v1457 = vunpack.c.h.b16 %v1349
    %v1458 = vunpack.c.l.b16 %v1350
    %v1459 = vunpack.c.h.b16 %v1350
    %v1460 = vunpack.c.l.b16 %v1351
    %v1461 = vunpack.c.h.b16 %v1351
    %v1462 = vunpack.c.l.b16 %v1352
    %v1463 = vunpack.c.h.b16 %v1352
    %v1464 = vunpack.c.l.b16 %v1353
    %v1465 = vunpack.c.h.b16 %v1353
    %v1466 = vunpack.c.l.b16 %v1354
    %v1467 = vunpack.c.h.b16 %v1354
    %v1468 = vunpack.c.l.b16 %v1355
    %v1469 = vunpack.c.h.b16 %v1355
    %v1470 = vunpack.c.l.b16 %v1356
    %v1471 = vunpack.c.h.b16 %v1356
    %v1472 = vunpack.c.l.b16 %v1357
    %v1473 = vunpack.c.h.b16 %v1357
    %v1474 = vunpack.c.l.b16 %v1358
    %v1475 = vunpack.c.h.b16 %v1358
    %v1476 = vunpack.c.l.b16 %v1359
    %v1477 = vunpack.c.h.b16 %v1359
    %v1478 = vunpack.c.l.b16 %v1360
    %v1479 = vunpack.c.h.b16 %v1360
    %v1480 = vpack.c.b16 %v1420, %v1416
    %v1481 = vpack.c.b16 %v1421, %v1417
    %v1482 = vpack.c.b16 %v1422, %v1418
    %v1483 = vpack.c.b16 %v1423, %v1419
    %v1484 = vpack.c.b16 %v1428, %v1424
    %v1485 = vpack.c.b16 %v1429, %v1425
    %v1486 = vpack.c.b16 %v1430, %v1426
    %v1487 = vpack.c.b16 %v1431, %v1427
    %v1488 = vpack.c.b16 %v1436, %v1432
    %v1489 = vpack.c.b16 %v1437, %v1433
    %v1490 = vpack.c.b16 %v1438, %v1434
    %v1491 = vpack.c.b16 %v1439, %v1435
    %v1492 = vpack.c.b16 %v1444, %v1440
    %v1493 = vpack.c.b16 %v1445, %v1441
    %v1494 = vpack.c.b16 %v1446, %v1442
    %v1495 = vpack.c.b16 %v1447, %v1443
    %v1496 = vpack.c.b16 %v1452, %v1448
    %v1497 = vpack.c.b16 %v1453, %v1449
    %v1498 = vpack.c.b16 %v1454, %v1450
    %v1499 = vpack.c.b16 %v1455, %v1451
    %v1500 = vpack.c.b16 %v1460, %v1456
    %v1501 = vpack.c.b16 %v1461, %v1457
    %v1502 = vpack.c.b16 %v1462, %v1458
    %v1503 = vpack.c.b16 %v1463, %v1459
    %v1504 = vpack.c.b16 %v1468, %v1464
    %v1505 = vpack.c.b16 %v1469, %v1465
    %v1506 = vpack.c.b16 %v1470, %v1466
    %v1507 = vpack.c.b16 %v1471, %v1467
    %v1508 = vpack.c.b16 %v1476, %v1472
    %v1509 = vpack.c.b16 %v1477, %v1473
    %v1510 = vpack.c.b16 %v1478, %v1474
    %v1511 = vpack.c.b16 %v1479, %v1475
    %1544 = vmatprep.subr.bf16.mxu0 %v1481
    %1545 = vmatpush1.bf16.msra.mxu0 %v1480
    %1546 = vmatprep.subr.bf16.mxu0 %v1485
    %1547 = vmatpush1.bf16.msra.mxu0 %v1484
    %1548 = vmatprep.subr.bf16.mxu0 %v1489
    %1549 = vmatpush1.bf16.msra.mxu0 %v1488
    %1550 = vmatprep.subr.bf16.mxu0 %v1493
    %1551 = vmatpush1.bf16.msra.mxu0 %v1492
    %1552 = vmatprep.subr.bf16.mxu0 %v1497
    %1553 = vmatpush1.bf16.msra.mxu0 %v1496
    %1554 = vmatprep.subr.bf16.mxu0 %v1501
    %1555 = vmatpush1.bf16.msra.mxu0 %v1500
    %1556 = vmatprep.subr.bf16.mxu0 %v1505
    %1557 = vmatpush1.bf16.msra.mxu0 %v1504
    %1558 = vmatprep.subr.bf16.mxu0 %v1509
    %1559 = vmatpush1.bf16.msra.mxu0 %v1508
    %1560 = vmatprep.subr.bf16.mxu0 0
    %1561 = vmatpush1.bf16.msra.mxu0 0
    %1562 = vmatprep.subr.bf16.mxu0 0
    %1563 = vmatpush1.bf16.msra.mxu0 0
    %1564 = vmatprep.subr.bf16.mxu0 0
    %1565 = vmatpush1.bf16.msra.mxu0 0
    %1566 = vmatprep.subr.bf16.mxu0 0
    %1567 = vmatpush1.bf16.msra.mxu0 0
    %1568 = vmatprep.subr.bf16.mxu0 0
    %1569 = vmatpush1.bf16.msra.mxu0 0
    %1570 = vmatprep.subr.bf16.mxu0 0
    %1571 = vmatpush1.bf16.msra.mxu0 0
    %1572 = vmatprep.subr.bf16.mxu0 0
    %1573 = vmatpush1.bf16.msra.mxu0 0
    %1574 = vmatprep.subr.bf16.mxu0 0
    %1575 = vmatpush1.bf16.msra.mxu0 0
    %1576 = vmatprep.mubr.bf16.mxu0 0
    %1577 = vmatmul.mubr.bf16.gmra.mrb[0].mxu0 %v1324
    %v1578 = vpop.f32.mrb[0].mxu0
    %v1579 = vadd.f32 %v1367, %v1578
    %v1580 = vpop.f32.mrb[0].mxu0
    %v1581 = vadd.f32 %v1371, %v1580
    %v1582 = vpop.f32.mrb[0].mxu0
    %v1583 = vadd.f32 %v1367, %v1582
    %v1584 = vpop.f32.mrb[0].mxu0
    %v1585 = vadd.f32 %v1371, %v1584
    %1586 = vmatprep.mubr.bf16.mxu0 0
    %1587 = vmatmul.mubr.bf16.gmra.mrb[0].mxu0 %v1325
    %v1588 = vpop.f32.mrb[0].mxu0
    %v1589 = vadd.f32 %v1367, %v1588
    %v1590 = vpop.f32.mrb[0].mxu0
    %v1591 = vadd.f32 %v1371, %v1590
    %v1592 = vpop.f32.mrb[0].mxu0
    %v1593 = vadd.f32 %v1367, %v1592
    %v1594 = vpop.f32.mrb[0].mxu0
    %v1595 = vadd.f32 %v1371, %v1594
    %1596 = vmatprep.mubr.bf16.mxu0 0
    %1597 = vmatmul.mubr.bf16.gmra.mrb[0].mxu0 %v1326
    %v1598 = vpop.f32.mrb[0].mxu0
    %v1599 = vadd.f32 %v1367, %v1598
    %v1600 = vpop.f32.mrb[0].mxu0
    %v1601 = vadd.f32 %v1371, %v1600
    %v1602 = vpop.f32.mrb[0].mxu0
    %v1603 = vadd.f32 %v1367, %v1602
    %v1604 = vpop.f32.mrb[0].mxu0
    %v1605 = vadd.f32 %v1371, %v1604
    %1606 = vmatprep.mubr.bf16.mxu0 0
    %1607 = vmatmul.mubr.bf16.gmra.mrb[0].mxu0 %v1327
    %v1608 = vpop.f32.mrb[0].mxu0
    %v1609 = vadd.f32 %v1367, %v1608
    %v1610 = vpop.f32.mrb[0].mxu0
    %v1611 = vadd.f32 %v1371, %v1610
    %v1612 = vpop.f32.mrb[0].mxu0
    %v1613 = vadd.f32 %v1367, %v1612
    %v1614 = vpop.f32.mrb[0].mxu0
    %v1615 = vadd.f32 %v1371, %v1614
    %1616 = vdwg.mxu0
    %1617 = vmatprep.subr.bf16.mxu0 %v1483
    %1618 = vmatpush1.bf16.msra.mxu0 %v1482
    %1619 = vmatprep.subr.bf16.mxu0 %v1487
    %1620 = vmatpush1.bf16.msra.mxu0 %v1486
    %1621 = vmatprep.subr.bf16.mxu0 %v1491
    %1622 = vmatpush1.bf16.msra.mxu0 %v1490
    %1623 = vmatprep.subr.bf16.mxu0 %v1495
    %1624 = vmatpush1.bf16.msra.mxu0 %v1494
    %1625 = vmatprep.subr.bf16.mxu0 %v1499
    %1626 = vmatpush1.bf16.msra.mxu0 %v1498
    %1627 = vmatprep.subr.bf16.mxu0 %v1503
    %1628 = vmatpush1.bf16.msra.mxu0 %v1502
    %1629 = vmatprep.subr.bf16.mxu0 %v1507
    %1630 = vmatpush1.bf16.msra.mxu0 %v1506
    %1631 = vmatprep.subr.bf16.mxu0 %v1511
    %1632 = vmatpush1.bf16.msra.mxu0 %v1510
    %1633 = vmatprep.subr.bf16.mxu0 0
    %1634 = vmatpush1.bf16.msra.mxu0 0
    %1635 = vmatprep.subr.bf16.mxu0 0
    %1636 = vmatpush1.bf16.msra.mxu0 0
    %1637 = vmatprep.subr.bf16.mxu0 0
    %1638 = vmatpush1.bf16.msra.mxu0 0
    %1639 = vmatprep.subr.bf16.mxu0 0
    %1640 = vmatpush1.bf16.msra.mxu0 0
    %1641 = vmatprep.subr.bf16.mxu0 0
    %1642 = vmatpush1.bf16.msra.mxu0 0
    %1643 = vmatprep.subr.bf16.mxu0 0
    %1644 = vmatpush1.bf16.msra.mxu0 0
    %1645 = vmatprep.subr.bf16.mxu0 0
    %1646 = vmatpush1.bf16.msra.mxu0 0
    %1647 = vmatprep.subr.bf16.mxu0 0
    %1648 = vmatpush1.bf16.msra.mxu0 0
    %1649 = vmatprep.mubr.bf16.mxu0 0
    %1650 = vmatmul.mubr.bf16.gmra.mrb[0].mxu0 %v1324
    %v1651 = vpop.f32.mrb[0].mxu0
    %v1652 = vadd.f32 %v1375, %v1651
    %v1653 = vpop.f32.mrb[0].mxu0
    %v1654 = vadd.f32 %v1379, %v1653
    %v1655 = vpop.f32.mrb[0].mxu0
    %v1656 = vadd.f32 %v1375, %v1655
    %v1657 = vpop.f32.mrb[0].mxu0
    %v1658 = vadd.f32 %v1379, %v1657
    %1659 = vmatprep.mubr.bf16.mxu0 0
    %1660 = vmatmul.mubr.bf16.gmra.mrb[0].mxu0 %v1325
    %v1661 = vpop.f32.mrb[0].mxu0
    %v1662 = vadd.f32 %v1375, %v1661
    %v1663 = vpop.f32.mrb[0].mxu0
    %v1664 = vadd.f32 %v1379, %v1663
    %v1665 = vpop.f32.mrb[0].mxu0
    %v1666 = vadd.f32 %v1375, %v1665
    %v1667 = vpop.f32.mrb[0].mxu0
    %v1668 = vadd.f32 %v1379, %v1667
    %1669 = vmatprep.mubr.bf16.mxu0 0
    %1670 = vmatmul.mubr.bf16.gmra.mrb[0].mxu0 %v1326
    %v1671 = vpop.f32.mrb[0].mxu0
    %v1672 = vadd.f32 %v1375, %v1671
    %v1673 = vpop.f32.mrb[0].mxu0
    %v1674 = vadd.f32 %v1379, %v1673
    %v1675 = vpop.f32.mrb[0].mxu0
    %v1676 = vadd.f32 %v1375, %v1675
    %v1677 = vpop.f32.mrb[0].mxu0
    %v1678 = vadd.f32 %v1379, %v1677
    %1679 = vmatprep.mubr.bf16.mxu0 0
    %1680 = vmatmul.mubr.bf16.gmra.mrb[0].mxu0 %v1327
    %v1681 = vpop.f32.mrb[0].mxu0
    %v1682 = vadd.f32 %v1375, %v1681
    %v1683 = vpop.f32.mrb[0].mxu0
    %v1684 = vadd.f32 %v1379, %v1683
    %v1685 = vpop.f32.mrb[0].mxu0
    %v1686 = vadd.f32 %v1375, %v1685
    %v1687 = vpop.f32.mrb[0].mxu0
    %v1688 = vadd.f32 %v1379, %v1687
    %1689 = vdwg.mxu0
    %1690 = vst [vmem:[#allocation5] sm:$0xff] %v1579
    %1691 = vst [vmem:[#allocation5 + $0x8] sm:$0xff] %v1581
    %1692 = vst [vmem:[#allocation5 + $0x10] sm:$0xff] %v1652
    %1693 = vst [vmem:[#allocation5 + $0x18] sm:$0xff] %v1654
    %1694 = vst [vmem:[#allocation5 + $0x20] sm:$0xff] %v1583
    %1695 = vst [vmem:[#allocation5 + $0x28] sm:$0xff] %v1585
    %1696 = vst [vmem:[#allocation5 + $0x30] sm:$0xff] %v1656
    %1697 = vst [vmem:[#allocation5 + $0x38] sm:$0xff] %v1658
    %1698 = vst [vmem:[#allocation5 + $0x40] sm:$0xff] %v1589
    %1699 = vst [vmem:[#allocation5 + $0x48] sm:$0xff] %v1591
    %1700 = vst [vmem:[#allocation5 + $0x50] sm:$0xff] %v1662
    %1701 = vst [vmem:[#allocation5 + $0x58] sm:$0xff] %v1664
    %1702 = vst [vmem:[#allocation5 + $0x60] sm:$0xff] %v1593
    %1703 = vst [vmem:[#allocation5 + $0x68] sm:$0xff] %v1595
    %1704 = vst [vmem:[#allocation5 + $0x70] sm:$0xff] %v1666
    %1705 = vst [vmem:[#allocation5 + $0x78] sm:$0xff] %v1668
    %1706 = vst [vmem:[#allocation5 + $0x80] sm:$0xff] %v1599
    %1707 = vst [vmem:[#allocation5 + $0x88] sm:$0xff] %v1601
    %1708 = vst [vmem:[#allocation5 + $0x90] sm:$0xff] %v1672
    %1709 = vst [vmem:[#allocation5 + $0x98] sm:$0xff] %v1674
    %1710 = vst [vmem:[#allocation5 + $0xa0] sm:$0xff] %v1603
    %1711 = vst [vmem:[#allocation5 + $0xa8] sm:$0xff] %v1605
    %1712 = vst [vmem:[#allocation5 + $0xb0] sm:$0xff] %v1676
    %1713 = vst [vmem:[#allocation5 + $0xb8] sm:$0xff] %v1678
    %1714 = vst [vmem:[#allocation5 + $0xc0] sm:$0xff] %v1609
    %1715 = vst [vmem:[#allocation5 + $0xc8] sm:$0xff] %v1611
    %1716 = vst [vmem:[#allocation5 + $0xd0] sm:$0xff] %v1682
    %1717 = vst [vmem:[#allocation5 + $0xd8] sm:$0xff] %v1684
    %1718 = vst [vmem:[#allocation5 + $0xe0] sm:$0xff] %v1613
    %1719 = vst [vmem:[#allocation5 + $0xe8] sm:$0xff] %v1615
    %1720 = vst [vmem:[#allocation5 + $0xf0] sm:$0xff] %v1686
    %1721 = vst [vmem:[#allocation5 + $0xf8] sm:$0xff] %v1688
    %s1722 = scalar_lea.vmem [#allocation9], 256
    %v1723 = vld [vmem:[%s1722] sm:$0xff]
    %v1724 = vld [vmem:[%s1722 + $0x8] sm:$0xff]
    %v1725 = vld [vmem:[%s1722 + $0x10] sm:$0xff]
    %v1726 = vld [vmem:[%s1722 + $0x18] sm:$0xff]
    %v1727 = vld [vmem:[%s1722 + $0x20] sm:$0xff]
    %v1728 = vld [vmem:[%s1722 + $0x28] sm:$0xff]
    %v1729 = vld [vmem:[%s1722 + $0x30] sm:$0xff]
    %v1730 = vld [vmem:[%s1722 + $0x38] sm:$0xff]
    %v1731 = vld [vmem:[%s1722 + $0x40] sm:$0xff]
    %v1732 = vld [vmem:[%s1722 + $0x48] sm:$0xff]
    %v1733 = vld [vmem:[%s1722 + $0x50] sm:$0xff]
    %v1734 = vld [vmem:[%s1722 + $0x58] sm:$0xff]
    %v1735 = vld [vmem:[%s1722 + $0x60] sm:$0xff]
    %v1736 = vld [vmem:[%s1722 + $0x68] sm:$0xff]
    %v1737 = vld [vmem:[%s1722 + $0x70] sm:$0xff]
    %v1738 = vld [vmem:[%s1722 + $0x78] sm:$0xff]
    %v1739 = vld [vmem:[%s1722 + $0x80] sm:$0xff]
    %v1740 = vld [vmem:[%s1722 + $0x88] sm:$0xff]
    %v1741 = vld [vmem:[%s1722 + $0x90] sm:$0xff]
    %v1742 = vld [vmem:[%s1722 + $0x98] sm:$0xff]
    %v1743 = vld [vmem:[%s1722 + $0xa0] sm:$0xff]
    %v1744 = vld [vmem:[%s1722 + $0xa8] sm:$0xff]
    %v1745 = vld [vmem:[%s1722 + $0xb0] sm:$0xff]
    %v1746 = vld [vmem:[%s1722 + $0xb8] sm:$0xff]
    %v1747 = vld [vmem:[%s1722 + $0xc0] sm:$0xff]
    %v1748 = vld [vmem:[%s1722 + $0xc8] sm:$0xff]
    %v1749 = vld [vmem:[%s1722 + $0xd0] sm:$0xff]
    %v1750 = vld [vmem:[%s1722 + $0xd8] sm:$0xff]
    %v1751 = vld [vmem:[%s1722 + $0xe0] sm:$0xff]
    %v1752 = vld [vmem:[%s1722 + $0xe8] sm:$0xff]
    %v1753 = vld [vmem:[%s1722 + $0xf0] sm:$0xff]
    %v1754 = vld [vmem:[%s1722 + $0xf8] sm:$0xff]
    %s1755 = scalar_lea.vmem [#allocation2], 8
    %v1756 = vld [vmem:[%s1755] sm:$0xff]
    %s1757 = scalar_lea.vmem [#allocation3], 8
    %v1758 = vld [vmem:[%s1757] sm:$0xff]
    %v1759 = vld [vmem:[#allocation5] sm:$0xff]
    %v1760 = vld [vmem:[#allocation5 + $0x8] sm:$0xff]
    %v1761 = vld [vmem:[#allocation5 + $0x10] sm:$0xff]
    %v1762 = vld [vmem:[#allocation5 + $0x18] sm:$0xff]
    %v1763 = vpack.c.bf16 %v1756, %v1756
    %v1796 = vunpack.c.l.b16 %v1723
    %v1797 = vunpack.c.h.b16 %v1723
    %v1798 = vunpack.c.l.b16 %v1724
    %v1799 = vunpack.c.h.b16 %v1724
    %v1800 = vunpack.c.l.b16 %v1725
    %v1801 = vunpack.c.h.b16 %v1725
    %v1802 = vunpack.c.l.b16 %v1726
    %v1803 = vunpack.c.h.b16 %v1726
    %v1804 = vunpack.c.l.b16 %v1727
    %v1805 = vunpack.c.h.b16 %v1727
    %v1806 = vunpack.c.l.b16 %v1728
    %v1807 = vunpack.c.h.b16 %v1728
    %v1808 = vunpack.c.l.b16 %v1729
    %v1809 = vunpack.c.h.b16 %v1729
    %v1810 = vunpack.c.l.b16 %v1730
    %v1811 = vunpack.c.h.b16 %v1730
    %v1812 = vunpack.c.l.b16 %v1731
    %v1813 = vunpack.c.h.b16 %v1731
    %v1814 = vunpack.c.l.b16 %v1732
    %v1815 = vunpack.c.h.b16 %v1732
    %v1816 = vunpack.c.l.b16 %v1733
    %v1817 = vunpack.c.h.b16 %v1733
    %v1818 = vunpack.c.l.b16 %v1734
    %v1819 = vunpack.c.h.b16 %v1734
    %v1820 = vunpack.c.l.b16 %v1735
    %v1821 = vunpack.c.h.b16 %v1735
    %v1822 = vunpack.c.l.b16 %v1736
    %v1823 = vunpack.c.h.b16 %v1736
    %v1824 = vunpack.c.l.b16 %v1737
    %v1825 = vunpack.c.h.b16 %v1737
    %v1826 = vunpack.c.l.b16 %v1738
    %v1827 = vunpack.c.h.b16 %v1738
    %v1828 = vunpack.c.l.b16 %v1739
    %v1829 = vunpack.c.h.b16 %v1739
    %v1830 = vunpack.c.l.b16 %v1740
    %v1831 = vunpack.c.h.b16 %v1740
    %v1832 = vunpack.c.l.b16 %v1741
    %v1833 = vunpack.c.h.b16 %v1741
    %v1834 = vunpack.c.l.b16 %v1742
    %v1835 = vunpack.c.h.b16 %v1742
    %v1836 = vunpack.c.l.b16 %v1743
    %v1837 = vunpack.c.h.b16 %v1743
    %v1838 = vunpack.c.l.b16 %v1744
    %v1839 = vunpack.c.h.b16 %v1744
    %v1840 = vunpack.c.l.b16 %v1745
    %v1841 = vunpack.c.h.b16 %v1745
    %v1842 = vunpack.c.l.b16 %v1746
    %v1843 = vunpack.c.h.b16 %v1746
    %v1844 = vunpack.c.l.b16 %v1747
    %v1845 = vunpack.c.h.b16 %v1747
    %v1846 = vunpack.c.l.b16 %v1748
    %v1847 = vunpack.c.h.b16 %v1748
    %v1848 = vunpack.c.l.b16 %v1749
    %v1849 = vunpack.c.h.b16 %v1749
    %v1850 = vunpack.c.l.b16 %v1750
    %v1851 = vunpack.c.h.b16 %v1750
    %v1852 = vunpack.c.l.b16 %v1751
    %v1853 = vunpack.c.h.b16 %v1751
    %v1854 = vunpack.c.l.b16 %v1752
    %v1855 = vunpack.c.h.b16 %v1752
    %v1856 = vunpack.c.l.b16 %v1753
    %v1857 = vunpack.c.h.b16 %v1753
    %v1858 = vunpack.c.l.b16 %v1754
    %v1859 = vunpack.c.h.b16 %v1754
    %v1860 = vpack.c.b16 %v1800, %v1796
    %v1861 = vpack.c.b16 %v1801, %v1797
    %v1862 = vpack.c.b16 %v1802, %v1798
    %v1863 = vpack.c.b16 %v1803, %v1799
    %v1864 = vpack.c.b16 %v1808, %v1804
    %v1865 = vpack.c.b16 %v1809, %v1805
    %v1866 = vpack.c.b16 %v1810, %v1806
    %v1867 = vpack.c.b16 %v1811, %v1807
    %v1868 = vpack.c.b16 %v1816, %v1812
    %v1869 = vpack.c.b16 %v1817, %v1813
    %v1870 = vpack.c.b16 %v1818, %v1814
    %v1871 = vpack.c.b16 %v1819, %v1815
    %v1872 = vpack.c.b16 %v1824, %v1820
    %v1873 = vpack.c.b16 %v1825, %v1821
    %v1874 = vpack.c.b16 %v1826, %v1822
    %v1875 = vpack.c.b16 %v1827, %v1823
    %v1876 = vpack.c.b16 %v1832, %v1828
    %v1877 = vpack.c.b16 %v1833, %v1829
    %v1878 = vpack.c.b16 %v1834, %v1830
    %v1879 = vpack.c.b16 %v1835, %v1831
    %v1880 = vpack.c.b16 %v1840, %v1836
    %v1881 = vpack.c.b16 %v1841, %v1837
    %v1882 = vpack.c.b16 %v1842, %v1838
    %v1883 = vpack.c.b16 %v1843, %v1839
    %v1884 = vpack.c.b16 %v1848, %v1844
    %v1885 = vpack.c.b16 %v1849, %v1845
    %v1886 = vpack.c.b16 %v1850, %v1846
    %v1887 = vpack.c.b16 %v1851, %v1847
    %v1888 = vpack.c.b16 %v1856, %v1852
    %v1889 = vpack.c.b16 %v1857, %v1853
    %v1890 = vpack.c.b16 %v1858, %v1854
    %v1891 = vpack.c.b16 %v1859, %v1855
    %1924 = vmatprep.subr.bf16.mxu0 %v1861
    %1925 = vmatpush1.bf16.msra.mxu0 %v1860
    %1926 = vmatprep.subr.bf16.mxu0 %v1865
    %1927 = vmatpush1.bf16.msra.mxu0 %v1864
    %1928 = vmatprep.subr.bf16.mxu0 %v1869
    %1929 = vmatpush1.bf16.msra.mxu0 %v1868
    %1930 = vmatprep.subr.bf16.mxu0 %v1873
    %1931 = vmatpush1.bf16.msra.mxu0 %v1872
    %1932 = vmatprep.subr.bf16.mxu0 %v1877
    %1933 = vmatpush1.bf16.msra.mxu0 %v1876
    %1934 = vmatprep.subr.bf16.mxu0 %v1881
    %1935 = vmatpush1.bf16.msra.mxu0 %v1880
    %1936 = vmatprep.subr.bf16.mxu0 %v1885
    %1937 = vmatpush1.bf16.msra.mxu0 %v1884
    %1938 = vmatprep.subr.bf16.mxu0 %v1889
    %1939 = vmatpush1.bf16.msra.mxu0 %v1888
    %1940 = vmatprep.subr.bf16.mxu0 0
    %1941 = vmatpush1.bf16.msra.mxu0 0
    %1942 = vmatprep.subr.bf16.mxu0 0
    %1943 = vmatpush1.bf16.msra.mxu0 0
    %1944 = vmatprep.subr.bf16.mxu0 0
    %1945 = vmatpush1.bf16.msra.mxu0 0
    %1946 = vmatprep.subr.bf16.mxu0 0
    %1947 = vmatpush1.bf16.msra.mxu0 0
    %1948 = vmatprep.subr.bf16.mxu0 0
    %1949 = vmatpush1.bf16.msra.mxu0 0
    %1950 = vmatprep.subr.bf16.mxu0 0
    %1951 = vmatpush1.bf16.msra.mxu0 0
    %1952 = vmatprep.subr.bf16.mxu0 0
    %1953 = vmatpush1.bf16.msra.mxu0 0
    %1954 = vmatprep.subr.bf16.mxu0 0
    %1955 = vmatpush1.bf16.msra.mxu0 0
    %1956 = vmatprep.mubr.bf16.mxu0 0
    %1957 = vmatmul.mubr.bf16.gmra.mrb[0].mxu0 %v1763
    %v1958 = vpop.f32.mrb[0].mxu0
    %v1959 = vadd.f32 0.0, %v1958
    %v1960 = vpop.f32.mrb[0].mxu0
    %v1961 = vadd.f32 0.0, %v1960
    %v1962 = vpop.f32.mrb[0].mxu0
    %v1963 = vpop.f32.mrb[0].mxu0
    %1964 = vdwg.mxu0
    %1965 = vmatprep.subr.bf16.mxu0 %v1863
    %1966 = vmatpush1.bf16.msra.mxu0 %v1862
    %1967 = vmatprep.subr.bf16.mxu0 %v1867
    %1968 = vmatpush1.bf16.msra.mxu0 %v1866
    %1969 = vmatprep.subr.bf16.mxu0 %v1871
    %1970 = vmatpush1.bf16.msra.mxu0 %v1870
    %1971 = vmatprep.subr.bf16.mxu0 %v1875
    %1972 = vmatpush1.bf16.msra.mxu0 %v1874
    %1973 = vmatprep.subr.bf16.mxu0 %v1879
    %1974 = vmatpush1.bf16.msra.mxu0 %v1878
    %1975 = vmatprep.subr.bf16.mxu0 %v1883
    %1976 = vmatpush1.bf16.msra.mxu0 %v1882
    %1977 = vmatprep.subr.bf16.mxu0 %v1887
    %1978 = vmatpush1.bf16.msra.mxu0 %v1886
    %1979 = vmatprep.subr.bf16.mxu0 %v1891
    %1980 = vmatpush1.bf16.msra.mxu0 %v1890
    %1981 = vmatprep.subr.bf16.mxu0 0
    %1982 = vmatpush1.bf16.msra.mxu0 0
    %1983 = vmatprep.subr.bf16.mxu0 0
    %1984 = vmatpush1.bf16.msra.mxu0 0
    %1985 = vmatprep.subr.bf16.mxu0 0
    %1986 = vmatpush1.bf16.msra.mxu0 0
    %1987 = vmatprep.subr.bf16.mxu0 0
    %1988 = vmatpush1.bf16.msra.mxu0 0
    %1989 = vmatprep.subr.bf16.mxu0 0
    %1990 = vmatpush1.bf16.msra.mxu0 0
    %1991 = vmatprep.subr.bf16.mxu0 0
    %1992 = vmatpush1.bf16.msra.mxu0 0
    %1993 = vmatprep.subr.bf16.mxu0 0
    %1994 = vmatpush1.bf16.msra.mxu0 0
    %1995 = vmatprep.subr.bf16.mxu0 0
    %1996 = vmatpush1.bf16.msra.mxu0 0
    %1997 = vmatprep.mubr.bf16.mxu0 0
    %1998 = vmatmul.mubr.bf16.gmra.mrb[0].mxu0 %v1763
    %v1999 = vpop.f32.mrb[0].mxu0
    %v2000 = vadd.f32 0.0, %v1999
    %v2001 = vpop.f32.mrb[0].mxu0
    %v2002 = vadd.f32 0.0, %v2001
    %v2003 = vpop.f32.mrb[0].mxu0
    %v2004 = vpop.f32.mrb[0].mxu0
    %2005 = vdwg.mxu0
    %v2006 = vadd.f32 %v1759, %v1959
    %v2007 = vadd.f32 %v1760, %v1961
    %v2008 = vadd.f32 %v1761, %v2000
    %v2009 = vadd.f32 %v1762, %v2002
    %v2010 = vxor.u32 %v2006, 2147483648
    %v2011 = vmul.f32 %v2010, 1.442695
    %v2012 = vpow.pop %v2011
    %v2013 = vadd.f32 %v2012, 1.0
    %v2014 = vrcp.pop %v2013
    %v2015 = vmul.f32 1.0, %v2014
    %v2016 = vxor.u32 %v2007, 2147483648
    %v2017 = vmul.f32 %v2016, 1.442695
    %v2018 = vpow.pop %v2017
    %v2019 = vadd.f32 %v2018, 1.0
    %v2020 = vrcp.pop %v2019
    %v2021 = vmul.f32 1.0, %v2020
    %v2022 = vtanh.pop %v2008
    %v2023 = vxor.u32 %v2009, 2147483648
    %v2024 = vmul.f32 %v2023, 1.442695
    %v2025 = vpow.pop %v2024
    %v2026 = vadd.f32 %v2025, 1.0
    %v2027 = vrcp.pop %v2026
    %v2028 = vmul.f32 1.0, %v2027
    %v2029 = vmul.f32 %v2021, %v1758
    %v2030 = vmul.f32 %v2015, %v2022
    %v2031 = vadd.f32 %v2029, %v2030
    %v2032 = vtanh.pop %v2031
    %v2033 = vmul.f32 %v2028, %v2032
    %v2034 = vld [vmem:[%s1] sm:$0xff]
    %vm2035 = vcmp.gt.f32.partialorder %v2034, 0.0
    %v2036 = vsel %vm2035, 1, 0
    %2037 = vset.pattern.permute.xlu0 0
    %2038 = vperm.xlu0 %2037, %v2036
    %v2039 = vpop.permute.xlu0 %2038
    %vm2040 = vcmp.eq.s32.totalorder %v2039, 1
    %v2041 = vsel %vm2040, %v2033, %v1756
    %v2042 = vsel %vm2040, %v2031, %v1758
    %2043 = vst [vmem:[%s1755] sm:$0xff] %v2041
    %2044 = vst [vmem:[%s1757] sm:$0xff] %v2042
    %v2045 = vsel %vm2040, %v2033, 0.0
    %2046 = vst [vmem:[#allocation12] sm:$0xff] %v2045
    %v2047 = vld [vmem:[%s1755] sm:$0xff]
    %v2048 = vld [vmem:[%s1757] sm:$0xff]
    %s2049 = scalar_lea.vmem [#allocation5], 32
    %v2050 = vld [vmem:[%s2049] sm:$0xff]
    %v2051 = vld [vmem:[%s2049 + $0x8] sm:$0xff]
    %v2052 = vld [vmem:[%s2049 + $0x10] sm:$0xff]
    %v2053 = vld [vmem:[%s2049 + $0x18] sm:$0xff]
    %v2054 = vpack.c.bf16 %v2047, %v2047
    %2055 = vmatprep.subr.bf16.mxu0 %v1861
    %2056 = vmatpush1.bf16.msra.mxu0 %v1860
    %2057 = vmatprep.subr.bf16.mxu0 %v1865
    %2058 = vmatpush1.bf16.msra.mxu0 %v1864
    %2059 = vmatprep.subr.bf16.mxu0 %v1869
    %2060 = vmatpush1.bf16.msra.mxu0 %v1868
    %2061 = vmatprep.subr.bf16.mxu0 %v1873
    %2062 = vmatpush1.bf16.msra.mxu0 %v1872
    %2063 = vmatprep.subr.bf16.mxu0 %v1877
    %2064 = vmatpush1.bf16.msra.mxu0 %v1876
    %2065 = vmatprep.subr.bf16.mxu0 %v1881
    %2066 = vmatpush1.bf16.msra.mxu0 %v1880
    %2067 = vmatprep.subr.bf16.mxu0 %v1885
    %2068 = vmatpush1.bf16.msra.mxu0 %v1884
    %2069 = vmatprep.subr.bf16.mxu0 %v1889
    %2070 = vmatpush1.bf16.msra.mxu0 %v1888
    %2071 = vmatprep.subr.bf16.mxu0 0
    %2072 = vmatpush1.bf16.msra.mxu0 0
    %2073 = vmatprep.subr.bf16.mxu0 0
    %2074 = vmatpush1.bf16.msra.mxu0 0
    %2075 = vmatprep.subr.bf16.mxu0 0
    %2076 = vmatpush1.bf16.msra.mxu0 0
    %2077 = vmatprep.subr.bf16.mxu0 0
    %2078 = vmatpush1.bf16.msra.mxu0 0
    %2079 = vmatprep.subr.bf16.mxu0 0
    %2080 = vmatpush1.bf16.msra.mxu0 0
    %2081 = vmatprep.subr.bf16.mxu0 0
    %2082 = vmatpush1.bf16.msra.mxu0 0
    %2083 = vmatprep.subr.bf16.mxu0 0
    %2084 = vmatpush1.bf16.msra.mxu0 0
    %2085 = vmatprep.subr.bf16.mxu0 0
    %2086 = vmatpush1.bf16.msra.mxu0 0
    %2087 = vmatprep.mubr.bf16.mxu0 0
    %2088 = vmatmul.mubr.bf16.gmra.mrb[0].mxu0 %v2054
    %v2089 = vpop.f32.mrb[0].mxu0
    %v2090 = vadd.f32 0.0, %v2089
    %v2091 = vpop.f32.mrb[0].mxu0
    %v2092 = vadd.f32 0.0, %v2091
    %v2093 = vpop.f32.mrb[0].mxu0
    %v2094 = vpop.f32.mrb[0].mxu0
    %2095 = vdwg.mxu0
    %2096 = vmatprep.subr.bf16.mxu0 %v1863
    %2097 = vmatpush1.bf16.msra.mxu0 %v1862
    %2098 = vmatprep.subr.bf16.mxu0 %v1867
    %2099 = vmatpush1.bf16.msra.mxu0 %v1866
    %2100 = vmatprep.subr.bf16.mxu0 %v1871
    %2101 = vmatpush1.bf16.msra.mxu0 %v1870
    %2102 = vmatprep.subr.bf16.mxu0 %v1875
    %2103 = vmatpush1.bf16.msra.mxu0 %v1874
    %2104 = vmatprep.subr.bf16.mxu0 %v1879
    %2105 = vmatpush1.bf16.msra.mxu0 %v1878
    %2106 = vmatprep.subr.bf16.mxu0 %v1883
    %2107 = vmatpush1.bf16.msra.mxu0 %v1882
    %2108 = vmatprep.subr.bf16.mxu0 %v1887
    %2109 = vmatpush1.bf16.msra.mxu0 %v1886
    %2110 = vmatprep.subr.bf16.mxu0 %v1891
    %2111 = vmatpush1.bf16.msra.mxu0 %v1890
    %2112 = vmatprep.subr.bf16.mxu0 0
    %2113 = vmatpush1.bf16.msra.mxu0 0
    %2114 = vmatprep.subr.bf16.mxu0 0
    %2115 = vmatpush1.bf16.msra.mxu0 0
    %2116 = vmatprep.subr.bf16.mxu0 0
    %2117 = vmatpush1.bf16.msra.mxu0 0
    %2118 = vmatprep.subr.bf16.mxu0 0
    %2119 = vmatpush1.bf16.msra.mxu0 0
    %2120 = vmatprep.subr.bf16.mxu0 0
    %2121 = vmatpush1.bf16.msra.mxu0 0
    %2122 = vmatprep.subr.bf16.mxu0 0
    %2123 = vmatpush1.bf16.msra.mxu0 0
    %2124 = vmatprep.subr.bf16.mxu0 0
    %2125 = vmatpush1.bf16.msra.mxu0 0
    %2126 = vmatprep.subr.bf16.mxu0 0
    %2127 = vmatpush1.bf16.msra.mxu0 0
    %2128 = vmatprep.mubr.bf16.mxu0 0
    %2129 = vmatmul.mubr.bf16.gmra.mrb[0].mxu0 %v2054
    %v2130 = vpop.f32.mrb[0].mxu0
    %v2131 = vadd.f32 0.0, %v2130
    %v2132 = vpop.f32.mrb[0].mxu0
    %v2133 = vadd.f32 0.0, %v2132
    %v2134 = vpop.f32.mrb[0].mxu0
    %v2135 = vpop.f32.mrb[0].mxu0
    %2136 = vdwg.mxu0
    %v2137 = vadd.f32 %v2050, %v2090
    %v2138 = vadd.f32 %v2051, %v2092
    %v2139 = vadd.f32 %v2052, %v2131
    %v2140 = vadd.f32 %v2053, %v2133
    %v2141 = vxor.u32 %v2137, 2147483648
    %v2142 = vmul.f32 %v2141, 1.442695
    %v2143 = vpow.pop %v2142
    %v2144 = vadd.f32 %v2143, 1.0
    %v2145 = vrcp.pop %v2144
    %v2146 = vmul.f32 1.0, %v2145
    %v2147 = vxor.u32 %v2138, 2147483648
    %v2148 = vmul.f32 %v2147, 1.442695
    %v2149 = vpow.pop %v2148
    %v2150 = vadd.f32 %v2149, 1.0
    %v2151 = vrcp.pop %v2150
    %v2152 = vmul.f32 1.0, %v2151
    %v2153 = vtanh.pop %v2139
    %v2154 = vxor.u32 %v2140, 2147483648
    %v2155 = vmul.f32 %v2154, 1.442695
    %v2156 = vpow.pop %v2155
    %v2157 = vadd.f32 %v2156, 1.0
    %v2158 = vrcp.pop %v2157
    %v2159 = vmul.f32 1.0, %v2158
    %v2160 = vmul.f32 %v2152, %v2048
    %v2161 = vmul.f32 %v2146, %v2153
    %v2162 = vadd.f32 %v2160, %v2161
    %v2163 = vtanh.pop %v2162
    %v2164 = vmul.f32 %v2159, %v2163
    %v2165 = vld [vmem:[%s510] sm:$0xff]
    %vm2166 = vcmp.gt.f32.partialorder %v2165, 0.0
    %v2167 = vsel %vm2166, 1, 0
    %2168 = vset.pattern.permute.xlu0 0
    %2169 = vperm.xlu0 %2168, %v2167
    %v2170 = vpop.permute.xlu0 %2169
    %vm2171 = vcmp.eq.s32.totalorder %v2170, 1
    %v2172 = vsel %vm2171, %v2164, %v2047
    %v2173 = vsel %vm2171, %v2162, %v2048
    %2174 = vst [vmem:[%s1755] sm:$0xff] %v2172
    %2175 = vst [vmem:[%s1757] sm:$0xff] %v2173
    %v2176 = vsel %vm2171, %v2164, 0.0
    %s2177 = scalar_lea.vmem [#allocation12], 8
    %2178 = vst [vmem:[%s2177] sm:$0xff] %v2176
    %v2179 = vld [vmem:[%s1755] sm:$0xff]
    %v2180 = vld [vmem:[%s1757] sm:$0xff]
    %s2181 = scalar_lea.vmem [#allocation5], 64
    %v2182 = vld [vmem:[%s2181] sm:$0xff]
    %v2183 = vld [vmem:[%s2181 + $0x8] sm:$0xff]
    %v2184 = vld [vmem:[%s2181 + $0x10] sm:$0xff]
    %v2185 = vld [vmem:[%s2181 + $0x18] sm:$0xff]
    %v2186 = vpack.c.bf16 %v2179, %v2179
    %2187 = vmatprep.subr.bf16.mxu0 %v1861
    %2188 = vmatpush1.bf16.msra.mxu0 %v1860
    %2189 = vmatprep.subr.bf16.mxu0 %v1865
    %2190 = vmatpush1.bf16.msra.mxu0 %v1864
    %2191 = vmatprep.subr.bf16.mxu0 %v1869
    %2192 = vmatpush1.bf16.msra.mxu0 %v1868
    %2193 = vmatprep.subr.bf16.mxu0 %v1873
    %2194 = vmatpush1.bf16.msra.mxu0 %v1872
    %2195 = vmatprep.subr.bf16.mxu0 %v1877
    %2196 = vmatpush1.bf16.msra.mxu0 %v1876
    %2197 = vmatprep.subr.bf16.mxu0 %v1881
    %2198 = vmatpush1.bf16.msra.mxu0 %v1880
    %2199 = vmatprep.subr.bf16.mxu0 %v1885
    %2200 = vmatpush1.bf16.msra.mxu0 %v1884
    %2201 = vmatprep.subr.bf16.mxu0 %v1889
    %2202 = vmatpush1.bf16.msra.mxu0 %v1888
    %2203 = vmatprep.subr.bf16.mxu0 0
    %2204 = vmatpush1.bf16.msra.mxu0 0
    %2205 = vmatprep.subr.bf16.mxu0 0
    %2206 = vmatpush1.bf16.msra.mxu0 0
    %2207 = vmatprep.subr.bf16.mxu0 0
    %2208 = vmatpush1.bf16.msra.mxu0 0
    %2209 = vmatprep.subr.bf16.mxu0 0
    %2210 = vmatpush1.bf16.msra.mxu0 0
    %2211 = vmatprep.subr.bf16.mxu0 0
    %2212 = vmatpush1.bf16.msra.mxu0 0
    %2213 = vmatprep.subr.bf16.mxu0 0
    %2214 = vmatpush1.bf16.msra.mxu0 0
    %2215 = vmatprep.subr.bf16.mxu0 0
    %2216 = vmatpush1.bf16.msra.mxu0 0
    %2217 = vmatprep.subr.bf16.mxu0 0
    %2218 = vmatpush1.bf16.msra.mxu0 0
    %2219 = vmatprep.mubr.bf16.mxu0 0
    %2220 = vmatmul.mubr.bf16.gmra.mrb[0].mxu0 %v2186
    %v2221 = vpop.f32.mrb[0].mxu0
    %v2222 = vadd.f32 0.0, %v2221
    %v2223 = vpop.f32.mrb[0].mxu0
    %v2224 = vadd.f32 0.0, %v2223
    %v2225 = vpop.f32.mrb[0].mxu0
    %v2226 = vpop.f32.mrb[0].mxu0
    %2227 = vdwg.mxu0
    %2228 = vmatprep.subr.bf16.mxu0 %v1863
    %2229 = vmatpush1.bf16.msra.mxu0 %v1862
    %2230 = vmatprep.subr.bf16.mxu0 %v1867
    %2231 = vmatpush1.bf16.msra.mxu0 %v1866
    %2232 = vmatprep.subr.bf16.mxu0 %v1871
    %2233 = vmatpush1.bf16.msra.mxu0 %v1870
    %2234 = vmatprep.subr.bf16.mxu0 %v1875
    %2235 = vmatpush1.bf16.msra.mxu0 %v1874
    %2236 = vmatprep.subr.bf16.mxu0 %v1879
    %2237 = vmatpush1.bf16.msra.mxu0 %v1878
    %2238 = vmatprep.subr.bf16.mxu0 %v1883
    %2239 = vmatpush1.bf16.msra.mxu0 %v1882
    %2240 = vmatprep.subr.bf16.mxu0 %v1887
    %2241 = vmatpush1.bf16.msra.mxu0 %v1886
    %2242 = vmatprep.subr.bf16.mxu0 %v1891
    %2243 = vmatpush1.bf16.msra.mxu0 %v1890
    %2244 = vmatprep.subr.bf16.mxu0 0
    %2245 = vmatpush1.bf16.msra.mxu0 0
    %2246 = vmatprep.subr.bf16.mxu0 0
    %2247 = vmatpush1.bf16.msra.mxu0 0
    %2248 = vmatprep.subr.bf16.mxu0 0
    %2249 = vmatpush1.bf16.msra.mxu0 0
    %2250 = vmatprep.subr.bf16.mxu0 0
    %2251 = vmatpush1.bf16.msra.mxu0 0
    %2252 = vmatprep.subr.bf16.mxu0 0
    %2253 = vmatpush1.bf16.msra.mxu0 0
    %2254 = vmatprep.subr.bf16.mxu0 0
    %2255 = vmatpush1.bf16.msra.mxu0 0
    %2256 = vmatprep.subr.bf16.mxu0 0
    %2257 = vmatpush1.bf16.msra.mxu0 0
    %2258 = vmatprep.subr.bf16.mxu0 0
    %2259 = vmatpush1.bf16.msra.mxu0 0
    %2260 = vmatprep.mubr.bf16.mxu0 0
    %2261 = vmatmul.mubr.bf16.gmra.mrb[0].mxu0 %v2186
    %v2262 = vpop.f32.mrb[0].mxu0
    %v2263 = vadd.f32 0.0, %v2262
    %v2264 = vpop.f32.mrb[0].mxu0
    %v2265 = vadd.f32 0.0, %v2264
    %v2266 = vpop.f32.mrb[0].mxu0
    %v2267 = vpop.f32.mrb[0].mxu0
    %2268 = vdwg.mxu0
    %v2269 = vadd.f32 %v2182, %v2222
    %v2270 = vadd.f32 %v2183, %v2224
    %v2271 = vadd.f32 %v2184, %v2263
    %v2272 = vadd.f32 %v2185, %v2265
    %v2273 = vxor.u32 %v2269, 2147483648
    %v2274 = vmul.f32 %v2273, 1.442695
    %v2275 = vpow.pop %v2274
    %v2276 = vadd.f32 %v2275, 1.0
    %v2277 = vrcp.pop %v2276
    %v2278 = vmul.f32 1.0, %v2277
    %v2279 = vxor.u32 %v2270, 2147483648
    %v2280 = vmul.f32 %v2279, 1.442695
    %v2281 = vpow.pop %v2280
    %v2282 = vadd.f32 %v2281, 1.0
    %v2283 = vrcp.pop %v2282
    %v2284 = vmul.f32 1.0, %v2283
    %v2285 = vtanh.pop %v2271
    %v2286 = vxor.u32 %v2272, 2147483648
    %v2287 = vmul.f32 %v2286, 1.442695
    %v2288 = vpow.pop %v2287
    %v2289 = vadd.f32 %v2288, 1.0
    %v2290 = vrcp.pop %v2289
    %v2291 = vmul.f32 1.0, %v2290
    %v2292 = vmul.f32 %v2284, %v2180
    %v2293 = vmul.f32 %v2278, %v2285
    %v2294 = vadd.f32 %v2292, %v2293
    %v2295 = vtanh.pop %v2294
    %v2296 = vmul.f32 %v2291, %v2295
    %v2297 = vld [vmem:[%s642] sm:$0xff]
    %vm2298 = vcmp.gt.f32.partialorder %v2297, 0.0
    %v2299 = vsel %vm2298, 1, 0
    %2300 = vset.pattern.permute.xlu0 0
    %2301 = vperm.xlu0 %2300, %v2299
    %v2302 = vpop.permute.xlu0 %2301
    %vm2303 = vcmp.eq.s32.totalorder %v2302, 1
    %v2304 = vsel %vm2303, %v2296, %v2179
    %v2305 = vsel %vm2303, %v2294, %v2180
    %2306 = vst [vmem:[%s1755] sm:$0xff] %v2304
    %2307 = vst [vmem:[%s1757] sm:$0xff] %v2305
    %v2308 = vsel %vm2303, %v2296, 0.0
    %s2309 = scalar_lea.vmem [#allocation12], 16
    %2310 = vst [vmem:[%s2309] sm:$0xff] %v2308
    %v2311 = vld [vmem:[%s1755] sm:$0xff]
    %v2312 = vld [vmem:[%s1757] sm:$0xff]
    %s2313 = scalar_lea.vmem [#allocation5], 96
    %v2314 = vld [vmem:[%s2313] sm:$0xff]
    %v2315 = vld [vmem:[%s2313 + $0x8] sm:$0xff]
    %v2316 = vld [vmem:[%s2313 + $0x10] sm:$0xff]
    %v2317 = vld [vmem:[%s2313 + $0x18] sm:$0xff]
    %v2318 = vpack.c.bf16 %v2311, %v2311
    %2319 = vmatprep.subr.bf16.mxu0 %v1861
    %2320 = vmatpush1.bf16.msra.mxu0 %v1860
    %2321 = vmatprep.subr.bf16.mxu0 %v1865
    %2322 = vmatpush1.bf16.msra.mxu0 %v1864
    %2323 = vmatprep.subr.bf16.mxu0 %v1869
    %2324 = vmatpush1.bf16.msra.mxu0 %v1868
    %2325 = vmatprep.subr.bf16.mxu0 %v1873
    %2326 = vmatpush1.bf16.msra.mxu0 %v1872
    %2327 = vmatprep.subr.bf16.mxu0 %v1877
    %2328 = vmatpush1.bf16.msra.mxu0 %v1876
    %2329 = vmatprep.subr.bf16.mxu0 %v1881
    %2330 = vmatpush1.bf16.msra.mxu0 %v1880
    %2331 = vmatprep.subr.bf16.mxu0 %v1885
    %2332 = vmatpush1.bf16.msra.mxu0 %v1884
    %2333 = vmatprep.subr.bf16.mxu0 %v1889
    %2334 = vmatpush1.bf16.msra.mxu0 %v1888
    %2335 = vmatprep.subr.bf16.mxu0 0
    %2336 = vmatpush1.bf16.msra.mxu0 0
    %2337 = vmatprep.subr.bf16.mxu0 0
    %2338 = vmatpush1.bf16.msra.mxu0 0
    %2339 = vmatprep.subr.bf16.mxu0 0
    %2340 = vmatpush1.bf16.msra.mxu0 0
    %2341 = vmatprep.subr.bf16.mxu0 0
    %2342 = vmatpush1.bf16.msra.mxu0 0
    %2343 = vmatprep.subr.bf16.mxu0 0
    %2344 = vmatpush1.bf16.msra.mxu0 0
    %2345 = vmatprep.subr.bf16.mxu0 0
    %2346 = vmatpush1.bf16.msra.mxu0 0
    %2347 = vmatprep.subr.bf16.mxu0 0
    %2348 = vmatpush1.bf16.msra.mxu0 0
    %2349 = vmatprep.subr.bf16.mxu0 0
    %2350 = vmatpush1.bf16.msra.mxu0 0
    %2351 = vmatprep.mubr.bf16.mxu0 0
    %2352 = vmatmul.mubr.bf16.gmra.mrb[0].mxu0 %v2318
    %v2353 = vpop.f32.mrb[0].mxu0
    %v2354 = vadd.f32 0.0, %v2353
    %v2355 = vpop.f32.mrb[0].mxu0
    %v2356 = vadd.f32 0.0, %v2355
    %v2357 = vpop.f32.mrb[0].mxu0
    %v2358 = vpop.f32.mrb[0].mxu0
    %2359 = vdwg.mxu0
    %2360 = vmatprep.subr.bf16.mxu0 %v1863
    %2361 = vmatpush1.bf16.msra.mxu0 %v1862
    %2362 = vmatprep.subr.bf16.mxu0 %v1867
    %2363 = vmatpush1.bf16.msra.mxu0 %v1866
    %2364 = vmatprep.subr.bf16.mxu0 %v1871
    %2365 = vmatpush1.bf16.msra.mxu0 %v1870
    %2366 = vmatprep.subr.bf16.mxu0 %v1875
    %2367 = vmatpush1.bf16.msra.mxu0 %v1874
    %2368 = vmatprep.subr.bf16.mxu0 %v1879
    %2369 = vmatpush1.bf16.msra.mxu0 %v1878
    %2370 = vmatprep.subr.bf16.mxu0 %v1883
    %2371 = vmatpush1.bf16.msra.mxu0 %v1882
    %2372 = vmatprep.subr.bf16.mxu0 %v1887
    %2373 = vmatpush1.bf16.msra.mxu0 %v1886
    %2374 = vmatprep.subr.bf16.mxu0 %v1891
    %2375 = vmatpush1.bf16.msra.mxu0 %v1890
    %2376 = vmatprep.subr.bf16.mxu0 0
    %2377 = vmatpush1.bf16.msra.mxu0 0
    %2378 = vmatprep.subr.bf16.mxu0 0
    %2379 = vmatpush1.bf16.msra.mxu0 0
    %2380 = vmatprep.subr.bf16.mxu0 0
    %2381 = vmatpush1.bf16.msra.mxu0 0
    %2382 = vmatprep.subr.bf16.mxu0 0
    %2383 = vmatpush1.bf16.msra.mxu0 0
    %2384 = vmatprep.subr.bf16.mxu0 0
    %2385 = vmatpush1.bf16.msra.mxu0 0
    %2386 = vmatprep.subr.bf16.mxu0 0
    %2387 = vmatpush1.bf16.msra.mxu0 0
    %2388 = vmatprep.subr.bf16.mxu0 0
    %2389 = vmatpush1.bf16.msra.mxu0 0
    %2390 = vmatprep.subr.bf16.mxu0 0
    %2391 = vmatpush1.bf16.msra.mxu0 0
    %2392 = vmatprep.mubr.bf16.mxu0 0
    %2393 = vmatmul.mubr.bf16.gmra.mrb[0].mxu0 %v2318
    %v2394 = vpop.f32.mrb[0].mxu0
    %v2395 = vadd.f32 0.0, %v2394
    %v2396 = vpop.f32.mrb[0].mxu0
    %v2397 = vadd.f32 0.0, %v2396
    %v2398 = vpop.f32.mrb[0].mxu0
    %v2399 = vpop.f32.mrb[0].mxu0
    %2400 = vdwg.mxu0
    %v2401 = vadd.f32 %v2314, %v2354
    %v2402 = vadd.f32 %v2315, %v2356
    %v2403 = vadd.f32 %v2316, %v2395
    %v2404 = vadd.f32 %v2317, %v2397
    %v2405 = vxor.u32 %v2401, 2147483648
    %v2406 = vmul.f32 %v2405, 1.442695
    %v2407 = vpow.pop %v2406
    %v2408 = vadd.f32 %v2407, 1.0
    %v2409 = vrcp.pop %v2408
    %v2410 = vmul.f32 1.0, %v2409
    %v2411 = vxor.u32 %v2402, 2147483648
    %v2412 = vmul.f32 %v2411, 1.442695
    %v2413 = vpow.pop %v2412
    %v2414 = vadd.f32 %v2413, 1.0
    %v2415 = vrcp.pop %v2414
    %v2416 = vmul.f32 1.0, %v2415
    %v2417 = vtanh.pop %v2403
    %v2418 = vxor.u32 %v2404, 2147483648
    %v2419 = vmul.f32 %v2418, 1.442695
    %v2420 = vpow.pop %v2419
    %v2421 = vadd.f32 %v2420, 1.0
    %v2422 = vrcp.pop %v2421
    %v2423 = vmul.f32 1.0, %v2422
    %v2424 = vmul.f32 %v2416, %v2312
    %v2425 = vmul.f32 %v2410, %v2417
    %v2426 = vadd.f32 %v2424, %v2425
    %v2427 = vtanh.pop %v2426
    %v2428 = vmul.f32 %v2423, %v2427
    %v2429 = vld [vmem:[%s774] sm:$0xff]
    %vm2430 = vcmp.gt.f32.partialorder %v2429, 0.0
    %v2431 = vsel %vm2430, 1, 0
    %2432 = vset.pattern.permute.xlu0 0
    %2433 = vperm.xlu0 %2432, %v2431
    %v2434 = vpop.permute.xlu0 %2433
    %vm2435 = vcmp.eq.s32.totalorder %v2434, 1
    %v2436 = vsel %vm2435, %v2428, %v2311
    %v2437 = vsel %vm2435, %v2426, %v2312
    %2438 = vst [vmem:[%s1755] sm:$0xff] %v2436
    %2439 = vst [vmem:[%s1757] sm:$0xff] %v2437
    %v2440 = vsel %vm2435, %v2428, 0.0
    %s2441 = scalar_lea.vmem [#allocation12], 24
    %2442 = vst [vmem:[%s2441] sm:$0xff] %v2440
    %v2443 = vld [vmem:[%s1755] sm:$0xff]
    %v2444 = vld [vmem:[%s1757] sm:$0xff]
    %s2445 = scalar_lea.vmem [#allocation5], 128
    %v2446 = vld [vmem:[%s2445] sm:$0xff]
    %v2447 = vld [vmem:[%s2445 + $0x8] sm:$0xff]
    %v2448 = vld [vmem:[%s2445 + $0x10] sm:$0xff]
    %v2449 = vld [vmem:[%s2445 + $0x18] sm:$0xff]
    %v2450 = vpack.c.bf16 %v2443, %v2443
    %2451 = vmatprep.subr.bf16.mxu0 %v1861
    %2452 = vmatpush1.bf16.msra.mxu0 %v1860
    %2453 = vmatprep.subr.bf16.mxu0 %v1865
    %2454 = vmatpush1.bf16.msra.mxu0 %v1864
    %2455 = vmatprep.subr.bf16.mxu0 %v1869
    %2456 = vmatpush1.bf16.msra.mxu0 %v1868
    %2457 = vmatprep.subr.bf16.mxu0 %v1873
    %2458 = vmatpush1.bf16.msra.mxu0 %v1872
    %2459 = vmatprep.subr.bf16.mxu0 %v1877
    %2460 = vmatpush1.bf16.msra.mxu0 %v1876
    %2461 = vmatprep.subr.bf16.mxu0 %v1881
    %2462 = vmatpush1.bf16.msra.mxu0 %v1880
    %2463 = vmatprep.subr.bf16.mxu0 %v1885
    %2464 = vmatpush1.bf16.msra.mxu0 %v1884
    %2465 = vmatprep.subr.bf16.mxu0 %v1889
    %2466 = vmatpush1.bf16.msra.mxu0 %v1888
    %2467 = vmatprep.subr.bf16.mxu0 0
    %2468 = vmatpush1.bf16.msra.mxu0 0
    %2469 = vmatprep.subr.bf16.mxu0 0
    %2470 = vmatpush1.bf16.msra.mxu0 0
    %2471 = vmatprep.subr.bf16.mxu0 0
    %2472 = vmatpush1.bf16.msra.mxu0 0
    %2473 = vmatprep.subr.bf16.mxu0 0
    %2474 = vmatpush1.bf16.msra.mxu0 0
    %2475 = vmatprep.subr.bf16.mxu0 0
    %2476 = vmatpush1.bf16.msra.mxu0 0
    %2477 = vmatprep.subr.bf16.mxu0 0
    %2478 = vmatpush1.bf16.msra.mxu0 0
    %2479 = vmatprep.subr.bf16.mxu0 0
    %2480 = vmatpush1.bf16.msra.mxu0 0
    %2481 = vmatprep.subr.bf16.mxu0 0
    %2482 = vmatpush1.bf16.msra.mxu0 0
    %2483 = vmatprep.mubr.bf16.mxu0 0
    %2484 = vmatmul.mubr.bf16.gmra.mrb[0].mxu0 %v2450
    %v2485 = vpop.f32.mrb[0].mxu0
    %v2486 = vadd.f32 0.0, %v2485
    %v2487 = vpop.f32.mrb[0].mxu0
    %v2488 = vadd.f32 0.0, %v2487
    %v2489 = vpop.f32.mrb[0].mxu0
    %v2490 = vpop.f32.mrb[0].mxu0
    %2491 = vdwg.mxu0
    %2492 = vmatprep.subr.bf16.mxu0 %v1863
    %2493 = vmatpush1.bf16.msra.mxu0 %v1862
    %2494 = vmatprep.subr.bf16.mxu0 %v1867
    %2495 = vmatpush1.bf16.msra.mxu0 %v1866
    %2496 = vmatprep.subr.bf16.mxu0 %v1871
    %2497 = vmatpush1.bf16.msra.mxu0 %v1870
    %2498 = vmatprep.subr.bf16.mxu0 %v1875
    %2499 = vmatpush1.bf16.msra.mxu0 %v1874
    %2500 = vmatprep.subr.bf16.mxu0 %v1879
    %2501 = vmatpush1.bf16.msra.mxu0 %v1878
    %2502 = vmatprep.subr.bf16.mxu0 %v1883
    %2503 = vmatpush1.bf16.msra.mxu0 %v1882
    %2504 = vmatprep.subr.bf16.mxu0 %v1887
    %2505 = vmatpush1.bf16.msra.mxu0 %v1886
    %2506 = vmatprep.subr.bf16.mxu0 %v1891
    %2507 = vmatpush1.bf16.msra.mxu0 %v1890
    %2508 = vmatprep.subr.bf16.mxu0 0
    %2509 = vmatpush1.bf16.msra.mxu0 0
    %2510 = vmatprep.subr.bf16.mxu0 0
    %2511 = vmatpush1.bf16.msra.mxu0 0
    %2512 = vmatprep.subr.bf16.mxu0 0
    %2513 = vmatpush1.bf16.msra.mxu0 0
    %2514 = vmatprep.subr.bf16.mxu0 0
    %2515 = vmatpush1.bf16.msra.mxu0 0
    %2516 = vmatprep.subr.bf16.mxu0 0
    %2517 = vmatpush1.bf16.msra.mxu0 0
    %2518 = vmatprep.subr.bf16.mxu0 0
    %2519 = vmatpush1.bf16.msra.mxu0 0
    %2520 = vmatprep.subr.bf16.mxu0 0
    %2521 = vmatpush1.bf16.msra.mxu0 0
    %2522 = vmatprep.subr.bf16.mxu0 0
    %2523 = vmatpush1.bf16.msra.mxu0 0
    %2524 = vmatprep.mubr.bf16.mxu0 0
    %2525 = vmatmul.mubr.bf16.gmra.mrb[0].mxu0 %v2450
    %v2526 = vpop.f32.mrb[0].mxu0
    %v2527 = vadd.f32 0.0, %v2526
    %v2528 = vpop.f32.mrb[0].mxu0
    %v2529 = vadd.f32 0.0, %v2528
    %v2530 = vpop.f32.mrb[0].mxu0
    %v2531 = vpop.f32.mrb[0].mxu0
    %2532 = vdwg.mxu0
    %v2533 = vadd.f32 %v2446, %v2486
    %v2534 = vadd.f32 %v2447, %v2488
    %v2535 = vadd.f32 %v2448, %v2527
    %v2536 = vadd.f32 %v2449, %v2529
    %v2537 = vxor.u32 %v2533, 2147483648
    %v2538 = vmul.f32 %v2537, 1.442695
    %v2539 = vpow.pop %v2538
    %v2540 = vadd.f32 %v2539, 1.0
    %v2541 = vrcp.pop %v2540
    %v2542 = vmul.f32 1.0, %v2541
    %v2543 = vxor.u32 %v2534, 2147483648
    %v2544 = vmul.f32 %v2543, 1.442695
    %v2545 = vpow.pop %v2544
    %v2546 = vadd.f32 %v2545, 1.0
    %v2547 = vrcp.pop %v2546
    %v2548 = vmul.f32 1.0, %v2547
    %v2549 = vtanh.pop %v2535
    %v2550 = vxor.u32 %v2536, 2147483648
    %v2551 = vmul.f32 %v2550, 1.442695
    %v2552 = vpow.pop %v2551
    %v2553 = vadd.f32 %v2552, 1.0
    %v2554 = vrcp.pop %v2553
    %v2555 = vmul.f32 1.0, %v2554
    %v2556 = vmul.f32 %v2548, %v2444
    %v2557 = vmul.f32 %v2542, %v2549
    %v2558 = vadd.f32 %v2556, %v2557
    %v2559 = vtanh.pop %v2558
    %v2560 = vmul.f32 %v2555, %v2559
    %v2561 = vld [vmem:[%s906] sm:$0xff]
    %vm2562 = vcmp.gt.f32.partialorder %v2561, 0.0
    %v2563 = vsel %vm2562, 1, 0
    %2564 = vset.pattern.permute.xlu0 0
    %2565 = vperm.xlu0 %2564, %v2563
    %v2566 = vpop.permute.xlu0 %2565
    %vm2567 = vcmp.eq.s32.totalorder %v2566, 1
    %v2568 = vsel %vm2567, %v2560, %v2443
    %v2569 = vsel %vm2567, %v2558, %v2444
    %2570 = vst [vmem:[%s1755] sm:$0xff] %v2568
    %2571 = vst [vmem:[%s1757] sm:$0xff] %v2569
    %v2572 = vsel %vm2567, %v2560, 0.0
    %s2573 = scalar_lea.vmem [#allocation12], 32
    %2574 = vst [vmem:[%s2573] sm:$0xff] %v2572
    %v2575 = vld [vmem:[%s1755] sm:$0xff]
    %v2576 = vld [vmem:[%s1757] sm:$0xff]
    %s2577 = scalar_lea.vmem [#allocation5], 160
    %v2578 = vld [vmem:[%s2577] sm:$0xff]
    %v2579 = vld [vmem:[%s2577 + $0x8] sm:$0xff]
    %v2580 = vld [vmem:[%s2577 + $0x10] sm:$0xff]
    %v2581 = vld [vmem:[%s2577 + $0x18] sm:$0xff]
    %v2582 = vpack.c.bf16 %v2575, %v2575
    %2583 = vmatprep.subr.bf16.mxu0 %v1861
    %2584 = vmatpush1.bf16.msra.mxu0 %v1860
    %2585 = vmatprep.subr.bf16.mxu0 %v1865
    %2586 = vmatpush1.bf16.msra.mxu0 %v1864
    %2587 = vmatprep.subr.bf16.mxu0 %v1869
    %2588 = vmatpush1.bf16.msra.mxu0 %v1868
    %2589 = vmatprep.subr.bf16.mxu0 %v1873
    %2590 = vmatpush1.bf16.msra.mxu0 %v1872
    %2591 = vmatprep.subr.bf16.mxu0 %v1877
    %2592 = vmatpush1.bf16.msra.mxu0 %v1876
    %2593 = vmatprep.subr.bf16.mxu0 %v1881
    %2594 = vmatpush1.bf16.msra.mxu0 %v1880
    %2595 = vmatprep.subr.bf16.mxu0 %v1885
    %2596 = vmatpush1.bf16.msra.mxu0 %v1884
    %2597 = vmatprep.subr.bf16.mxu0 %v1889
    %2598 = vmatpush1.bf16.msra.mxu0 %v1888
    %2599 = vmatprep.subr.bf16.mxu0 0
    %2600 = vmatpush1.bf16.msra.mxu0 0
    %2601 = vmatprep.subr.bf16.mxu0 0
    %2602 = vmatpush1.bf16.msra.mxu0 0
    %2603 = vmatprep.subr.bf16.mxu0 0
    %2604 = vmatpush1.bf16.msra.mxu0 0
    %2605 = vmatprep.subr.bf16.mxu0 0
    %2606 = vmatpush1.bf16.msra.mxu0 0
    %2607 = vmatprep.subr.bf16.mxu0 0
    %2608 = vmatpush1.bf16.msra.mxu0 0
    %2609 = vmatprep.subr.bf16.mxu0 0
    %2610 = vmatpush1.bf16.msra.mxu0 0
    %2611 = vmatprep.subr.bf16.mxu0 0
    %2612 = vmatpush1.bf16.msra.mxu0 0
    %2613 = vmatprep.subr.bf16.mxu0 0
    %2614 = vmatpush1.bf16.msra.mxu0 0
    %2615 = vmatprep.mubr.bf16.mxu0 0
    %2616 = vmatmul.mubr.bf16.gmra.mrb[0].mxu0 %v2582
    %v2617 = vpop.f32.mrb[0].mxu0
    %v2618 = vadd.f32 0.0, %v2617
    %v2619 = vpop.f32.mrb[0].mxu0
    %v2620 = vadd.f32 0.0, %v2619
    %v2621 = vpop.f32.mrb[0].mxu0
    %v2622 = vpop.f32.mrb[0].mxu0
    %2623 = vdwg.mxu0
    %2624 = vmatprep.subr.bf16.mxu0 %v1863
    %2625 = vmatpush1.bf16.msra.mxu0 %v1862
    %2626 = vmatprep.subr.bf16.mxu0 %v1867
    %2627 = vmatpush1.bf16.msra.mxu0 %v1866
    %2628 = vmatprep.subr.bf16.mxu0 %v1871
    %2629 = vmatpush1.bf16.msra.mxu0 %v1870
    %2630 = vmatprep.subr.bf16.mxu0 %v1875
    %2631 = vmatpush1.bf16.msra.mxu0 %v1874
    %2632 = vmatprep.subr.bf16.mxu0 %v1879
    %2633 = vmatpush1.bf16.msra.mxu0 %v1878
    %2634 = vmatprep.subr.bf16.mxu0 %v1883
    %2635 = vmatpush1.bf16.msra.mxu0 %v1882
    %2636 = vmatprep.subr.bf16.mxu0 %v1887
    %2637 = vmatpush1.bf16.msra.mxu0 %v1886
    %2638 = vmatprep.subr.bf16.mxu0 %v1891
    %2639 = vmatpush1.bf16.msra.mxu0 %v1890
    %2640 = vmatprep.subr.bf16.mxu0 0
    %2641 = vmatpush1.bf16.msra.mxu0 0
    %2642 = vmatprep.subr.bf16.mxu0 0
    %2643 = vmatpush1.bf16.msra.mxu0 0
    %2644 = vmatprep.subr.bf16.mxu0 0
    %2645 = vmatpush1.bf16.msra.mxu0 0
    %2646 = vmatprep.subr.bf16.mxu0 0
    %2647 = vmatpush1.bf16.msra.mxu0 0
    %2648 = vmatprep.subr.bf16.mxu0 0
    %2649 = vmatpush1.bf16.msra.mxu0 0
    %2650 = vmatprep.subr.bf16.mxu0 0
    %2651 = vmatpush1.bf16.msra.mxu0 0
    %2652 = vmatprep.subr.bf16.mxu0 0
    %2653 = vmatpush1.bf16.msra.mxu0 0
    %2654 = vmatprep.subr.bf16.mxu0 0
    %2655 = vmatpush1.bf16.msra.mxu0 0
    %2656 = vmatprep.mubr.bf16.mxu0 0
    %2657 = vmatmul.mubr.bf16.gmra.mrb[0].mxu0 %v2582
    %v2658 = vpop.f32.mrb[0].mxu0
    %v2659 = vadd.f32 0.0, %v2658
    %v2660 = vpop.f32.mrb[0].mxu0
    %v2661 = vadd.f32 0.0, %v2660
    %v2662 = vpop.f32.mrb[0].mxu0
    %v2663 = vpop.f32.mrb[0].mxu0
    %2664 = vdwg.mxu0
    %v2665 = vadd.f32 %v2578, %v2618
    %v2666 = vadd.f32 %v2579, %v2620
    %v2667 = vadd.f32 %v2580, %v2659
    %v2668 = vadd.f32 %v2581, %v2661
    %v2669 = vxor.u32 %v2665, 2147483648
    %v2670 = vmul.f32 %v2669, 1.442695
    %v2671 = vpow.pop %v2670
    %v2672 = vadd.f32 %v2671, 1.0
    %v2673 = vrcp.pop %v2672
    %v2674 = vmul.f32 1.0, %v2673
    %v2675 = vxor.u32 %v2666, 2147483648
    %v2676 = vmul.f32 %v2675, 1.442695
    %v2677 = vpow.pop %v2676
    %v2678 = vadd.f32 %v2677, 1.0
    %v2679 = vrcp.pop %v2678
    %v2680 = vmul.f32 1.0, %v2679
    %v2681 = vtanh.pop %v2667
    %v2682 = vxor.u32 %v2668, 2147483648
    %v2683 = vmul.f32 %v2682, 1.442695
    %v2684 = vpow.pop %v2683
    %v2685 = vadd.f32 %v2684, 1.0
    %v2686 = vrcp.pop %v2685
    %v2687 = vmul.f32 1.0, %v2686
    %v2688 = vmul.f32 %v2680, %v2576
    %v2689 = vmul.f32 %v2674, %v2681
    %v2690 = vadd.f32 %v2688, %v2689
    %v2691 = vtanh.pop %v2690
    %v2692 = vmul.f32 %v2687, %v2691
    %v2693 = vld [vmem:[%s1038] sm:$0xff]
    %vm2694 = vcmp.gt.f32.partialorder %v2693, 0.0
    %v2695 = vsel %vm2694, 1, 0
    %2696 = vset.pattern.permute.xlu0 0
    %2697 = vperm.xlu0 %2696, %v2695
    %v2698 = vpop.permute.xlu0 %2697
    %vm2699 = vcmp.eq.s32.totalorder %v2698, 1
    %v2700 = vsel %vm2699, %v2692, %v2575
    %v2701 = vsel %vm2699, %v2690, %v2576
    %2702 = vst [vmem:[%s1755] sm:$0xff] %v2700
    %2703 = vst [vmem:[%s1757] sm:$0xff] %v2701
    %v2704 = vsel %vm2699, %v2692, 0.0
    %s2705 = scalar_lea.vmem [#allocation12], 40
    %2706 = vst [vmem:[%s2705] sm:$0xff] %v2704
    %v2707 = vld [vmem:[%s1755] sm:$0xff]
    %v2708 = vld [vmem:[%s1757] sm:$0xff]
    %s2709 = scalar_lea.vmem [#allocation5], 192
    %v2710 = vld [vmem:[%s2709] sm:$0xff]
    %v2711 = vld [vmem:[%s2709 + $0x8] sm:$0xff]
    %v2712 = vld [vmem:[%s2709 + $0x10] sm:$0xff]
    %v2713 = vld [vmem:[%s2709 + $0x18] sm:$0xff]
    %v2714 = vpack.c.bf16 %v2707, %v2707
    %2715 = vmatprep.subr.bf16.mxu0 %v1861
    %2716 = vmatpush1.bf16.msra.mxu0 %v1860
    %2717 = vmatprep.subr.bf16.mxu0 %v1865
    %2718 = vmatpush1.bf16.msra.mxu0 %v1864
    %2719 = vmatprep.subr.bf16.mxu0 %v1869
    %2720 = vmatpush1.bf16.msra.mxu0 %v1868
    %2721 = vmatprep.subr.bf16.mxu0 %v1873
    %2722 = vmatpush1.bf16.msra.mxu0 %v1872
    %2723 = vmatprep.subr.bf16.mxu0 %v1877
    %2724 = vmatpush1.bf16.msra.mxu0 %v1876
    %2725 = vmatprep.subr.bf16.mxu0 %v1881
    %2726 = vmatpush1.bf16.msra.mxu0 %v1880
    %2727 = vmatprep.subr.bf16.mxu0 %v1885
    %2728 = vmatpush1.bf16.msra.mxu0 %v1884
    %2729 = vmatprep.subr.bf16.mxu0 %v1889
    %2730 = vmatpush1.bf16.msra.mxu0 %v1888
    %2731 = vmatprep.subr.bf16.mxu0 0
    %2732 = vmatpush1.bf16.msra.mxu0 0
    %2733 = vmatprep.subr.bf16.mxu0 0
    %2734 = vmatpush1.bf16.msra.mxu0 0
    %2735 = vmatprep.subr.bf16.mxu0 0
    %2736 = vmatpush1.bf16.msra.mxu0 0
    %2737 = vmatprep.subr.bf16.mxu0 0
    %2738 = vmatpush1.bf16.msra.mxu0 0
    %2739 = vmatprep.subr.bf16.mxu0 0
    %2740 = vmatpush1.bf16.msra.mxu0 0
    %2741 = vmatprep.subr.bf16.mxu0 0
    %2742 = vmatpush1.bf16.msra.mxu0 0
    %2743 = vmatprep.subr.bf16.mxu0 0
    %2744 = vmatpush1.bf16.msra.mxu0 0
    %2745 = vmatprep.subr.bf16.mxu0 0
    %2746 = vmatpush1.bf16.msra.mxu0 0
    %2747 = vmatprep.mubr.bf16.mxu0 0
    %2748 = vmatmul.mubr.bf16.gmra.mrb[0].mxu0 %v2714
    %v2749 = vpop.f32.mrb[0].mxu0
    %v2750 = vadd.f32 0.0, %v2749
    %v2751 = vpop.f32.mrb[0].mxu0
    %v2752 = vadd.f32 0.0, %v2751
    %v2753 = vpop.f32.mrb[0].mxu0
    %v2754 = vpop.f32.mrb[0].mxu0
    %2755 = vdwg.mxu0
    %2756 = vmatprep.subr.bf16.mxu0 %v1863
    %2757 = vmatpush1.bf16.msra.mxu0 %v1862
    %2758 = vmatprep.subr.bf16.mxu0 %v1867
    %2759 = vmatpush1.bf16.msra.mxu0 %v1866
    %2760 = vmatprep.subr.bf16.mxu0 %v1871
    %2761 = vmatpush1.bf16.msra.mxu0 %v1870
    %2762 = vmatprep.subr.bf16.mxu0 %v1875
    %2763 = vmatpush1.bf16.msra.mxu0 %v1874
    %2764 = vmatprep.subr.bf16.mxu0 %v1879
    %2765 = vmatpush1.bf16.msra.mxu0 %v1878
    %2766 = vmatprep.subr.bf16.mxu0 %v1883
    %2767 = vmatpush1.bf16.msra.mxu0 %v1882
    %2768 = vmatprep.subr.bf16.mxu0 %v1887
    %2769 = vmatpush1.bf16.msra.mxu0 %v1886
    %2770 = vmatprep.subr.bf16.mxu0 %v1891
    %2771 = vmatpush1.bf16.msra.mxu0 %v1890
    %2772 = vmatprep.subr.bf16.mxu0 0
    %2773 = vmatpush1.bf16.msra.mxu0 0
    %2774 = vmatprep.subr.bf16.mxu0 0
    %2775 = vmatpush1.bf16.msra.mxu0 0
    %2776 = vmatprep.subr.bf16.mxu0 0
    %2777 = vmatpush1.bf16.msra.mxu0 0
    %2778 = vmatprep.subr.bf16.mxu0 0
    %2779 = vmatpush1.bf16.msra.mxu0 0
    %2780 = vmatprep.subr.bf16.mxu0 0
    %2781 = vmatpush1.bf16.msra.mxu0 0
    %2782 = vmatprep.subr.bf16.mxu0 0
    %2783 = vmatpush1.bf16.msra.mxu0 0
    %2784 = vmatprep.subr.bf16.mxu0 0
    %2785 = vmatpush1.bf16.msra.mxu0 0
    %2786 = vmatprep.subr.bf16.mxu0 0
    %2787 = vmatpush1.bf16.msra.mxu0 0
    %2788 = vmatprep.mubr.bf16.mxu0 0
    %2789 = vmatmul.mubr.bf16.gmra.mrb[0].mxu0 %v2714
    %v2790 = vpop.f32.mrb[0].mxu0
    %v2791 = vadd.f32 0.0, %v2790
    %v2792 = vpop.f32.mrb[0].mxu0
    %v2793 = vadd.f32 0.0, %v2792
    %v2794 = vpop.f32.mrb[0].mxu0
    %v2795 = vpop.f32.mrb[0].mxu0
    %2796 = vdwg.mxu0
    %v2797 = vadd.f32 %v2710, %v2750
    %v2798 = vadd.f32 %v2711, %v2752
    %v2799 = vadd.f32 %v2712, %v2791
    %v2800 = vadd.f32 %v2713, %v2793
    %v2801 = vxor.u32 %v2797, 2147483648
    %v2802 = vmul.f32 %v2801, 1.442695
    %v2803 = vpow.pop %v2802
    %v2804 = vadd.f32 %v2803, 1.0
    %v2805 = vrcp.pop %v2804
    %v2806 = vmul.f32 1.0, %v2805
    %v2807 = vxor.u32 %v2798, 2147483648
    %v2808 = vmul.f32 %v2807, 1.442695
    %v2809 = vpow.pop %v2808
    %v2810 = vadd.f32 %v2809, 1.0
    %v2811 = vrcp.pop %v2810
    %v2812 = vmul.f32 1.0, %v2811
    %v2813 = vtanh.pop %v2799
    %v2814 = vxor.u32 %v2800, 2147483648
    %v2815 = vmul.f32 %v2814, 1.442695
    %v2816 = vpow.pop %v2815
    %v2817 = vadd.f32 %v2816, 1.0
    %v2818 = vrcp.pop %v2817
    %v2819 = vmul.f32 1.0, %v2818
    %v2820 = vmul.f32 %v2812, %v2708
    %v2821 = vmul.f32 %v2806, %v2813
    %v2822 = vadd.f32 %v2820, %v2821
    %v2823 = vtanh.pop %v2822
    %v2824 = vmul.f32 %v2819, %v2823
    %v2825 = vld [vmem:[%s1170] sm:$0xff]
    %vm2826 = vcmp.gt.f32.partialorder %v2825, 0.0
    %v2827 = vsel %vm2826, 1, 0
    %2828 = vset.pattern.permute.xlu0 0
    %2829 = vperm.xlu0 %2828, %v2827
    %v2830 = vpop.permute.xlu0 %2829
    %vm2831 = vcmp.eq.s32.totalorder %v2830, 1
    %v2832 = vsel %vm2831, %v2824, %v2707
    %v2833 = vsel %vm2831, %v2822, %v2708
    %2834 = vst [vmem:[%s1755] sm:$0xff] %v2832
    %2835 = vst [vmem:[%s1757] sm:$0xff] %v2833
    %v2836 = vsel %vm2831, %v2824, 0.0
    %s2837 = scalar_lea.vmem [#allocation12], 48
    %2838 = vst [vmem:[%s2837] sm:$0xff] %v2836
    %v2839 = vld [vmem:[%s1755] sm:$0xff]
    %v2840 = vld [vmem:[%s1757] sm:$0xff]
    %s2841 = scalar_lea.vmem [#allocation5], 224
    %v2842 = vld [vmem:[%s2841] sm:$0xff]
    %v2843 = vld [vmem:[%s2841 + $0x8] sm:$0xff]
    %v2844 = vld [vmem:[%s2841 + $0x10] sm:$0xff]
    %v2845 = vld [vmem:[%s2841 + $0x18] sm:$0xff]
    %v2846 = vpack.c.bf16 %v2839, %v2839
    %2847 = vmatprep.subr.bf16.mxu0 %v1861
    %2848 = vmatpush1.bf16.msra.mxu0 %v1860
    %2849 = vmatprep.subr.bf16.mxu0 %v1865
    %2850 = vmatpush1.bf16.msra.mxu0 %v1864
    %2851 = vmatprep.subr.bf16.mxu0 %v1869
    %2852 = vmatpush1.bf16.msra.mxu0 %v1868
    %2853 = vmatprep.subr.bf16.mxu0 %v1873
    %2854 = vmatpush1.bf16.msra.mxu0 %v1872
    %2855 = vmatprep.subr.bf16.mxu0 %v1877
    %2856 = vmatpush1.bf16.msra.mxu0 %v1876
    %2857 = vmatprep.subr.bf16.mxu0 %v1881
    %2858 = vmatpush1.bf16.msra.mxu0 %v1880
    %2859 = vmatprep.subr.bf16.mxu0 %v1885
    %2860 = vmatpush1.bf16.msra.mxu0 %v1884
    %2861 = vmatprep.subr.bf16.mxu0 %v1889
    %2862 = vmatpush1.bf16.msra.mxu0 %v1888
    %2863 = vmatprep.subr.bf16.mxu0 0
    %2864 = vmatpush1.bf16.msra.mxu0 0
    %2865 = vmatprep.subr.bf16.mxu0 0
    %2866 = vmatpush1.bf16.msra.mxu0 0
    %2867 = vmatprep.subr.bf16.mxu0 0
    %2868 = vmatpush1.bf16.msra.mxu0 0
    %2869 = vmatprep.subr.bf16.mxu0 0
    %2870 = vmatpush1.bf16.msra.mxu0 0
    %2871 = vmatprep.subr.bf16.mxu0 0
    %2872 = vmatpush1.bf16.msra.mxu0 0
    %2873 = vmatprep.subr.bf16.mxu0 0
    %2874 = vmatpush1.bf16.msra.mxu0 0
    %2875 = vmatprep.subr.bf16.mxu0 0
    %2876 = vmatpush1.bf16.msra.mxu0 0
    %2877 = vmatprep.subr.bf16.mxu0 0
    %2878 = vmatpush1.bf16.msra.mxu0 0
    %2879 = vmatprep.mubr.bf16.mxu0 0
    %2880 = vmatmul.mubr.bf16.gmra.mrb[0].mxu0 %v2846
    %v2881 = vpop.f32.mrb[0].mxu0
    %v2882 = vadd.f32 0.0, %v2881
    %v2883 = vpop.f32.mrb[0].mxu0
    %v2884 = vadd.f32 0.0, %v2883
    %v2885 = vpop.f32.mrb[0].mxu0
    %v2886 = vpop.f32.mrb[0].mxu0
    %2887 = vdwg.mxu0
    %2888 = vmatprep.subr.bf16.mxu0 %v1863
    %2889 = vmatpush1.bf16.msra.mxu0 %v1862
    %2890 = vmatprep.subr.bf16.mxu0 %v1867
    %2891 = vmatpush1.bf16.msra.mxu0 %v1866
    %2892 = vmatprep.subr.bf16.mxu0 %v1871
    %2893 = vmatpush1.bf16.msra.mxu0 %v1870
    %2894 = vmatprep.subr.bf16.mxu0 %v1875
    %2895 = vmatpush1.bf16.msra.mxu0 %v1874
    %2896 = vmatprep.subr.bf16.mxu0 %v1879
    %2897 = vmatpush1.bf16.msra.mxu0 %v1878
    %2898 = vmatprep.subr.bf16.mxu0 %v1883
    %2899 = vmatpush1.bf16.msra.mxu0 %v1882
    %2900 = vmatprep.subr.bf16.mxu0 %v1887
    %2901 = vmatpush1.bf16.msra.mxu0 %v1886
    %2902 = vmatprep.subr.bf16.mxu0 %v1891
    %2903 = vmatpush1.bf16.msra.mxu0 %v1890
    %2904 = vmatprep.subr.bf16.mxu0 0
    %2905 = vmatpush1.bf16.msra.mxu0 0
    %2906 = vmatprep.subr.bf16.mxu0 0
    %2907 = vmatpush1.bf16.msra.mxu0 0
    %2908 = vmatprep.subr.bf16.mxu0 0
    %2909 = vmatpush1.bf16.msra.mxu0 0
    %2910 = vmatprep.subr.bf16.mxu0 0
    %2911 = vmatpush1.bf16.msra.mxu0 0
    %2912 = vmatprep.subr.bf16.mxu0 0
    %2913 = vmatpush1.bf16.msra.mxu0 0
    %2914 = vmatprep.subr.bf16.mxu0 0
    %2915 = vmatpush1.bf16.msra.mxu0 0
    %2916 = vmatprep.subr.bf16.mxu0 0
    %2917 = vmatpush1.bf16.msra.mxu0 0
    %2918 = vmatprep.subr.bf16.mxu0 0
    %2919 = vmatpush1.bf16.msra.mxu0 0
    %2920 = vmatprep.mubr.bf16.mxu0 0
    %2921 = vmatmul.mubr.bf16.gmra.mrb[0].mxu0 %v2846
    %v2922 = vpop.f32.mrb[0].mxu0
    %v2923 = vadd.f32 0.0, %v2922
    %v2924 = vpop.f32.mrb[0].mxu0
    %v2925 = vadd.f32 0.0, %v2924
    %v2926 = vpop.f32.mrb[0].mxu0
    %v2927 = vpop.f32.mrb[0].mxu0
    %2928 = vdwg.mxu0
    %v2929 = vadd.f32 %v2842, %v2882
    %v2930 = vadd.f32 %v2843, %v2884
    %v2931 = vadd.f32 %v2844, %v2923
    %v2932 = vadd.f32 %v2845, %v2925
    %v2933 = vxor.u32 %v2929, 2147483648
    %v2934 = vmul.f32 %v2933, 1.442695
    %v2935 = vpow.pop %v2934
    %v2936 = vadd.f32 %v2935, 1.0
    %v2937 = vrcp.pop %v2936
    %v2938 = vmul.f32 1.0, %v2937
    %v2939 = vxor.u32 %v2930, 2147483648
    %v2940 = vmul.f32 %v2939, 1.442695
    %v2941 = vpow.pop %v2940
    %v2942 = vadd.f32 %v2941, 1.0
    %v2943 = vrcp.pop %v2942
    %v2944 = vmul.f32 1.0, %v2943
    %v2945 = vtanh.pop %v2931
    %v2946 = vxor.u32 %v2932, 2147483648
    %v2947 = vmul.f32 %v2946, 1.442695
    %v2948 = vpow.pop %v2947
    %v2949 = vadd.f32 %v2948, 1.0
    %v2950 = vrcp.pop %v2949
    %v2951 = vmul.f32 1.0, %v2950
    %v2952 = vmul.f32 %v2944, %v2840
    %v2953 = vmul.f32 %v2938, %v2945
    %v2954 = vadd.f32 %v2952, %v2953
    %v2955 = vtanh.pop %v2954
    %v2956 = vmul.f32 %v2951, %v2955
    %v2957 = vld [vmem:[%s1302] sm:$0xff]
    %vm2958 = vcmp.gt.f32.partialorder %v2957, 0.0
    %v2959 = vsel %vm2958, 1, 0
    %2960 = vset.pattern.permute.xlu0 0
    %2961 = vperm.xlu0 %2960, %v2959
    %v2962 = vpop.permute.xlu0 %2961
    %vm2963 = vcmp.eq.s32.totalorder %v2962, 1
    %v2964 = vsel %vm2963, %v2956, %v2839
    %v2965 = vsel %vm2963, %v2954, %v2840
    %2966 = vst [vmem:[%s1755] sm:$0xff] %v2964
    %2967 = vst [vmem:[%s1757] sm:$0xff] %v2965
    %v2968 = vsel %vm2963, %v2956, 0.0
    %s2969 = scalar_lea.vmem [#allocation12], 56
    %2970 = vst [vmem:[%s2969] sm:$0xff] %v2968
    // Predicated region
    $region38: #{tpu_custom_call.1} parent=1 // pred_check
      _
    $region39: #{tpu_custom_call.1} parent=1 // pred_check_branch
      %2972 = sbr.rel (0) target = $region41
    $region40: #{tpu_custom_call.1} parent=1 // pred_region
      %s2974 = ssub.s32 1024, 1024
      %2975 = vsyncadd [#allocation8], %s2974
      %s2976 = sshll.u32 [#allocation12], 4
      %s2977 = int_to_ptr.vmem [resolvable:$true] %s2976
      %2982 = dma.vmem_to_hbm [thread:$0]  %s2977, 1024, %s5, [#allocation8], 128, 128, 8
    $region41: #{tpu_custom_call.1} parent=1 // pred_fallthru
      _
    // Predicated region
    $region42: #{tpu_custom_call.1} parent=1 // pred_check
      _
    $region43: #{tpu_custom_call.1} parent=1 // pred_check_branch
      %2984 = sbr.rel (0) target = $region45
    $region44: #{tpu_custom_call.1} parent=1 // pred_region
      %2985 = dma.done [#allocation8], 1024
    $region45: #{tpu_custom_call.1} parent=1 // pred_fallthru
      _
    %2986 = vsyncpa [#allocation7], 1
    %2987 = vsyncpa [#allocation10], 1
    %2988 = vsyncpa [#allocation8], 1

</llo_original>
